<compile_context>
chip_gen: v5e
topology: v5e:2x2
jax: 0.10.0
libtpu: 0.0.40
codegen_flags: <defaults>
</compile_context>

<pallas_src>
import functools

import jax
import jax.numpy as jnp
from jax.experimental import pallas as pl
from jax.experimental.pallas import tpu as pltpu


def _round_up(x, m):
    return ((x + m - 1) // m) * m


# --------------------------------------------------------------------------
# Pallas kernels
# --------------------------------------------------------------------------

def _mm_bias_act_kernel(a_ref, b_ref, c_ref, o_ref, acc_ref, *, relu):
    """One (M, K) tile: f32-accumulated A@B, then +bias and optional ReLU."""
    @pl.when(pl.program_id(1) == 0)
    def _():
        acc_ref[...] = jnp.zeros_like(acc_ref)

    acc_ref[...] += jnp.dot(a_ref[...], b_ref[...],
                            preferred_element_type=jnp.float32)

    @pl.when(pl.program_id(1) == pl.num_programs(1) - 1)
    def _():
        y = acc_ref[...] + c_ref[...]
        if relu:
            y = jnp.maximum(y, 0.0)
        o_ref[...] = y


def _pick_tk(k, tk_max):
    """Largest lane-aligned K tile that divides K; full K when not tileable."""
    if k <= tk_max or k % 128 != 0:
        return k
    best, d = 128, 128
    while d <= tk_max:
        if k % d == 0:
            best = d
        d += 128
    return best


def fused_matmul(a, b, bias, relu=True, tm=128, tk=1024):
    """a:(M,K) bf16 @ b:(K,N) bf16, + bias:(N,) f32, optional ReLU -> (M,N) f32."""
    M, K = a.shape
    N = b.shape[1]
    TM = min(tm, _round_up(M, 8))
    Mp = _round_up(M, TM)
    if Mp != M:                       # pad only when the last M tile is ragged
        a = jnp.pad(a, ((0, Mp - M), (0, 0)))
    TK = _pick_tk(K, tk)
    out = pl.pallas_call(
        functools.partial(_mm_bias_act_kernel, relu=relu),
        out_shape=jax.ShapeDtypeStruct((Mp, N), jnp.float32),
        grid=(Mp // TM, K // TK),
        in_specs=[
            pl.BlockSpec((TM, TK), lambda i, k: (i, k)),
            pl.BlockSpec((TK, N), lambda i, k: (k, 0)),
            pl.BlockSpec((1, N), lambda i, k: (0, 0)),
        ],
        out_specs=pl.BlockSpec((TM, N), lambda i, k: (i, 0)),
        scratch_shapes=[pltpu.VMEM((TM, N), jnp.float32)],
        compiler_params=pltpu.CompilerParams(
            dimension_semantics=("parallel", "arbitrary")),
    )(a, b, bias.reshape(1, N).astype(jnp.float32))
    return out[:M] if Mp != M else out


def _maxpool_kernel(p_ref, o_ref, *, kk):
    """Max-reduce the window axis (leading, static length kk) of (KK, TM, C)."""
    acc = p_ref[0]
    for i in range(1, kk):
        acc = jnp.maximum(acc, p_ref[i])
    o_ref[...] = acc


def max_pool2d(x, k, s, tm=256):
    """F.max_pool2d(kernel_size=k, stride=s, padding=0) on NHWC input."""
    N, H, W, C = x.shape
    OH = (H - k) // s + 1
    OW = (W - k) // s + 1
    cols = [x[:, i:i + s * OH:s, j:j + s * OW:s, :]
            for i in range(k) for j in range(k)]
    pat = jnp.stack(cols, axis=0).reshape(k * k, N * OH * OW, C)
    M = N * OH * OW
    TM = min(tm, _round_up(M, 8))
    Mp = _round_up(M, TM)
    if Mp != M:
        pat = jnp.pad(pat, ((0, 0), (0, Mp - M), (0, 0)))
    out = pl.pallas_call(
        functools.partial(_maxpool_kernel, kk=k * k),
        out_shape=jax.ShapeDtypeStruct((Mp, C), jnp.float32),
        grid=(Mp // TM,),
        in_specs=[pl.BlockSpec((k * k, TM, C), lambda i: (0, i, 0))],
        out_specs=pl.BlockSpec((TM, C), lambda i: (i, 0)),
        compiler_params=pltpu.CompilerParams(
            dimension_semantics=("parallel",)),
    )(pat)
    out = out[:M] if Mp != M else out
    return out.reshape(N, OH, OW, C)


# --------------------------------------------------------------------------
# Conv glue (padding / patch extraction / reshapes)
# --------------------------------------------------------------------------

def _im2col_bf16(x, kh, kw, sh, sw, ph, pw):
    """NHWC -> bf16 patch matrix (N*OH*OW, kh*kw*C); K index = (i*kw+j)*C + c."""
    N, H, W, C = x.shape
    xp = jnp.pad(x, ((0, 0), (ph, ph), (pw, pw), (0, 0)))
    Hp, Wp = H + 2 * ph, W + 2 * pw
    OH = (Hp - kh) // sh + 1
    OW = (Wp - kw) // sw + 1
    cols = [xp[:, i:i + sh * OH:sh, j:j + sw * OW:sw, :]
            for i in range(kh) for j in range(kw)]
    pat = jnp.stack(cols, axis=3)                       # (N, OH, OW, KK, C)
    pat = pat.reshape(N * OH * OW, kh * kw * C).astype(jnp.bfloat16)
    return pat, OH, OW


def basic_conv2d(p, x):
    """Conv2d(bias=False) + BatchNorm2d(eps=1e-3, eval) + ReLU, NHWC in/out."""
    N, H, W, C = x.shape
    if p["kh"] == 1 and p["kw"] == 1 and p["sh"] == 1 and p["sw"] == 1:
        a = x.reshape(N * H * W, C).astype(jnp.bfloat16)   # no im2col for 1x1
        OH, OW = H, W
    else:
        a, OH, OW = _im2col_bf16(x, p["kh"], p["kw"], p["sh"], p["sw"],
                                 p["ph"], p["pw"])
    y = fused_matmul(a, p["w2"], p["bias"], relu=True)
    return y.reshape(N, OH, OW, -1)


# --------------------------------------------------------------------------
# Deterministic parameter initialization (mirrors BasicConv2d / InceptionB)
# --------------------------------------------------------------------------

class _Keys:
    def __init__(self, seed=0):
        self._k = jax.random.PRNGKey(seed)

    def __call__(self):
        self._k, sub = jax.random.split(self._k)
        return sub


def conv_p(kg, cin, cout, ksize, stride=1, padding=0):
    kh, kw = (ksize, ksize) if isinstance(ksize, int) else ksize
    sh, sw = (stride, stride) if isinstance(stride, int) else stride
    ph, pw = (padding, padding) if isinstance(padding, int) else padding
    # truncnorm(-2, 2, scale=0.1), torchvision-inception style deterministic init
    w = (0.1 * jax.random.truncated_normal(
        kg(), -2.0, 2.0, (cout, cin, kh, kw))).astype(jnp.float32)
    gamma = jnp.ones((cout,), jnp.float32)
    beta = jnp.zeros((cout,), jnp.float32)
    mean = jnp.zeros((cout,), jnp.float32)
    var = jnp.ones((cout,), jnp.float32)
    scale = gamma / jnp.sqrt(var + 1e-3)
    bias = beta - mean * scale
    # Matmul-ready weight: K = (i*kw+j)*Cin + c ordering, BN scale folded into
    # the columns, stored as bf16 so the MXU consumes bf16 operands.
    w2 = w.transpose(2, 3, 1, 0).reshape(kh * kw * cin, cout) * scale[None, :]
    return dict(w2=w2.astype(jnp.bfloat16), bias=bias,
                kh=kh, kw=kw, sh=sh, sw=sw, ph=ph, pw=pw)


def init_inception_b(cin, seed=0):
    kg = _Keys(seed)
    return dict(
        b3=conv_p(kg, cin, 384, 3, stride=2),       # branch3x3
        d1=conv_p(kg, cin, 64, 1),                  # branch3x3dbl_1
        d2=conv_p(kg, 64, 96, 3, padding=1),        # branch3x3dbl_2
        d3=conv_p(kg, 96, 96, 3, stride=2),         # branch3x3dbl_3
    )


def inception_b_forward(p, x_nchw):
    """InceptionB.forward: NCHW f32 in -> NCHW f32 out (channel concat)."""
    x = jnp.transpose(x_nchw, (0, 2, 3, 1))              # NCHW -> NHWC
    b3 = basic_conv2d(p["b3"], x)                        # (N, OH, OW, 384)
    d = basic_conv2d(p["d1"], x)
    d = basic_conv2d(p["d2"], d)
    d = basic_conv2d(p["d3"], d)                         # (N, OH, OW, 96)
    bp = max_pool2d(x, 3, 2)                             # (N, OH, OW, Cin)
    out = jnp.concatenate([b3, d, bp], axis=-1)
    return jnp.transpose(out, (0, 3, 1, 2))              # NHWC -> NCHW


if __name__ == "__main__":
    key = jax.random.PRNGKey(0)
    N, CIN, H, W = 2, 32, 16, 16
    x = jax.random.normal(key, (N, CIN, H, W), jnp.float32)
    params = init_inception_b(CIN, seed=0)
    fwd = jax.jit(lambda inp: inception_b_forward(params, inp))
    out = jax.block_until_ready(fwd(x))
    OH = (H - 3) // 2 + 1
    assert out.shape == (N, 384 + 96 + CIN, OH, OH), out.shape
    assert out.dtype == jnp.float32
    print("KERNEL_OK")
</pallas_src>

<mosaic_0001>
module attributes {stable_mosaic.version = 11 : i64} {
  func.func @_mm_bias_act_kernel(%arg0: i32, %arg1: i32, %arg2: memref<128x32xbf16, #tpu.memory_space<vmem>>, %arg3: memref<32x64xbf16, #tpu.memory_space<vmem>>, %arg4: memref<1x64xf32, #tpu.memory_space<vmem>>, %arg5: memref<128x64xf32, #tpu.memory_space<vmem>>, %arg6: memref<128x64xf32, #tpu.memory_space<vmem>>) attributes {dimension_semantics = [#tpu.dimension_semantics<parallel>, #tpu.dimension_semantics<arbitrary>], iteration_bounds = array<i64: 4, 1>, scalar_prefetch = 0 : i64, scratch_operands = 1 : i64, tpu.core_type = #tpu.core_type<tc>, window_params = [{transform_indices = @transform_0, window_bounds = array<i64: 128, 32>}, {transform_indices = @transform_1, window_bounds = array<i64: 32, 64>}, {pipeline_mode = #tpu.pipeline_mode<synchronous>, transform_indices = @transform_2, window_bounds = array<i64: 1, 64>}, {transform_indices = @transform_3, window_bounds = array<i64: 128, 64>}]} {
    %c0_i32 = arith.constant 0 : i32
    %0 = arith.cmpi eq, %arg1, %c0_i32 : i32
    %1 = arith.extui %0 : i1 to i32
    %c0_i32_0 = arith.constant 0 : i32
    %2 = arith.cmpi ne, %1, %c0_i32_0 : i32
    scf.if %2 {
      %cst_10 = arith.constant 0.000000e+00 : f32
      %12 = vector.broadcast %cst_10 : f32 to vector<128x64xf32>
      %c0_11 = arith.constant 0 : index
      %c0_12 = arith.constant 0 : index
      %13 = vector.load %arg6[%c0_11, %c0_12] : memref<128x64xf32, #tpu.memory_space<vmem>>, vector<128x64xf32>
      tpu.vector_store %arg6[%c0_11, %c0_12], %12 {strides = array<i32>} : memref<128x64xf32, #tpu.memory_space<vmem>>, vector<128x64xf32>,
    } else {
    }
    %c0 = arith.constant 0 : index
    %c0_1 = arith.constant 0 : index
    %3 = vector.load %arg6[%c0, %c0_1] : memref<128x64xf32, #tpu.memory_space<vmem>>, vector<128x64xf32>
    %c0_2 = arith.constant 0 : index
    %c0_3 = arith.constant 0 : index
    %4 = vector.load %arg2[%c0_2, %c0_3] : memref<128x32xbf16, #tpu.memory_space<vmem>>, vector<128x32xbf16>
    %c0_4 = arith.constant 0 : index
    %c0_5 = arith.constant 0 : index
    %5 = vector.load %arg3[%c0_4, %c0_5] : memref<32x64xbf16, #tpu.memory_space<vmem>>, vector<32x64xbf16>
    %cst = arith.constant dense<0.000000e+00> : vector<128x64xf32>
    %6 = tpu.matmul %4, %5, %cst {dimension_numbers = #tpu.dot_dimension_numbers<[1], [0], [0], [1], [0, 0, 1, 1], [], []>} : vector<128x32xbf16>, vector<32x64xbf16>, vector<128x64xf32> -> vector<128x64xf32>
    %7 = arith.addf %3, %6 : vector<128x64xf32>
    %c0_6 = arith.constant 0 : index
    %c0_7 = arith.constant 0 : index
    %8 = vector.load %arg6[%c0_6, %c0_7] : memref<128x64xf32, #tpu.memory_space<vmem>>, vector<128x64xf32>
    tpu.vector_store %arg6[%c0_6, %c0_7], %7 {strides = array<i32>} : memref<128x64xf32, #tpu.memory_space<vmem>>, vector<128x64xf32>,
    %c0_i32_8 = arith.constant 0 : i32
    %9 = arith.cmpi eq, %arg1, %c0_i32_8 : i32
    %10 = arith.extui %9 : i1 to i32
    %c0_i32_9 = arith.constant 0 : i32
    %11 = arith.cmpi ne, %10, %c0_i32_9 : i32
    scf.if %11 {
      %c0_10 = arith.constant 0 : index
      %c0_11 = arith.constant 0 : index
      %12 = vector.load %arg6[%c0_10, %c0_11] : memref<128x64xf32, #tpu.memory_space<vmem>>, vector<128x64xf32>
      %c0_12 = arith.constant 0 : index
      %c0_13 = arith.constant 0 : index
      %13 = vector.load %arg4[%c0_12, %c0_13] : memref<1x64xf32, #tpu.memory_space<vmem>>, vector<1x64xf32>
      %14 = vector.broadcast %13 : vector<1x64xf32> to vector<128x64xf32>
      %15 = arith.addf %12, %14 : vector<128x64xf32>
      %cst_14 = arith.constant 0.000000e+00 : f32
      %16 = vector.broadcast %cst_14 : f32 to vector<128x64xf32>
      %17 = arith.maximumf %15, %16 : vector<128x64xf32>
      %c0_15 = arith.constant 0 : index
      %c0_16 = arith.constant 0 : index
      %18 = vector.load %arg5[%c0_15, %c0_16] : memref<128x64xf32, #tpu.memory_space<vmem>>, vector<128x64xf32>
      tpu.vector_store %arg5[%c0_15, %c0_16], %17 {strides = array<i32>} : memref<128x64xf32, #tpu.memory_space<vmem>>, vector<128x64xf32>,
    } else {
    }
    return
  }
  func.func @transform_0(%arg0: i32, %arg1: i32) -> (i32, i32) {
    %c0_i32 = arith.constant 0 : i32
    return %arg0, %arg1 : i32, i32
  }
  func.func @transform_1(%arg0: i32, %arg1: i32) -> (i32, i32) {
    %c0_i32 = arith.constant 0 : i32
    %c0_i32_0 = arith.constant 0 : i32
    return %arg1, %c0_i32 : i32, i32
  }
  func.func @transform_2(%arg0: i32, %arg1: i32) -> (i32, i32) {
    %c0_i32 = arith.constant 0 : i32
    %c0_i32_0 = arith.constant 0 : i32
    %c0_i32_1 = arith.constant 0 : i32
    return %c0_i32, %c0_i32_0 : i32, i32
  }
  func.func @transform_3(%arg0: i32, %arg1: i32) -> (i32, i32) {
    %c0_i32 = arith.constant 0 : i32
    %c0_i32_0 = arith.constant 0 : i32
    return %arg0, %c0_i32 : i32, i32
  }
}

module attributes {stable_mosaic.version = 11 : i64} {
  func.func @_mm_bias_act_kernel(%arg0: i32, %arg1: i32, %arg2: memref<128x576xbf16, #tpu.memory_space<vmem>>, %arg3: memref<576x96xbf16, #tpu.memory_space<vmem>>, %arg4: memref<1x96xf32, #tpu.memory_space<vmem>>, %arg5: memref<128x96xf32, #tpu.memory_space<vmem>>, %arg6: memref<128x96xf32, #tpu.memory_space<vmem>>) attributes {dimension_semantics = [#tpu.dimension_semantics<parallel>, #tpu.dimension_semantics<arbitrary>], iteration_bounds = array<i64: 4, 1>, scalar_prefetch = 0 : i64, scratch_operands = 1 : i64, tpu.core_type = #tpu.core_type<tc>, window_params = [{transform_indices = @transform_0, window_bounds = array<i64: 128, 576>}, {transform_indices = @transform_1, window_bounds = array<i64: 576, 96>}, {pipeline_mode = #tpu.pipeline_mode<synchronous>, transform_indices = @transform_2, window_bounds = array<i64: 1, 96>}, {transform_indices = @transform_3, window_bounds = array<i64: 128, 96>}]} {
    %c0_i32 = arith.constant 0 : i32
    %0 = arith.cmpi eq, %arg1, %c0_i32 : i32
    %1 = arith.extui %0 : i1 to i32
    %c0_i32_0 = arith.constant 0 : i32
    %2 = arith.cmpi ne, %1, %c0_i32_0 : i32
    scf.if %2 {
      %cst_10 = arith.constant 0.000000e+00 : f32
      %12 = vector.broadcast %cst_10 : f32 to vector<128x96xf32>
      %c0_11 = arith.constant 0 : index
      %c0_12 = arith.constant 0 : index
      %13 = vector.load %arg6[%c0_11, %c0_12] : memref<128x96xf32, #tpu.memory_space<vmem>>, vector<128x96xf32>
      tpu.vector_store %arg6[%c0_11, %c0_12], %12 {strides = array<i32>} : memref<128x96xf32, #tpu.memory_space<vmem>>, vector<128x96xf32>,
    } else {
    }
    %c0 = arith.constant 0 : index
    %c0_1 = arith.constant 0 : index
    %3 = vector.load %arg6[%c0, %c0_1] : memref<128x96xf32, #tpu.memory_space<vmem>>, vector<128x96xf32>
    %c0_2 = arith.constant 0 : index
    %c0_3 = arith.constant 0 : index
    %4 = vector.load %arg2[%c0_2, %c0_3] : memref<128x576xbf16, #tpu.memory_space<vmem>>, vector<128x576xbf16>
    %c0_4 = arith.constant 0 : index
    %c0_5 = arith.constant 0 : index
    %5 = vector.load %arg3[%c0_4, %c0_5] : memref<576x96xbf16, #tpu.memory_space<vmem>>, vector<576x96xbf16>
    %cst = arith.constant dense<0.000000e+00> : vector<128x96xf32>
    %6 = tpu.matmul %4, %5, %cst {dimension_numbers = #tpu.dot_dimension_numbers<[1], [0], [0], [1], [0, 0, 1, 1], [], []>} : vector<128x576xbf16>, vector<576x96xbf16>, vector<128x96xf32> -> vector<128x96xf32>
    %7 = arith.addf %3, %6 : vector<128x96xf32>
    %c0_6 = arith.constant 0 : index
    %c0_7 = arith.constant 0 : index
    %8 = vector.load %arg6[%c0_6, %c0_7] : memref<128x96xf32, #tpu.memory_space<vmem>>, vector<128x96xf32>
    tpu.vector_store %arg6[%c0_6, %c0_7], %7 {strides = array<i32>} : memref<128x96xf32, #tpu.memory_space<vmem>>, vector<128x96xf32>,
    %c0_i32_8 = arith.constant 0 : i32
    %9 = arith.cmpi eq, %arg1, %c0_i32_8 : i32
    %10 = arith.extui %9 : i1 to i32
    %c0_i32_9 = arith.constant 0 : i32
    %11 = arith.cmpi ne, %10, %c0_i32_9 : i32
    scf.if %11 {
      %c0_10 = arith.constant 0 : index
      %c0_11 = arith.constant 0 : index
      %12 = vector.load %arg6[%c0_10, %c0_11] : memref<128x96xf32, #tpu.memory_space<vmem>>, vector<128x96xf32>
      %c0_12 = arith.constant 0 : index
      %c0_13 = arith.constant 0 : index
      %13 = vector.load %arg4[%c0_12, %c0_13] : memref<1x96xf32, #tpu.memory_space<vmem>>, vector<1x96xf32>
      %14 = vector.broadcast %13 : vector<1x96xf32> to vector<128x96xf32>
      %15 = arith.addf %12, %14 : vector<128x96xf32>
      %cst_14 = arith.constant 0.000000e+00 : f32
      %16 = vector.broadcast %cst_14 : f32 to vector<128x96xf32>
      %17 = arith.maximumf %15, %16 : vector<128x96xf32>
      %c0_15 = arith.constant 0 : index
      %c0_16 = arith.constant 0 : index
      %18 = vector.load %arg5[%c0_15, %c0_16] : memref<128x96xf32, #tpu.memory_space<vmem>>, vector<128x96xf32>
      tpu.vector_store %arg5[%c0_15, %c0_16], %17 {strides = array<i32>} : memref<128x96xf32, #tpu.memory_space<vmem>>, vector<128x96xf32>,
    } else {
    }
    return
  }
  func.func @transform_0(%arg0: i32, %arg1: i32) -> (i32, i32) {
    %c0_i32 = arith.constant 0 : i32
    return %arg0, %arg1 : i32, i32
  }
  func.func @transform_1(%arg0: i32, %arg1: i32) -> (i32, i32) {
    %c0_i32 = arith.constant 0 : i32
    %c0_i32_0 = arith.constant 0 : i32
    return %arg1, %c0_i32 : i32, i32
  }
  func.func @transform_2(%arg0: i32, %arg1: i32) -> (i32, i32) {
    %c0_i32 = arith.constant 0 : i32
    %c0_i32_0 = arith.constant 0 : i32
    %c0_i32_1 = arith.constant 0 : i32
    return %c0_i32, %c0_i32_0 : i32, i32
  }
  func.func @transform_3(%arg0: i32, %arg1: i32) -> (i32, i32) {
    %c0_i32 = arith.constant 0 : i32
    %c0_i32_0 = arith.constant 0 : i32
    return %arg0, %c0_i32 : i32, i32
  }
}

module attributes {stable_mosaic.version = 11 : i64} {
  func.func @_mm_bias_act_kernel(%arg0: i32, %arg1: i32, %arg2: memref<104x864xbf16, #tpu.memory_space<vmem>>, %arg3: memref<864x96xbf16, #tpu.memory_space<vmem>>, %arg4: memref<1x96xf32, #tpu.memory_space<vmem>>, %arg5: memref<104x96xf32, #tpu.memory_space<vmem>>, %arg6: memref<104x96xf32, #tpu.memory_space<vmem>>) attributes {dimension_semantics = [#tpu.dimension_semantics<parallel>, #tpu.dimension_semantics<arbitrary>], iteration_bounds = array<i64: 1, 1>, scalar_prefetch = 0 : i64, scratch_operands = 1 : i64, tpu.core_type = #tpu.core_type<tc>, window_params = [{transform_indices = @transform_0, window_bounds = array<i64: 104, 864>}, {transform_indices = @transform_1, window_bounds = array<i64: 864, 96>}, {pipeline_mode = #tpu.pipeline_mode<synchronous>, transform_indices = @transform_2, window_bounds = array<i64: 1, 96>}, {transform_indices = @transform_3, window_bounds = array<i64: 104, 96>}]} {
    %c0_i32 = arith.constant 0 : i32
    %0 = arith.cmpi eq, %arg1, %c0_i32 : i32
    %1 = arith.extui %0 : i1 to i32
    %c0_i32_0 = arith.constant 0 : i32
    %2 = arith.cmpi ne, %1, %c0_i32_0 : i32
    scf.if %2 {
      %cst_10 = arith.constant 0.000000e+00 : f32
      %12 = vector.broadcast %cst_10 : f32 to vector<104x96xf32>
      %c0_11 = arith.constant 0 : index
      %c0_12 = arith.constant 0 : index
      %13 = vector.load %arg6[%c0_11, %c0_12] : memref<104x96xf32, #tpu.memory_space<vmem>>, vector<104x96xf32>
      tpu.vector_store %arg6[%c0_11, %c0_12], %12 {strides = array<i32>} : memref<104x96xf32, #tpu.memory_space<vmem>>, vector<104x96xf32>,
    } else {
    }
    %c0 = arith.constant 0 : index
    %c0_1 = arith.constant 0 : index
    %3 = vector.load %arg6[%c0, %c0_1] : memref<104x96xf32, #tpu.memory_space<vmem>>, vector<104x96xf32>
    %c0_2 = arith.constant 0 : index
    %c0_3 = arith.constant 0 : index
    %4 = vector.load %arg2[%c0_2, %c0_3] : memref<104x864xbf16, #tpu.memory_space<vmem>>, vector<104x864xbf16>
    %c0_4 = arith.constant 0 : index
    %c0_5 = arith.constant 0 : index
    %5 = vector.load %arg3[%c0_4, %c0_5] : memref<864x96xbf16, #tpu.memory_space<vmem>>, vector<864x96xbf16>
    %cst = arith.constant dense<0.000000e+00> : vector<104x96xf32>
    %6 = tpu.matmul %4, %5, %cst {dimension_numbers = #tpu.dot_dimension_numbers<[1], [0], [0], [1], [0, 0, 1, 1], [], []>} : vector<104x864xbf16>, vector<864x96xbf16>, vector<104x96xf32> -> vector<104x96xf32>
    %7 = arith.addf %3, %6 : vector<104x96xf32>
    %c0_6 = arith.constant 0 : index
    %c0_7 = arith.constant 0 : index
    %8 = vector.load %arg6[%c0_6, %c0_7] : memref<104x96xf32, #tpu.memory_space<vmem>>, vector<104x96xf32>
    tpu.vector_store %arg6[%c0_6, %c0_7], %7 {strides = array<i32>} : memref<104x96xf32, #tpu.memory_space<vmem>>, vector<104x96xf32>,
    %c0_i32_8 = arith.constant 0 : i32
    %9 = arith.cmpi eq, %arg1, %c0_i32_8 : i32
    %10 = arith.extui %9 : i1 to i32
    %c0_i32_9 = arith.constant 0 : i32
    %11 = arith.cmpi ne, %10, %c0_i32_9 : i32
    scf.if %11 {
      %c0_10 = arith.constant 0 : index
      %c0_11 = arith.constant 0 : index
      %12 = vector.load %arg6[%c0_10, %c0_11] : memref<104x96xf32, #tpu.memory_space<vmem>>, vector<104x96xf32>
      %c0_12 = arith.constant 0 : index
      %c0_13 = arith.constant 0 : index
      %13 = vector.load %arg4[%c0_12, %c0_13] : memref<1x96xf32, #tpu.memory_space<vmem>>, vector<1x96xf32>
      %14 = vector.broadcast %13 : vector<1x96xf32> to vector<104x96xf32>
      %15 = arith.addf %12, %14 : vector<104x96xf32>
      %cst_14 = arith.constant 0.000000e+00 : f32
      %16 = vector.broadcast %cst_14 : f32 to vector<104x96xf32>
      %17 = arith.maximumf %15, %16 : vector<104x96xf32>
      %c0_15 = arith.constant 0 : index
      %c0_16 = arith.constant 0 : index
      %18 = vector.load %arg5[%c0_15, %c0_16] : memref<104x96xf32, #tpu.memory_space<vmem>>, vector<104x96xf32>
      tpu.vector_store %arg5[%c0_15, %c0_16], %17 {strides = array<i32>} : memref<104x96xf32, #tpu.memory_space<vmem>>, vector<104x96xf32>,
    } else {
    }
    return
  }
  func.func @transform_0(%arg0: i32, %arg1: i32) -> (i32, i32) {
    %c0_i32 = arith.constant 0 : i32
    return %arg0, %arg1 : i32, i32
  }
  func.func @transform_1(%arg0: i32, %arg1: i32) -> (i32, i32) {
    %c0_i32 = arith.constant 0 : i32
    %c0_i32_0 = arith.constant 0 : i32
    return %arg1, %c0_i32 : i32, i32
  }
  func.func @transform_2(%arg0: i32, %arg1: i32) -> (i32, i32) {
    %c0_i32 = arith.constant 0 : i32
    %c0_i32_0 = arith.constant 0 : i32
    %c0_i32_1 = arith.constant 0 : i32
    return %c0_i32, %c0_i32_0 : i32, i32
  }
  func.func @transform_3(%arg0: i32, %arg1: i32) -> (i32, i32) {
    %c0_i32 = arith.constant 0 : i32
    %c0_i32_0 = arith.constant 0 : i32
    return %arg0, %c0_i32 : i32, i32
  }
}

module attributes {stable_mosaic.version = 11 : i64} {
  func.func @_maxpool_kernel(%arg0: i32, %arg1: memref<9x104x32xf32, #tpu.memory_space<vmem>>, %arg2: memref<104x32xf32, #tpu.memory_space<vmem>>) attributes {dimension_semantics = [#tpu.dimension_semantics<parallel>], iteration_bounds = array<i64: 1>, scalar_prefetch = 0 : i64, scratch_operands = 0 : i64, tpu.core_type = #tpu.core_type<tc>, window_params = [{transform_indices = @transform_0, window_bounds = array<i64: 9, 104, 32>}, {transform_indices = @transform_1, window_bounds = array<i64: 104, 32>}]} {
    %c0 = arith.constant 0 : index
    %c0_0 = arith.constant 0 : index
    %c0_1 = arith.constant 0 : index
    %0 = vector.load %arg1[%c0, %c0_0, %c0_1] : memref<9x104x32xf32, #tpu.memory_space<vmem>>, vector<1x104x32xf32>
    %1 = vector.shape_cast %0 : vector<1x104x32xf32> to vector<104x32xf32>
    %c1 = arith.constant 1 : index
    %c0_2 = arith.constant 0 : index
    %c0_3 = arith.constant 0 : index
    %2 = vector.load %arg1[%c1, %c0_2, %c0_3] : memref<9x104x32xf32, #tpu.memory_space<vmem>>, vector<1x104x32xf32>
    %3 = vector.shape_cast %2 : vector<1x104x32xf32> to vector<104x32xf32>
    %4 = arith.maximumf %1, %3 : vector<104x32xf32>
    %c2 = arith.constant 2 : index
    %c0_4 = arith.constant 0 : index
    %c0_5 = arith.constant 0 : index
    %5 = vector.load %arg1[%c2, %c0_4, %c0_5] : memref<9x104x32xf32, #tpu.memory_space<vmem>>, vector<1x104x32xf32>
    %6 = vector.shape_cast %5 : vector<1x104x32xf32> to vector<104x32xf32>
    %7 = arith.maximumf %4, %6 : vector<104x32xf32>
    %c3 = arith.constant 3 : index
    %c0_6 = arith.constant 0 : index
    %c0_7 = arith.constant 0 : index
    %8 = vector.load %arg1[%c3, %c0_6, %c0_7] : memref<9x104x32xf32, #tpu.memory_space<vmem>>, vector<1x104x32xf32>
    %9 = vector.shape_cast %8 : vector<1x104x32xf32> to vector<104x32xf32>
    %10 = arith.maximumf %7, %9 : vector<104x32xf32>
    %c4 = arith.constant 4 : index
    %c0_8 = arith.constant 0 : index
    %c0_9 = arith.constant 0 : index
    %11 = vector.load %arg1[%c4, %c0_8, %c0_9] : memref<9x104x32xf32, #tpu.memory_space<vmem>>, vector<1x104x32xf32>
    %12 = vector.shape_cast %11 : vector<1x104x32xf32> to vector<104x32xf32>
    %13 = arith.maximumf %10, %12 : vector<104x32xf32>
    %c5 = arith.constant 5 : index
    %c0_10 = arith.constant 0 : index
    %c0_11 = arith.constant 0 : index
    %14 = vector.load %arg1[%c5, %c0_10, %c0_11] : memref<9x104x32xf32, #tpu.memory_space<vmem>>, vector<1x104x32xf32>
    %15 = vector.shape_cast %14 : vector<1x104x32xf32> to vector<104x32xf32>
    %16 = arith.maximumf %13, %15 : vector<104x32xf32>
    %c6 = arith.constant 6 : index
    %c0_12 = arith.constant 0 : index
    %c0_13 = arith.constant 0 : index
    %17 = vector.load %arg1[%c6, %c0_12, %c0_13] : memref<9x104x32xf32, #tpu.memory_space<vmem>>, vector<1x104x32xf32>
    %18 = vector.shape_cast %17 : vector<1x104x32xf32> to vector<104x32xf32>
    %19 = arith.maximumf %16, %18 : vector<104x32xf32>
    %c7 = arith.constant 7 : index
    %c0_14 = arith.constant 0 : index
    %c0_15 = arith.constant 0 : index
    %20 = vector.load %arg1[%c7, %c0_14, %c0_15] : memref<9x104x32xf32, #tpu.memory_space<vmem>>, vector<1x104x32xf32>
    %21 = vector.shape_cast %20 : vector<1x104x32xf32> to vector<104x32xf32>
    %22 = arith.maximumf %19, %21 : vector<104x32xf32>
    %c8 = arith.constant 8 : index
    %c0_16 = arith.constant 0 : index
    %c0_17 = arith.constant 0 : index
    %23 = vector.load %arg1[%c8, %c0_16, %c0_17] : memref<9x104x32xf32, #tpu.memory_space<vmem>>, vector<1x104x32xf32>
    %24 = vector.shape_cast %23 : vector<1x104x32xf32> to vector<104x32xf32>
    %25 = arith.maximumf %22, %24 : vector<104x32xf32>
    %c0_18 = arith.constant 0 : index
    %c0_19 = arith.constant 0 : index
    %26 = vector.load %arg2[%c0_18, %c0_19] : memref<104x32xf32, #tpu.memory_space<vmem>>, vector<104x32xf32>
    tpu.vector_store %arg2[%c0_18, %c0_19], %25 {strides = array<i32>} : memref<104x32xf32, #tpu.memory_space<vmem>>, vector<104x32xf32>,
    return
  }
  func.func @transform_0(%arg0: i32) -> (i32, i32, i32) {
    %c0_i32 = arith.constant 0 : i32
    %c0_i32_0 = arith.constant 0 : i32
    %c0_i32_1 = arith.constant 0 : i32
    return %c0_i32, %arg0, %c0_i32_0 : i32, i32, i32
  }
  func.func @transform_1(%arg0: i32) -> (i32, i32) {
    %c0_i32 = arith.constant 0 : i32
    %c0_i32_0 = arith.constant 0 : i32
    return %arg0, %c0_i32 : i32, i32
  }
}

module attributes {stable_mosaic.version = 11 : i64} {
  func.func @_mm_bias_act_kernel(%arg0: i32, %arg1: i32, %arg2: memref<104x288xbf16, #tpu.memory_space<vmem>>, %arg3: memref<288x384xbf16, #tpu.memory_space<vmem>>, %arg4: memref<1x384xf32, #tpu.memory_space<vmem>>, %arg5: memref<104x384xf32, #tpu.memory_space<vmem>>, %arg6: memref<104x384xf32, #tpu.memory_space<vmem>>) attributes {dimension_semantics = [#tpu.dimension_semantics<parallel>, #tpu.dimension_semantics<arbitrary>], iteration_bounds = array<i64: 1, 1>, scalar_prefetch = 0 : i64, scratch_operands = 1 : i64, tpu.core_type = #tpu.core_type<tc>, window_params = [{transform_indices = @transform_0, window_bounds = array<i64: 104, 288>}, {transform_indices = @transform_1, window_bounds = array<i64: 288, 384>}, {pipeline_mode = #tpu.pipeline_mode<synchronous>, transform_indices = @transform_2, window_bounds = array<i64: 1, 384>}, {transform_indices = @transform_3, window_bounds = array<i64: 104, 384>}]} {
    %c0_i32 = arith.constant 0 : i32
    %0 = arith.cmpi eq, %arg1, %c0_i32 : i32
    %1 = arith.extui %0 : i1 to i32
    %c0_i32_0 = arith.constant 0 : i32
    %2 = arith.cmpi ne, %1, %c0_i32_0 : i32
    scf.if %2 {
      %cst_10 = arith.constant 0.000000e+00 : f32
      %12 = vector.broadcast %cst_10 : f32 to vector<104x384xf32>
      %c0_11 = arith.constant 0 : index
      %c0_12 = arith.constant 0 : index
      %13 = vector.load %arg6[%c0_11, %c0_12] : memref<104x384xf32, #tpu.memory_space<vmem>>, vector<104x384xf32>
      tpu.vector_store %arg6[%c0_11, %c0_12], %12 {strides = array<i32>} : memref<104x384xf32, #tpu.memory_space<vmem>>, vector<104x384xf32>,
    } else {
    }
    %c0 = arith.constant 0 : index
    %c0_1 = arith.constant 0 : index
    %3 = vector.load %arg6[%c0, %c0_1] : memref<104x384xf32, #tpu.memory_space<vmem>>, vector<104x384xf32>
    %c0_2 = arith.constant 0 : index
    %c0_3 = arith.constant 0 : index
    %4 = vector.load %arg2[%c0_2, %c0_3] : memref<104x288xbf16, #tpu.memory_space<vmem>>, vector<104x288xbf16>
    %c0_4 = arith.constant 0 : index
    %c0_5 = arith.constant 0 : index
    %5 = vector.load %arg3[%c0_4, %c0_5] : memref<288x384xbf16, #tpu.memory_space<vmem>>, vector<288x384xbf16>
    %cst = arith.constant dense<0.000000e+00> : vector<104x384xf32>
    %6 = tpu.matmul %4, %5, %cst {dimension_numbers = #tpu.dot_dimension_numbers<[1], [0], [0], [1], [0, 0, 1, 1], [], []>} : vector<104x288xbf16>, vector<288x384xbf16>, vector<104x384xf32> -> vector<104x384xf32>
    %7 = arith.addf %3, %6 : vector<104x384xf32>
    %c0_6 = arith.constant 0 : index
    %c0_7 = arith.constant 0 : index
    %8 = vector.load %arg6[%c0_6, %c0_7] : memref<104x384xf32, #tpu.memory_space<vmem>>, vector<104x384xf32>
    tpu.vector_store %arg6[%c0_6, %c0_7], %7 {strides = array<i32>} : memref<104x384xf32, #tpu.memory_space<vmem>>, vector<104x384xf32>,
    %c0_i32_8 = arith.constant 0 : i32
    %9 = arith.cmpi eq, %arg1, %c0_i32_8 : i32
    %10 = arith.extui %9 : i1 to i32
    %c0_i32_9 = arith.constant 0 : i32
    %11 = arith.cmpi ne, %10, %c0_i32_9 : i32
    scf.if %11 {
      %c0_10 = arith.constant 0 : index
      %c0_11 = arith.constant 0 : index
      %12 = vector.load %arg6[%c0_10, %c0_11] : memref<104x384xf32, #tpu.memory_space<vmem>>, vector<104x384xf32>
      %c0_12 = arith.constant 0 : index
      %c0_13 = arith.constant 0 : index
      %13 = vector.load %arg4[%c0_12, %c0_13] : memref<1x384xf32, #tpu.memory_space<vmem>>, vector<1x384xf32>
      %14 = vector.broadcast %13 : vector<1x384xf32> to vector<104x384xf32>
      %15 = arith.addf %12, %14 : vector<104x384xf32>
      %cst_14 = arith.constant 0.000000e+00 : f32
      %16 = vector.broadcast %cst_14 : f32 to vector<104x384xf32>
      %17 = arith.maximumf %15, %16 : vector<104x384xf32>
      %c0_15 = arith.constant 0 : index
      %c0_16 = arith.constant 0 : index
      %18 = vector.load %arg5[%c0_15, %c0_16] : memref<104x384xf32, #tpu.memory_space<vmem>>, vector<104x384xf32>
      tpu.vector_store %arg5[%c0_15, %c0_16], %17 {strides = array<i32>} : memref<104x384xf32, #tpu.memory_space<vmem>>, vector<104x384xf32>,
    } else {
    }
    return
  }
  func.func @transform_0(%arg0: i32, %arg1: i32) -> (i32, i32) {
    %c0_i32 = arith.constant 0 : i32
    return %arg0, %arg1 : i32, i32
  }
  func.func @transform_1(%arg0: i32, %arg1: i32) -> (i32, i32) {
    %c0_i32 = arith.constant 0 : i32
    %c0_i32_0 = arith.constant 0 : i32
    return %arg1, %c0_i32 : i32, i32
  }
  func.func @transform_2(%arg0: i32, %arg1: i32) -> (i32, i32) {
    %c0_i32 = arith.constant 0 : i32
    %c0_i32_0 = arith.constant 0 : i32
    %c0_i32_1 = arith.constant 0 : i32
    return %c0_i32, %c0_i32_0 : i32, i32
  }
  func.func @transform_3(%arg0: i32, %arg1: i32) -> (i32, i32) {
    %c0_i32 = arith.constant 0 : i32
    %c0_i32_0 = arith.constant 0 : i32
    return %arg0, %c0_i32 : i32, i32
  }
}

</mosaic_0001>

<llo_original>
// kernel: _lambda_.6
$region0: #{_lambda_.6}
  #allocation0 [shape = 'u32[]', space=smem, size = 0x4, offset = 0x4, fixed_abs, tag = 'smem constant byte address 0x4 - core index']
  #allocation1 [shape = 'u32[72,128]{1,0:T(1,128)}', space=vmem, size = 0x9000, scoped, tag = 'internal scratch']
  #allocation2 [shape = 'f32[128,64]{1,0:T(8,128)}', space=vmem, size = 0x10000, scoped, tag = 'scratch operand']
  %s0 = inlined_call_operand.vmem [shape: bf16[512,32], index: 0, kind: input, shape index: {}]
  %s1 = inlined_call_operand.hbm [shape: bf16[32,64], index: 1, kind: input, shape index: {}]
  %s2 = inlined_call_operand.vmem [shape: f32[1,64], index: 2, kind: input, shape index: {}]
  %s3 = inlined_call_operand.vmem [shape: f32[512,64], index: 3, kind: output, shape index: {}]
  %s4 = sld [smem:[#allocation0]]
  $region57: #{_lambda_.6} parent=0
    _
  %s6 = ssub.s32 1, %s4
  %s7 = scalar_select 0, %s6, %s4
  $region1: #{_lambda_.6} parent=0
    #allocation3 [shape = 'u8[8192]{0}', space=vmem, size = 0x2000, scoped, tag = 'input window, operand 1, single buffered']
    #allocation4 [shape = 's32[2]{0}', space=sflag, size = 0x8, scoped, tag = 'scoped memory for _lambda_.6']
    %8 = vsyncpa [#allocation4], 0
    loop: start=0, step=1, limit=6
    $region2: #{_lambda_.6} parent=1 // loop_pre_header
      _
    $region3: #{_lambda_.6} parent=1 // loop_header
      %s10 = sphi 0, %s14
      %p11 = scmp.ge.s32.totalorder %s10, 6
      %s17 = sphi 0, %s29
      %s18 = sphi 0, %s25
      %s19 = sphi 0, %s17
      %s20 = sphi 0, %s18
      %s21 = sphi 0, %s19
      %s22 = sphi 0, %s20
      %s34 = sphi 0, %s36
      %s37 = sphi 0, %s34
      %s38 = sphi 0, %s37
      %s54 = sphi 0, %s38
      %s60 = sphi 0, %s62
      %s63 = sphi 0, %s60
      %s64 = sphi 0, %s63
      %s80 = sphi 0, %s64
      %s84 = sphi 0, %s84
      %s86 = sphi 0, %s84
      %s87 = sphi 0, %s86
      %s101 = sphi 0, %s87
      %s107 = sphi 0, %s109
      %s110 = sphi 0, %s107
      %s111 = sphi 0, %s110
      %s127 = sphi 0, %s111
    $region4: #{_lambda_.6} parent=1 // loop_header_branch
      %13 = sbr.rel (%p11) target = $region8
    $region5: #{_lambda_.6} parent=1 // loop_body
      %s15 = ssub.s32 %s10, 1
      %s16 = ssub.s32 %s10, 2
      %s23 = sadd.s32 1, %s18
      %p24 = scmp.ge.s32.totalorder %s23, 1
      %s25 = scalar_select %p24, 0, %s23
      %s26 = sadd.s32 1, %s17
      %s27 = scalar_select %p24, %s26, %s17
      %p28 = scmp.ge.s32.totalorder %s27, 4
      %s29 = scalar_select %p28, 0, %s27
      %s30 = ssub.s32 %s17, %s29
      %s31 = ssub.s32 %s18, %s25
      %s32 = sor.u32 %s30, %s31
      %p33 = scmp.eq.s32.totalorder %s32, 0
      %s35 = sadd.s32 %s34, 1
      %s36 = scalar_select %p33, %s34, %s35
      %p39 = pneg %p33
      %p40 = scmp.eq.s32.totalorder %s10, 3
      %p41 = por %p39, %p40
      %p42 = scmp.ne.s32.totalorder %s34, %s37
      %p43 = scmp.eq.s32.totalorder %s10, 0
      %p44 = por %p42, %p43
      %p45 = scmp.ne.s32.totalorder %s34, %s37
      %p46 = scmp.eq.s32.totalorder %s15, 3
      %p47 = por %p45, %p46
      %p48 = scmp.ne.s32.totalorder %s37, %s38
      %p49 = scmp.eq.s32.totalorder %s15, 0
      %p50 = por %p48, %p49
      %p51 = scmp.ne.s32.totalorder %s37, %s38
      %p52 = scmp.eq.s32.totalorder %s16, 3
      %p53 = por %p51, %p52
      %p55 = scmp.ne.s32.totalorder %s38, %s54
      %p56 = scmp.eq.s32.totalorder %s16, 0
      %p57 = por %p55, %p56
      %s58 = ssub.s32 %s18, %s25
      %p59 = scmp.eq.s32.totalorder %s58, 0
      %s61 = sadd.s32 %s60, 1
      %s62 = scalar_select %p59, %s60, %s61
      %p65 = pneg %p59
      %p66 = scmp.eq.s32.totalorder %s10, 3
      %p67 = por %p65, %p66
      %p68 = scmp.ne.s32.totalorder %s60, %s63
      %p69 = scmp.eq.s32.totalorder %s10, 0
      %p70 = por %p68, %p69
      %p71 = scmp.ne.s32.totalorder %s60, %s63
      %p72 = scmp.eq.s32.totalorder %s15, 3
      %p73 = por %p71, %p72
      %p74 = scmp.ne.s32.totalorder %s63, %s64
      %p75 = scmp.eq.s32.totalorder %s15, 0
      %p76 = por %p74, %p75
      %p77 = scmp.ne.s32.totalorder %s63, %s64
      %p78 = scmp.eq.s32.totalorder %s16, 3
      %p79 = por %p77, %p78
      %p81 = scmp.ne.s32.totalorder %s64, %s80
      %p82 = scmp.eq.s32.totalorder %s16, 0
      %p83 = por %p81, %p82
      %s85 = sadd.s32 %s84, 1
      %p88 = scmp.eq.s32.totalorder %s10, 3
      %p89 = scmp.ne.s32.totalorder %s84, %s86
      %p90 = scmp.eq.s32.totalorder %s10, 0
      %p91 = por %p89, %p90
      %p92 = scmp.ne.s32.totalorder %s84, %s86
      %p93 = scmp.eq.s32.totalorder %s15, 3
      %p94 = por %p92, %p93
      %p95 = scmp.ne.s32.totalorder %s86, %s87
      %p96 = scmp.eq.s32.totalorder %s15, 0
      %p97 = por %p95, %p96
      %p98 = scmp.ne.s32.totalorder %s86, %s87
      %p99 = scmp.eq.s32.totalorder %s16, 3
      %p100 = por %p98, %p99
      %p102 = scmp.ne.s32.totalorder %s87, %s101
      %p103 = scmp.eq.s32.totalorder %s16, 0
      %p104 = por %p102, %p103
      %s105 = ssub.s32 %s17, %s29
      %p106 = scmp.eq.s32.totalorder %s105, 0
      %s108 = sadd.s32 %s107, 1
      %s109 = scalar_select %p106, %s107, %s108
      %p112 = pneg %p106
      %p113 = scmp.eq.s32.totalorder %s10, 3
      %p114 = por %p112, %p113
      %p115 = scmp.ne.s32.totalorder %s107, %s110
      %p116 = scmp.eq.s32.totalorder %s10, 0
      %p117 = por %p115, %p116
      %p118 = scmp.ne.s32.totalorder %s107, %s110
      %p119 = scmp.eq.s32.totalorder %s15, 3
      %p120 = por %p118, %p119
      %p121 = scmp.ne.s32.totalorder %s110, %s111
      %p122 = scmp.eq.s32.totalorder %s15, 0
      %p123 = por %p121, %p122
      %p124 = scmp.ne.s32.totalorder %s110, %s111
      %p125 = scmp.eq.s32.totalorder %s16, 3
      %p126 = por %p124, %p125
      %p128 = scmp.ne.s32.totalorder %s111, %s127
      %p129 = scmp.eq.s32.totalorder %s16, 0
      %p130 = por %p128, %p129
      %p131 = scmp.le.s32.totalorder 1, %s10
      %p132 = scmp.lt.s32.totalorder %s10, 5
      %p133 = pnand %p131, %p132
      %p134 = pneg %p133
      // Predicated region
      $region9: #{_lambda_.6} parent=5 // pred_check
        _
      $region10: #{_lambda_.6} parent=5 // pred_check_branch
        %136 = sbr.rel (%p133) target = $region12
      $region11: #{_lambda_.6} parent=5 // pred_region
        %s137 = ssub.s32 %s10, 1
        // Predicated region
        $region13: #{_lambda_.6} parent=11 // pred_check
          %p138 = pneg %p76
        $region14: #{_lambda_.6} parent=11 // pred_check_branch
          %140 = sbr.rel (%p138) target = $region16
        $region15: #{_lambda_.6} parent=11 // pred_region
          %s141 = smul.u32 4, %s20
          %143 = vsyncadd [#allocation4], 0
          %s144 = smul.addr %s141, 4
          %s145 = scalar_lea.hbm %s1, %s144
          %s146 = sshll.u32 %s145, 4
          %s147 = int_to_ptr.hbm [resolvable:$true] %s146
          %s148 = sshll.u32 [#allocation3], 4
          %s149 = int_to_ptr.vmem [resolvable:$true] %s148
          %154 = dma.hbm_to_vmem [thread:$0]  %s147, 256, %s149, [#allocation4], 64, 64, 4
        $region16: #{_lambda_.6} parent=11 // pred_fallthru
          _
        // Predicated region
        $region17: #{_lambda_.6} parent=11 // pred_check
          %p155 = pneg %p97
        $region18: #{_lambda_.6} parent=11 // pred_check_branch
          %157 = sbr.rel (%p155) target = $region20
        $region19: #{_lambda_.6} parent=11 // pred_region
          _
        $region20: #{_lambda_.6} parent=11 // pred_fallthru
          _
      $region12: #{_lambda_.6} parent=5 // pred_fallthru
        _
      %p158 = scmp.lt.s32.totalorder %s10, 4
      // Predicated region
      $region21: #{_lambda_.6} parent=5 // pred_check
        %p159 = pneg %p158
      $region22: #{_lambda_.6} parent=5 // pred_check_branch
        %161 = sbr.rel (%p159) target = $region24
      $region23: #{_lambda_.6} parent=5 // pred_region
        // Predicated region
        $region25: #{_lambda_.6} parent=23 // pred_check
          %p162 = pneg %p44
        $region26: #{_lambda_.6} parent=23 // pred_check_branch
          %164 = sbr.rel (%p162) target = $region28
        $region27: #{_lambda_.6} parent=23 // pred_region
          %s165 = smul.u32 16, %s17
          %p166 = scmp.lt.s32.totalorder %s165, 63
          %s167 = scalar_select %p166, %s165, 63
          %p168 = scmp.lt.s32.totalorder %s18, 0
          %s169 = scalar_select %p168, %s18, 0
          %s170 = sadd.s32 %s169, %s167
          %s171 = smul.addr %s170, 4
          %s172 = scalar_lea.vmem %s0, %s171
          %s173 = smul.u32 16, %s17
        $region28: #{_lambda_.6} parent=23 // pred_fallthru
          _
      $region24: #{_lambda_.6} parent=5 // pred_fallthru
        _
      %p174 = scmp.le.s32.totalorder 1, %s10
      %p175 = scmp.lt.s32.totalorder %s10, 5
      %p176 = pnand %p174, %p175
      %p177 = pneg %p176
      // Predicated region
      $region29: #{_lambda_.6} parent=5 // pred_check
        _
      $region30: #{_lambda_.6} parent=5 // pred_check_branch
        %179 = sbr.rel (%p176) target = $region32
      $region31: #{_lambda_.6} parent=5 // pred_region
        %s180 = ssub.s32 %s10, 1
        // Predicated region
        $region33: #{_lambda_.6} parent=31 // pred_check
          %p181 = pneg %p76
        $region34: #{_lambda_.6} parent=31 // pred_check_branch
          %183 = sbr.rel (%p181) target = $region36
        $region35: #{_lambda_.6} parent=31 // pred_region
          %185 = dma.done [#allocation4], 256
        $region36: #{_lambda_.6} parent=31 // pred_fallthru
          _
        %s186 = smul.u32 16, %s19
        %p187 = scmp.lt.s32.totalorder %s186, 63
        %s188 = scalar_select %p187, %s186, 63
        %p189 = scmp.lt.s32.totalorder %s20, 0
        %s190 = scalar_select %p189, %s20, 0
        %s191 = sadd.s32 %s190, %s188
        %s192 = smul.addr %s191, 4
        %s193 = scalar_lea.vmem %s0, %s192
        %p194 = pneg %p50
        %p195 = pneg %p47
        %p196 = pneg %p76
        %p197 = pneg %p73
        %p198 = pneg %p97
        %p199 = pneg %p94
        %p200 = pneg %p123
        %p201 = pneg %p120
        %s202 = smul.u32 16, %s19
        %p203 = scmp.lt.s32.totalorder %s202, 63
        %s204 = scalar_select %p203, %s202, 63
        %s205 = smul.addr %s204, 8
        %s206 = scalar_lea.vmem %s3, %s205
        %s207 = smul.u32 16, %s19
        %p208 = scmp.lt.s32.totalorder %s207, 63
        %s209 = scalar_select %p208, %s207, 63
        %p210 = scmp.lt.s32.totalorder %s20, 0
        %s211 = scalar_select %p210, %s20, 0
        %s212 = sadd.s32 %s211, %s209
        %s213 = smul.addr %s212, 4
        %s214 = scalar_lea.vmem %s0, %s213
        %s215 = smul.u32 16, %s19
        %s216 = smul.u32 4, %s20
        %s217 = smul.u32 16, %s19
        %p218 = scmp.lt.s32.totalorder %s217, 63
        %s219 = scalar_select %p218, %s217, 63
        %s220 = smul.addr %s219, 8
        %s221 = scalar_lea.vmem %s3, %s220
        %s222 = smul.u32 16, %s19
        %p224 = scmp.eq.s32.totalorder %s20, 0
        // Predicated region
        $region37: #{_lambda_.6} parent=31 // pred_check
          %p225 = pneg %p224
        $region38: #{_lambda_.6} parent=31 // pred_check_branch
          %227 = sbr.rel (%p225) target = $region40
        $region39: #{_lambda_.6} parent=31 // pred_region
          %vm228 = vcmask 523264
          %229 = vst.msk [vmem:[#allocation2] sm:$0xff] %vm228, 0.0
          %230 = vst.msk [vmem:[#allocation2 + $0x8] sm:$0xff] %vm228, 0.0
          %231 = vst.msk [vmem:[#allocation2 + $0x10] sm:$0xff] %vm228, 0.0
          %232 = vst.msk [vmem:[#allocation2 + $0x18] sm:$0xff] %vm228, 0.0
          %233 = vst.msk [vmem:[#allocation2 + $0x20] sm:$0xff] %vm228, 0.0
          %234 = vst.msk [vmem:[#allocation2 + $0x28] sm:$0xff] %vm228, 0.0
          %235 = vst.msk [vmem:[#allocation2 + $0x30] sm:$0xff] %vm228, 0.0
          %236 = vst.msk [vmem:[#allocation2 + $0x38] sm:$0xff] %vm228, 0.0
          %237 = vst.msk [vmem:[#allocation2 + $0x40] sm:$0xff] %vm228, 0.0
          %238 = vst.msk [vmem:[#allocation2 + $0x48] sm:$0xff] %vm228, 0.0
          %239 = vst.msk [vmem:[#allocation2 + $0x50] sm:$0xff] %vm228, 0.0
          %240 = vst.msk [vmem:[#allocation2 + $0x58] sm:$0xff] %vm228, 0.0
          %241 = vst.msk [vmem:[#allocation2 + $0x60] sm:$0xff] %vm228, 0.0
          %242 = vst.msk [vmem:[#allocation2 + $0x68] sm:$0xff] %vm228, 0.0
          %243 = vst.msk [vmem:[#allocation2 + $0x70] sm:$0xff] %vm228, 0.0
          %244 = vst.msk [vmem:[#allocation2 + $0x78] sm:$0xff] %vm228, 0.0
        $region40: #{_lambda_.6} parent=31 // pred_fallthru
          _
        %v245 = vld [vmem:[#allocation2] sm:$0xff]
        %v246 = vld [vmem:[#allocation2 + $0x8] sm:$0xff]
        %v247 = vld [vmem:[#allocation2 + $0x10] sm:$0xff]
        %v248 = vld [vmem:[#allocation2 + $0x18] sm:$0xff]
        %v249 = vld [vmem:[#allocation2 + $0x20] sm:$0xff]
        %v250 = vld [vmem:[#allocation2 + $0x28] sm:$0xff]
        %v251 = vld [vmem:[#allocation2 + $0x30] sm:$0xff]
        %v252 = vld [vmem:[#allocation2 + $0x38] sm:$0xff]
        %v253 = vld [vmem:[#allocation2 + $0x40] sm:$0xff]
        %v254 = vld [vmem:[#allocation2 + $0x48] sm:$0xff]
        %v255 = vld [vmem:[#allocation2 + $0x50] sm:$0xff]
        %v256 = vld [vmem:[#allocation2 + $0x58] sm:$0xff]
        %v257 = vld [vmem:[#allocation2 + $0x60] sm:$0xff]
        %v258 = vld [vmem:[#allocation2 + $0x68] sm:$0xff]
        %v259 = vld [vmem:[#allocation2 + $0x70] sm:$0xff]
        %v260 = vld [vmem:[#allocation2 + $0x78] sm:$0xff]
        %v261 = vld [vmem:[%s214] sm:$0xf]
        %v262 = vld [vmem:[%s214 + $0x4] sm:$0xf]
        %v263 = vld [vmem:[%s214 + $0x8] sm:$0xf]
        %v264 = vld [vmem:[%s214 + $0xc] sm:$0xf]
        %v265 = vld [vmem:[%s214 + $0x10] sm:$0xf]
        %v266 = vld [vmem:[%s214 + $0x14] sm:$0xf]
        %v267 = vld [vmem:[%s214 + $0x18] sm:$0xf]
        %v268 = vld [vmem:[%s214 + $0x1c] sm:$0xf]
        %v269 = vld [vmem:[%s214 + $0x20] sm:$0xf]
        %v270 = vld [vmem:[%s214 + $0x24] sm:$0xf]
        %v271 = vld [vmem:[%s214 + $0x28] sm:$0xf]
        %v272 = vld [vmem:[%s214 + $0x2c] sm:$0xf]
        %v273 = vld [vmem:[%s214 + $0x30] sm:$0xf]
        %v274 = vld [vmem:[%s214 + $0x34] sm:$0xf]
        %v275 = vld [vmem:[%s214 + $0x38] sm:$0xf]
        %v276 = vld [vmem:[%s214 + $0x3c] sm:$0xf]
        %v277 = vld [vmem:[#allocation3] sm:$0xf]
        %v278 = vld [vmem:[#allocation3 + $0x4] sm:$0xf]
        %v279 = vld [vmem:[#allocation3 + $0x8] sm:$0xf]
        %v280 = vld [vmem:[#allocation3 + $0xc] sm:$0xf]
        %v297 = vunpack.c.l.b16 %v261
        %v298 = vunpack.c.l.b16 %v262
        %v299 = vunpack.c.l.b16 %v263
        %v300 = vunpack.c.l.b16 %v264
        %v301 = vunpack.c.l.b16 %v265
        %v302 = vunpack.c.l.b16 %v266
        %v303 = vunpack.c.l.b16 %v267
        %v304 = vunpack.c.l.b16 %v268
        %v305 = vunpack.c.l.b16 %v269
        %v306 = vunpack.c.l.b16 %v270
        %v307 = vunpack.c.l.b16 %v271
        %v308 = vunpack.c.l.b16 %v272
        %v309 = vunpack.c.l.b16 %v273
        %v310 = vunpack.c.l.b16 %v274
        %v311 = vunpack.c.l.b16 %v275
        %v312 = vunpack.c.l.b16 %v276
        %v313 = vpack.c.b16 %v298, %v297
        %v314 = vpack.c.b16 %v300, %v299
        %v315 = vpack.c.b16 %v302, %v301
        %v316 = vpack.c.b16 %v304, %v303
        %v317 = vpack.c.b16 %v306, %v305
        %v318 = vpack.c.b16 %v308, %v307
        %v319 = vpack.c.b16 %v310, %v309
        %v320 = vpack.c.b16 %v312, %v311
        %v325 = vunpack.c.l.b16 %v277
        %v326 = vunpack.c.l.b16 %v278
        %v327 = vunpack.c.l.b16 %v279
        %v328 = vunpack.c.l.b16 %v280
        %v329 = vpack.c.b16 %v326, %v325
        %v330 = vpack.c.b16 %v328, %v327
        %vm333 = vcmask 261120
        %v335 = vsel %vm333, %v313, 0
        %v338 = vsel %vm333, %v314, 0
        %v341 = vsel %vm333, %v315, 0
        %v344 = vsel %vm333, %v316, 0
        %v347 = vsel %vm333, %v317, 0
        %v350 = vsel %vm333, %v318, 0
        %v353 = vsel %vm333, %v319, 0
        %v356 = vsel %vm333, %v320, 0
        %358 = vmatpush.bf16.msra.mxu0 0
        %359 = vmatpush.bf16.msra.mxu0 0
        %360 = vmatpush.bf16.msra.mxu0 0
        %361 = vmatpush.bf16.msra.mxu0 0
        %362 = vmatpush.bf16.msra.mxu0 0
        %363 = vmatpush.bf16.msra.mxu0 0
        %364 = vmatpush.bf16.msra.mxu0 %v330
        %365 = vmatpush.bf16.msra.mxu0 %v329
        %366 = vmatmul.bf16.gmra.mxu0 %v335
        %v367 = vpop.f32.mrf.mxu0
        %v368 = vadd.f32 0.0, %v367
        %v369 = vpop.f32.mrf.mxu0
        %v370 = vadd.f32 0.0, %v369
        %371 = vmatmul.bf16.gmra.mxu0 %v338
        %v372 = vpop.f32.mrf.mxu0
        %v373 = vadd.f32 0.0, %v372
        %v374 = vpop.f32.mrf.mxu0
        %v375 = vadd.f32 0.0, %v374
        %376 = vmatmul.bf16.gmra.mxu0 %v341
        %v377 = vpop.f32.mrf.mxu0
        %v378 = vadd.f32 0.0, %v377
        %v379 = vpop.f32.mrf.mxu0
        %v380 = vadd.f32 0.0, %v379
        %381 = vmatmul.bf16.gmra.mxu0 %v344
        %v382 = vpop.f32.mrf.mxu0
        %v383 = vadd.f32 0.0, %v382
        %v384 = vpop.f32.mrf.mxu0
        %v385 = vadd.f32 0.0, %v384
        %386 = vmatmul.bf16.gmra.mxu0 %v347
        %v387 = vpop.f32.mrf.mxu0
        %v388 = vadd.f32 0.0, %v387
        %v389 = vpop.f32.mrf.mxu0
        %v390 = vadd.f32 0.0, %v389
        %391 = vmatmul.bf16.gmra.mxu0 %v350
        %v392 = vpop.f32.mrf.mxu0
        %v393 = vadd.f32 0.0, %v392
        %v394 = vpop.f32.mrf.mxu0
        %v395 = vadd.f32 0.0, %v394
        %396 = vmatmul.bf16.gmra.mxu0 %v353
        %v397 = vpop.f32.mrf.mxu0
        %v398 = vadd.f32 0.0, %v397
        %v399 = vpop.f32.mrf.mxu0
        %v400 = vadd.f32 0.0, %v399
        %401 = vmatmul.bf16.gmra.mxu0 %v356
        %v402 = vpop.f32.mrf.mxu0
        %v403 = vadd.f32 0.0, %v402
        %v404 = vpop.f32.mrf.mxu0
        %v405 = vadd.f32 0.0, %v404
        %406 = vdwg.mxu0
        %v407 = vadd.f32 %v245, %v368
        %v408 = vadd.f32 %v246, %v370
        %v409 = vadd.f32 %v247, %v373
        %v410 = vadd.f32 %v248, %v375
        %v411 = vadd.f32 %v249, %v378
        %v412 = vadd.f32 %v250, %v380
        %v413 = vadd.f32 %v251, %v383
        %v414 = vadd.f32 %v252, %v385
        %v415 = vadd.f32 %v253, %v388
        %v416 = vadd.f32 %v254, %v390
        %v417 = vadd.f32 %v255, %v393
        %v418 = vadd.f32 %v256, %v395
        %v419 = vadd.f32 %v257, %v398
        %v420 = vadd.f32 %v258, %v400
        %v421 = vadd.f32 %v259, %v403
        %v422 = vadd.f32 %v260, %v405
        %vm423 = vcmask 523264
        %424 = vst.msk [vmem:[#allocation2] sm:$0xff] %vm423, %v407
        %425 = vst.msk [vmem:[#allocation2 + $0x8] sm:$0xff] %vm423, %v408
        %426 = vst.msk [vmem:[#allocation2 + $0x10] sm:$0xff] %vm423, %v409
        %427 = vst.msk [vmem:[#allocation2 + $0x18] sm:$0xff] %vm423, %v410
        %428 = vst.msk [vmem:[#allocation2 + $0x20] sm:$0xff] %vm423, %v411
        %429 = vst.msk [vmem:[#allocation2 + $0x28] sm:$0xff] %vm423, %v412
        %430 = vst.msk [vmem:[#allocation2 + $0x30] sm:$0xff] %vm423, %v413
        %431 = vst.msk [vmem:[#allocation2 + $0x38] sm:$0xff] %vm423, %v414
        %432 = vst.msk [vmem:[#allocation2 + $0x40] sm:$0xff] %vm423, %v415
        %433 = vst.msk [vmem:[#allocation2 + $0x48] sm:$0xff] %vm423, %v416
        %434 = vst.msk [vmem:[#allocation2 + $0x50] sm:$0xff] %vm423, %v417
        %435 = vst.msk [vmem:[#allocation2 + $0x58] sm:$0xff] %vm423, %v418
        %436 = vst.msk [vmem:[#allocation2 + $0x60] sm:$0xff] %vm423, %v419
        %437 = vst.msk [vmem:[#allocation2 + $0x68] sm:$0xff] %vm423, %v420
        %438 = vst.msk [vmem:[#allocation2 + $0x70] sm:$0xff] %vm423, %v421
        %439 = vst.msk [vmem:[#allocation2 + $0x78] sm:$0xff] %vm423, %v422
        // Predicated region
        $region41: #{_lambda_.6} parent=31 // pred_check
          %p440 = pneg %p224
        $region42: #{_lambda_.6} parent=31 // pred_check_branch
          %442 = sbr.rel (%p440) target = $region44
        $region43: #{_lambda_.6} parent=31 // pred_region
          %v443 = vld [vmem:[#allocation2] sm:$0xff]
          %v444 = vld [vmem:[#allocation2 + $0x8] sm:$0xff]
          %v445 = vld [vmem:[#allocation2 + $0x10] sm:$0xff]
          %v446 = vld [vmem:[#allocation2 + $0x18] sm:$0xff]
          %v447 = vld [vmem:[#allocation2 + $0x20] sm:$0xff]
          %v448 = vld [vmem:[#allocation2 + $0x28] sm:$0xff]
          %v449 = vld [vmem:[#allocation2 + $0x30] sm:$0xff]
          %v450 = vld [vmem:[#allocation2 + $0x38] sm:$0xff]
          %v451 = vld [vmem:[#allocation2 + $0x40] sm:$0xff]
          %v452 = vld [vmem:[#allocation2 + $0x48] sm:$0xff]
          %v453 = vld [vmem:[#allocation2 + $0x50] sm:$0xff]
          %v454 = vld [vmem:[#allocation2 + $0x58] sm:$0xff]
          %v455 = vld [vmem:[#allocation2 + $0x60] sm:$0xff]
          %v456 = vld [vmem:[#allocation2 + $0x68] sm:$0xff]
          %v457 = vld [vmem:[#allocation2 + $0x70] sm:$0xff]
          %v458 = vld [vmem:[#allocation2 + $0x78] sm:$0xff]
          %v459 = vld [vmem:[%s2] sm:$0x1]
          %v461 = vperm.slane %v459, 0
          %v463 = vadd.f32 %v443, %v461
          %v464 = vadd.f32 %v444, %v461
          %v465 = vadd.f32 %v445, %v461
          %v466 = vadd.f32 %v446, %v461
          %v467 = vadd.f32 %v447, %v461
          %v468 = vadd.f32 %v448, %v461
          %v469 = vadd.f32 %v449, %v461
          %v470 = vadd.f32 %v450, %v461
          %v471 = vadd.f32 %v451, %v461
          %v472 = vadd.f32 %v452, %v461
          %v473 = vadd.f32 %v453, %v461
          %v474 = vadd.f32 %v454, %v461
          %v475 = vadd.f32 %v455, %v461
          %v476 = vadd.f32 %v456, %v461
          %v477 = vadd.f32 %v457, %v461
          %v478 = vadd.f32 %v458, %v461
          %v479 = vmax.f32 %v463, 0.0
          %v480 = vmax.f32 %v464, 0.0
          %v481 = vmax.f32 %v465, 0.0
          %v482 = vmax.f32 %v466, 0.0
          %v483 = vmax.f32 %v467, 0.0
          %v484 = vmax.f32 %v468, 0.0
          %v485 = vmax.f32 %v469, 0.0
          %v486 = vmax.f32 %v470, 0.0
          %v487 = vmax.f32 %v471, 0.0
          %v488 = vmax.f32 %v472, 0.0
          %v489 = vmax.f32 %v473, 0.0
          %v490 = vmax.f32 %v474, 0.0
          %v491 = vmax.f32 %v475, 0.0
          %v492 = vmax.f32 %v476, 0.0
          %v493 = vmax.f32 %v477, 0.0
          %v494 = vmax.f32 %v478, 0.0
          %495 = vst.msk [vmem:[%s221] sm:$0xff] %vm423, %v479
          %496 = vst.msk [vmem:[%s221 + $0x8] sm:$0xff] %vm423, %v480
          %497 = vst.msk [vmem:[%s221 + $0x10] sm:$0xff] %vm423, %v481
          %498 = vst.msk [vmem:[%s221 + $0x18] sm:$0xff] %vm423, %v482
          %499 = vst.msk [vmem:[%s221 + $0x20] sm:$0xff] %vm423, %v483
          %500 = vst.msk [vmem:[%s221 + $0x28] sm:$0xff] %vm423, %v484
          %501 = vst.msk [vmem:[%s221 + $0x30] sm:$0xff] %vm423, %v485
          %502 = vst.msk [vmem:[%s221 + $0x38] sm:$0xff] %vm423, %v486
          %503 = vst.msk [vmem:[%s221 + $0x40] sm:$0xff] %vm423, %v487
          %504 = vst.msk [vmem:[%s221 + $0x48] sm:$0xff] %vm423, %v488
          %505 = vst.msk [vmem:[%s221 + $0x50] sm:$0xff] %vm423, %v489
          %506 = vst.msk [vmem:[%s221 + $0x58] sm:$0xff] %vm423, %v490
          %507 = vst.msk [vmem:[%s221 + $0x60] sm:$0xff] %vm423, %v491
          %508 = vst.msk [vmem:[%s221 + $0x68] sm:$0xff] %vm423, %v492
          %509 = vst.msk [vmem:[%s221 + $0x70] sm:$0xff] %vm423, %v493
          %510 = vst.msk [vmem:[%s221 + $0x78] sm:$0xff] %vm423, %v494
        $region44: #{_lambda_.6} parent=31 // pred_fallthru
          _
        %s511 = smul.u32 16, %s19
        %p512 = scmp.lt.s32.totalorder %s511, 63
        %s513 = scalar_select %p512, %s511, 63
        %s514 = smul.addr %s513, 8
        %s515 = scalar_lea.vmem %s3, %s514
        // Predicated region
        $region45: #{_lambda_.6} parent=31 // pred_check
          %p516 = pneg %p120
        $region46: #{_lambda_.6} parent=31 // pred_check_branch
          %518 = sbr.rel (%p516) target = $region48
        $region47: #{_lambda_.6} parent=31 // pred_region
          %s519 = smul.u32 16, %s19
        $region48: #{_lambda_.6} parent=31 // pred_fallthru
          _
      $region32: #{_lambda_.6} parent=5 // pred_fallthru
        _
      %p520 = scmp.le.s32.totalorder 2, %s10
      // Predicated region
      $region49: #{_lambda_.6} parent=5 // pred_check
        %p521 = pneg %p520
      $region50: #{_lambda_.6} parent=5 // pred_check_branch
        %523 = sbr.rel (%p521) target = $region52
      $region51: #{_lambda_.6} parent=5 // pred_region
        %s524 = ssub.s32 %s10, 2
        // Predicated region
        $region53: #{_lambda_.6} parent=51 // pred_check
          %p525 = pneg %p126
        $region54: #{_lambda_.6} parent=51 // pred_check_branch
          %527 = sbr.rel (%p525) target = $region56
        $region55: #{_lambda_.6} parent=51 // pred_region
          %s528 = smul.u32 16, %s21
          %p529 = scmp.lt.s32.totalorder %s528, 63
          %s530 = scalar_select %p529, %s528, 63
          %s531 = smul.addr %s530, 8
          %s532 = scalar_lea.vmem %s3, %s531
        $region56: #{_lambda_.6} parent=51 // pred_fallthru
          _
      $region52: #{_lambda_.6} parent=5 // pred_fallthru
        _
    $region6: #{_lambda_.6} parent=1 // loop_footer
      %s14 = sadd.s32 1, %s10
    $region7: #{_lambda_.6} parent=1 // loop_footer_branch
      %9 = sbr.rel target = $region3
    $region8: #{_lambda_.6} parent=1 // loop_exit
      _
    %533 = vsyncpa [#allocation4], 1
    %s534 = scalar_lea.sflag [#allocation4], 1
    %535 = vsyncpa %s534, 1

// kernel: _lambda_.7
$region0: #{_lambda_.7}
  #allocation0 [shape = 'u32[]', space=smem, size = 0x4, offset = 0x4, fixed_abs, tag = 'smem constant byte address 0x4 - core index']
  #allocation1 [shape = 'u32[72,128]{1,0:T(1,128)}', space=vmem, size = 0x9000, scoped, tag = 'internal scratch']
  #allocation2 [shape = 'f32[128,96]{1,0:T(8,128)}', space=vmem, size = 0x10000, scoped, tag = 'scratch operand']
  %s0 = inlined_call_operand.vmem [shape: bf16[512,576], index: 0, kind: input, shape index: {}]
  %s1 = inlined_call_operand.vmem [shape: bf16[576,96], index: 1, kind: input, shape index: {}]
  %s2 = inlined_call_operand.vmem [shape: f32[1,96], index: 2, kind: input, shape index: {}]
  %s3 = inlined_call_operand.vmem [shape: f32[512,96], index: 3, kind: output, shape index: {}]
  %s4 = sld [smem:[#allocation0]]
  $region53: #{_lambda_.7} parent=0
    _
  %s6 = ssub.s32 1, %s4
  %s7 = scalar_select 0, %s6, %s4
  loop: start=0, step=1, limit=6
  $region2: #{_lambda_.7} parent=0 // loop_pre_header
    _
  $region3: #{_lambda_.7} parent=0 // loop_header
    %s9 = sphi 0, %s13
    %p10 = scmp.ge.s32.totalorder %s9, 6
    %s16 = sphi 0, %s28
    %s17 = sphi 0, %s24
    %s18 = sphi 0, %s16
    %s19 = sphi 0, %s17
    %s20 = sphi 0, %s18
    %s21 = sphi 0, %s19
    %s33 = sphi 0, %s35
    %s36 = sphi 0, %s33
    %s37 = sphi 0, %s36
    %s53 = sphi 0, %s37
    %s59 = sphi 0, %s61
    %s62 = sphi 0, %s59
    %s63 = sphi 0, %s62
    %s79 = sphi 0, %s63
    %s83 = sphi 0, %s83
    %s85 = sphi 0, %s83
    %s86 = sphi 0, %s85
    %s100 = sphi 0, %s86
    %s106 = sphi 0, %s108
    %s109 = sphi 0, %s106
    %s110 = sphi 0, %s109
    %s126 = sphi 0, %s110
  $region4: #{_lambda_.7} parent=0 // loop_header_branch
    %12 = sbr.rel (%p10) target = $region8
  $region5: #{_lambda_.7} parent=0 // loop_body
    %s14 = ssub.s32 %s9, 1
    %s15 = ssub.s32 %s9, 2
    %s22 = sadd.s32 1, %s17
    %p23 = scmp.ge.s32.totalorder %s22, 1
    %s24 = scalar_select %p23, 0, %s22
    %s25 = sadd.s32 1, %s16
    %s26 = scalar_select %p23, %s25, %s16
    %p27 = scmp.ge.s32.totalorder %s26, 4
    %s28 = scalar_select %p27, 0, %s26
    %s29 = ssub.s32 %s16, %s28
    %s30 = ssub.s32 %s17, %s24
    %s31 = sor.u32 %s29, %s30
    %p32 = scmp.eq.s32.totalorder %s31, 0
    %s34 = sadd.s32 %s33, 1
    %s35 = scalar_select %p32, %s33, %s34
    %p38 = pneg %p32
    %p39 = scmp.eq.s32.totalorder %s9, 3
    %p40 = por %p38, %p39
    %p41 = scmp.ne.s32.totalorder %s33, %s36
    %p42 = scmp.eq.s32.totalorder %s9, 0
    %p43 = por %p41, %p42
    %p44 = scmp.ne.s32.totalorder %s33, %s36
    %p45 = scmp.eq.s32.totalorder %s14, 3
    %p46 = por %p44, %p45
    %p47 = scmp.ne.s32.totalorder %s36, %s37
    %p48 = scmp.eq.s32.totalorder %s14, 0
    %p49 = por %p47, %p48
    %p50 = scmp.ne.s32.totalorder %s36, %s37
    %p51 = scmp.eq.s32.totalorder %s15, 3
    %p52 = por %p50, %p51
    %p54 = scmp.ne.s32.totalorder %s37, %s53
    %p55 = scmp.eq.s32.totalorder %s15, 0
    %p56 = por %p54, %p55
    %s57 = ssub.s32 %s17, %s24
    %p58 = scmp.eq.s32.totalorder %s57, 0
    %s60 = sadd.s32 %s59, 1
    %s61 = scalar_select %p58, %s59, %s60
    %p64 = pneg %p58
    %p65 = scmp.eq.s32.totalorder %s9, 3
    %p66 = por %p64, %p65
    %p67 = scmp.ne.s32.totalorder %s59, %s62
    %p68 = scmp.eq.s32.totalorder %s9, 0
    %p69 = por %p67, %p68
    %p70 = scmp.ne.s32.totalorder %s59, %s62
    %p71 = scmp.eq.s32.totalorder %s14, 3
    %p72 = por %p70, %p71
    %p73 = scmp.ne.s32.totalorder %s62, %s63
    %p74 = scmp.eq.s32.totalorder %s14, 0
    %p75 = por %p73, %p74
    %p76 = scmp.ne.s32.totalorder %s62, %s63
    %p77 = scmp.eq.s32.totalorder %s15, 3
    %p78 = por %p76, %p77
    %p80 = scmp.ne.s32.totalorder %s63, %s79
    %p81 = scmp.eq.s32.totalorder %s15, 0
    %p82 = por %p80, %p81
    %s84 = sadd.s32 %s83, 1
    %p87 = scmp.eq.s32.totalorder %s9, 3
    %p88 = scmp.ne.s32.totalorder %s83, %s85
    %p89 = scmp.eq.s32.totalorder %s9, 0
    %p90 = por %p88, %p89
    %p91 = scmp.ne.s32.totalorder %s83, %s85
    %p92 = scmp.eq.s32.totalorder %s14, 3
    %p93 = por %p91, %p92
    %p94 = scmp.ne.s32.totalorder %s85, %s86
    %p95 = scmp.eq.s32.totalorder %s14, 0
    %p96 = por %p94, %p95
    %p97 = scmp.ne.s32.totalorder %s85, %s86
    %p98 = scmp.eq.s32.totalorder %s15, 3
    %p99 = por %p97, %p98
    %p101 = scmp.ne.s32.totalorder %s86, %s100
    %p102 = scmp.eq.s32.totalorder %s15, 0
    %p103 = por %p101, %p102
    %s104 = ssub.s32 %s16, %s28
    %p105 = scmp.eq.s32.totalorder %s104, 0
    %s107 = sadd.s32 %s106, 1
    %s108 = scalar_select %p105, %s106, %s107
    %p111 = pneg %p105
    %p112 = scmp.eq.s32.totalorder %s9, 3
    %p113 = por %p111, %p112
    %p114 = scmp.ne.s32.totalorder %s106, %s109
    %p115 = scmp.eq.s32.totalorder %s9, 0
    %p116 = por %p114, %p115
    %p117 = scmp.ne.s32.totalorder %s106, %s109
    %p118 = scmp.eq.s32.totalorder %s14, 3
    %p119 = por %p117, %p118
    %p120 = scmp.ne.s32.totalorder %s109, %s110
    %p121 = scmp.eq.s32.totalorder %s14, 0
    %p122 = por %p120, %p121
    %p123 = scmp.ne.s32.totalorder %s109, %s110
    %p124 = scmp.eq.s32.totalorder %s15, 3
    %p125 = por %p123, %p124
    %p127 = scmp.ne.s32.totalorder %s110, %s126
    %p128 = scmp.eq.s32.totalorder %s15, 0
    %p129 = por %p127, %p128
    %p130 = scmp.le.s32.totalorder 1, %s9
    %p131 = scmp.lt.s32.totalorder %s9, 5
    %p132 = pnand %p130, %p131
    %p133 = pneg %p132
    // Predicated region
    $region9: #{_lambda_.7} parent=5 // pred_check
      _
    $region10: #{_lambda_.7} parent=5 // pred_check_branch
      %135 = sbr.rel (%p132) target = $region12
    $region11: #{_lambda_.7} parent=5 // pred_region
      %s136 = ssub.s32 %s9, 1
      // Predicated region
      $region13: #{_lambda_.7} parent=11 // pred_check
        %p137 = pneg %p75
      $region14: #{_lambda_.7} parent=11 // pred_check_branch
        %139 = sbr.rel (%p137) target = $region16
      $region15: #{_lambda_.7} parent=11 // pred_region
        %s140 = smul.u32 72, %s19
        %p141 = scmp.lt.s32.totalorder %s140, 71
        %s142 = scalar_select %p141, %s140, 71
        %s143 = smul.addr %s142, 4
        %s144 = scalar_lea.vmem %s1, %s143
        %s145 = smul.u32 72, %s19
      $region16: #{_lambda_.7} parent=11 // pred_fallthru
        _
      // Predicated region
      $region17: #{_lambda_.7} parent=11 // pred_check
        %p146 = pneg %p96
      $region18: #{_lambda_.7} parent=11 // pred_check_branch
        %148 = sbr.rel (%p146) target = $region20
      $region19: #{_lambda_.7} parent=11 // pred_region
        _
      $region20: #{_lambda_.7} parent=11 // pred_fallthru
        _
    $region12: #{_lambda_.7} parent=5 // pred_fallthru
      _
    %p149 = scmp.lt.s32.totalorder %s9, 4
    // Predicated region
    $region21: #{_lambda_.7} parent=5 // pred_check
      %p150 = pneg %p149
    $region22: #{_lambda_.7} parent=5 // pred_check_branch
      %152 = sbr.rel (%p150) target = $region24
    $region23: #{_lambda_.7} parent=5 // pred_region
      // Predicated region
      $region25: #{_lambda_.7} parent=23 // pred_check
        %p153 = pneg %p43
      $region26: #{_lambda_.7} parent=23 // pred_check_branch
        %155 = sbr.rel (%p153) target = $region28
      $region27: #{_lambda_.7} parent=23 // pred_region
        %s156 = smul.u32 16, %s16
        %s157 = smul.u32 5, %s17
        %p158 = scmp.lt.s32.totalorder %s156, 63
        %s159 = scalar_select %p158, %s156, 63
        %p160 = scmp.lt.s32.totalorder %s157, 4
        %s161 = scalar_select %p160, %s157, 4
        %s162 = smul.addr %s159, 5
        %s163 = sadd.s32 %s161, %s162
        %s164 = smul.addr %s163, 4
        %s165 = scalar_lea.vmem %s0, %s164
        %s166 = smul.u32 16, %s16
        %s167 = smul.u32 5, %s17
      $region28: #{_lambda_.7} parent=23 // pred_fallthru
        _
    $region24: #{_lambda_.7} parent=5 // pred_fallthru
      _
    %p168 = scmp.le.s32.totalorder 1, %s9
    %p169 = scmp.lt.s32.totalorder %s9, 5
    %p170 = pnand %p168, %p169
    %p171 = pneg %p170
    // Predicated region
    $region29: #{_lambda_.7} parent=5 // pred_check
      _
    $region30: #{_lambda_.7} parent=5 // pred_check_branch
      %173 = sbr.rel (%p170) target = $region32
    $region31: #{_lambda_.7} parent=5 // pred_region
      %s174 = ssub.s32 %s9, 1
      %s175 = smul.u32 16, %s18
      %s176 = smul.u32 5, %s19
      %p177 = scmp.lt.s32.totalorder %s175, 63
      %s178 = scalar_select %p177, %s175, 63
      %p179 = scmp.lt.s32.totalorder %s176, 4
      %s180 = scalar_select %p179, %s176, 4
      %s181 = smul.addr %s178, 5
      %s182 = sadd.s32 %s180, %s181
      %s183 = smul.addr %s182, 4
      %s184 = scalar_lea.vmem %s0, %s183
      %p185 = pneg %p49
      %p186 = pneg %p46
      %s187 = smul.u32 72, %s19
      %p188 = scmp.lt.s32.totalorder %s187, 71
      %s189 = scalar_select %p188, %s187, 71
      %s190 = smul.addr %s189, 4
      %s191 = scalar_lea.vmem %s1, %s190
      %p192 = pneg %p75
      %p193 = pneg %p72
      %p194 = pneg %p96
      %p195 = pneg %p93
      %p196 = pneg %p122
      %p197 = pneg %p119
      %s198 = smul.u32 16, %s18
      %p199 = scmp.lt.s32.totalorder %s198, 63
      %s200 = scalar_select %p199, %s198, 63
      %s201 = smul.addr %s200, 8
      %s202 = scalar_lea.vmem %s3, %s201
      %s203 = smul.u32 16, %s18
      %s204 = smul.u32 5, %s19
      %p205 = scmp.lt.s32.totalorder %s203, 63
      %s206 = scalar_select %p205, %s203, 63
      %p207 = scmp.lt.s32.totalorder %s204, 4
      %s208 = scalar_select %p207, %s204, 4
      %s209 = smul.addr %s206, 5
      %s210 = sadd.s32 %s208, %s209
      %s211 = smul.addr %s210, 4
      %s212 = scalar_lea.vmem %s0, %s211
      %s213 = smul.u32 16, %s18
      %s214 = smul.u32 5, %s19
      %s215 = smul.u32 72, %s19
      %p216 = scmp.lt.s32.totalorder %s215, 71
      %s217 = scalar_select %p216, %s215, 71
      %s218 = smul.addr %s217, 4
      %s219 = scalar_lea.vmem %s1, %s218
      %s220 = smul.u32 72, %s19
      %s221 = smul.u32 16, %s18
      %p222 = scmp.lt.s32.totalorder %s221, 63
      %s223 = scalar_select %p222, %s221, 63
      %s224 = smul.addr %s223, 8
      %s225 = scalar_lea.vmem %s3, %s224
      %s226 = smul.u32 16, %s18
      %p228 = scmp.eq.s32.totalorder %s19, 0
      // Predicated region
      $region33: #{_lambda_.7} parent=31 // pred_check
        %p229 = pneg %p228
      $region34: #{_lambda_.7} parent=31 // pred_check_branch
        %231 = sbr.rel (%p229) target = $region36
      $region35: #{_lambda_.7} parent=31 // pred_region
        %vm232 = vcmask 785408
        %233 = vst.msk [vmem:[#allocation2] sm:$0xff] %vm232, 0.0
        %234 = vst.msk [vmem:[#allocation2 + $0x8] sm:$0xff] %vm232, 0.0
        %235 = vst.msk [vmem:[#allocation2 + $0x10] sm:$0xff] %vm232, 0.0
        %236 = vst.msk [vmem:[#allocation2 + $0x18] sm:$0xff] %vm232, 0.0
        %237 = vst.msk [vmem:[#allocation2 + $0x20] sm:$0xff] %vm232, 0.0
        %238 = vst.msk [vmem:[#allocation2 + $0x28] sm:$0xff] %vm232, 0.0
        %239 = vst.msk [vmem:[#allocation2 + $0x30] sm:$0xff] %vm232, 0.0
        %240 = vst.msk [vmem:[#allocation2 + $0x38] sm:$0xff] %vm232, 0.0
        %241 = vst.msk [vmem:[#allocation2 + $0x40] sm:$0xff] %vm232, 0.0
        %242 = vst.msk [vmem:[#allocation2 + $0x48] sm:$0xff] %vm232, 0.0
        %243 = vst.msk [vmem:[#allocation2 + $0x50] sm:$0xff] %vm232, 0.0
        %244 = vst.msk [vmem:[#allocation2 + $0x58] sm:$0xff] %vm232, 0.0
        %245 = vst.msk [vmem:[#allocation2 + $0x60] sm:$0xff] %vm232, 0.0
        %246 = vst.msk [vmem:[#allocation2 + $0x68] sm:$0xff] %vm232, 0.0
        %247 = vst.msk [vmem:[#allocation2 + $0x70] sm:$0xff] %vm232, 0.0
        %248 = vst.msk [vmem:[#allocation2 + $0x78] sm:$0xff] %vm232, 0.0
      $region36: #{_lambda_.7} parent=31 // pred_fallthru
        _
      %v249 = vld [vmem:[#allocation2] sm:$0xff]
      %v250 = vld [vmem:[#allocation2 + $0x8] sm:$0xff]
      %v251 = vld [vmem:[#allocation2 + $0x10] sm:$0xff]
      %v252 = vld [vmem:[#allocation2 + $0x18] sm:$0xff]
      %v253 = vld [vmem:[#allocation2 + $0x20] sm:$0xff]
      %v254 = vld [vmem:[#allocation2 + $0x28] sm:$0xff]
      %v255 = vld [vmem:[#allocation2 + $0x30] sm:$0xff]
      %v256 = vld [vmem:[#allocation2 + $0x38] sm:$0xff]
      %v257 = vld [vmem:[#allocation2 + $0x40] sm:$0xff]
      %v258 = vld [vmem:[#allocation2 + $0x48] sm:$0xff]
      %v259 = vld [vmem:[#allocation2 + $0x50] sm:$0xff]
      %v260 = vld [vmem:[#allocation2 + $0x58] sm:$0xff]
      %v261 = vld [vmem:[#allocation2 + $0x60] sm:$0xff]
      %v262 = vld [vmem:[#allocation2 + $0x68] sm:$0xff]
      %v263 = vld [vmem:[#allocation2 + $0x70] sm:$0xff]
      %v264 = vld [vmem:[#allocation2 + $0x78] sm:$0xff]
      %v265 = vld [vmem:[%s212] sm:$0xff]
      %v266 = vld [vmem:[%s212 + $0x8] sm:$0xff]
      %v267 = vld [vmem:[%s212 + $0x10] sm:$0xf]
      %v268 = vld [vmem:[%s212 + $0x14] sm:$0xff]
      %v269 = vld [vmem:[%s212 + $0x1c] sm:$0xff]
      %v270 = vld [vmem:[%s212 + $0x24] sm:$0xf]
      %v271 = vld [vmem:[%s212 + $0x28] sm:$0xff]
      %v272 = vld [vmem:[%s212 + $0x30] sm:$0xff]
      %v273 = vld [vmem:[%s212 + $0x38] sm:$0xf]
      %v274 = vld [vmem:[%s212 + $0x3c] sm:$0xff]
      %v275 = vld [vmem:[%s212 + $0x44] sm:$0xff]
      %v276 = vld [vmem:[%s212 + $0x4c] sm:$0xf]
      %v277 = vld [vmem:[%s212 + $0x50] sm:$0xff]
      %v278 = vld [vmem:[%s212 + $0x58] sm:$0xff]
      %v279 = vld [vmem:[%s212 + $0x60] sm:$0xf]
      %v280 = vld [vmem:[%s212 + $0x64] sm:$0xff]
      %v281 = vld [vmem:[%s212 + $0x6c] sm:$0xff]
      %v282 = vld [vmem:[%s212 + $0x74] sm:$0xf]
      %v283 = vld [vmem:[%s212 + $0x78] sm:$0xff]
      %v284 = vld [vmem:[%s212 + $0x80] sm:$0xff]
      %v285 = vld [vmem:[%s212 + $0x88] sm:$0xf]
      %v286 = vld [vmem:[%s212 + $0x8c] sm:$0xff]
      %v287 = vld [vmem:[%s212 + $0x94] sm:$0xff]
      %v288 = vld [vmem:[%s212 + $0x9c] sm:$0xf]
      %v289 = vld [vmem:[%s212 + $0xa0] sm:$0xff]
      %v290 = vld [vmem:[%s212 + $0xa8] sm:$0xff]
      %v291 = vld [vmem:[%s212 + $0xb0] sm:$0xf]
      %v292 = vld [vmem:[%s212 + $0xb4] sm:$0xff]
      %v293 = vld [vmem:[%s212 + $0xbc] sm:$0xff]
      %v294 = vld [vmem:[%s212 + $0xc4] sm:$0xf]
      %v295 = vld [vmem:[%s212 + $0xc8] sm:$0xff]
      %v296 = vld [vmem:[%s212 + $0xd0] sm:$0xff]
      %v297 = vld [vmem:[%s212 + $0xd8] sm:$0xf]
      %v298 = vld [vmem:[%s212 + $0xdc] sm:$0xff]
      %v299 = vld [vmem:[%s212 + $0xe4] sm:$0xff]
      %v300 = vld [vmem:[%s212 + $0xec] sm:$0xf]
      %v301 = vld [vmem:[%s212 + $0xf0] sm:$0xff]
      %v302 = vld [vmem:[%s212 + $0xf8] sm:$0xff]
      %v303 = vld [vmem:[%s212 + $0x100] sm:$0xf]
      %v304 = vld [vmem:[%s212 + $0x104] sm:$0xff]
      %v305 = vld [vmem:[%s212 + $0x10c] sm:$0xff]
      %v306 = vld [vmem:[%s212 + $0x114] sm:$0xf]
      %v307 = vld [vmem:[%s212 + $0x118] sm:$0xff]
      %v308 = vld [vmem:[%s212 + $0x120] sm:$0xff]
      %v309 = vld [vmem:[%s212 + $0x128] sm:$0xf]
      %v310 = vld [vmem:[%s212 + $0x12c] sm:$0xff]
      %v311 = vld [vmem:[%s212 + $0x134] sm:$0xff]
      %v312 = vld [vmem:[%s212 + $0x13c] sm:$0xf]
      %v313 = vld [vmem:[%s219] sm:$0xf]
      %v314 = vld [vmem:[%s219 + $0x4] sm:$0xf]
      %v315 = vld [vmem:[%s219 + $0x8] sm:$0xf]
      %v316 = vld [vmem:[%s219 + $0xc] sm:$0xf]
      %v317 = vld [vmem:[%s219 + $0x10] sm:$0xf]
      %v318 = vld [vmem:[%s219 + $0x14] sm:$0xf]
      %v319 = vld [vmem:[%s219 + $0x18] sm:$0xf]
      %v320 = vld [vmem:[%s219 + $0x1c] sm:$0xf]
      %v321 = vld [vmem:[%s219 + $0x20] sm:$0xf]
      %v322 = vld [vmem:[%s219 + $0x24] sm:$0xf]
      %v323 = vld [vmem:[%s219 + $0x28] sm:$0xf]
      %v324 = vld [vmem:[%s219 + $0x2c] sm:$0xf]
      %v325 = vld [vmem:[%s219 + $0x30] sm:$0xf]
      %v326 = vld [vmem:[%s219 + $0x34] sm:$0xf]
      %v327 = vld [vmem:[%s219 + $0x38] sm:$0xf]
      %v328 = vld [vmem:[%s219 + $0x3c] sm:$0xf]
      %v329 = vld [vmem:[%s219 + $0x40] sm:$0xf]
      %v330 = vld [vmem:[%s219 + $0x44] sm:$0xf]
      %v331 = vld [vmem:[%s219 + $0x48] sm:$0xf]
      %v332 = vld [vmem:[%s219 + $0x4c] sm:$0xf]
      %v333 = vld [vmem:[%s219 + $0x50] sm:$0xf]
      %v334 = vld [vmem:[%s219 + $0x54] sm:$0xf]
      %v335 = vld [vmem:[%s219 + $0x58] sm:$0xf]
      %v336 = vld [vmem:[%s219 + $0x5c] sm:$0xf]
      %v337 = vld [vmem:[%s219 + $0x60] sm:$0xf]
      %v338 = vld [vmem:[%s219 + $0x64] sm:$0xf]
      %v339 = vld [vmem:[%s219 + $0x68] sm:$0xf]
      %v340 = vld [vmem:[%s219 + $0x6c] sm:$0xf]
      %v341 = vld [vmem:[%s219 + $0x70] sm:$0xf]
      %v342 = vld [vmem:[%s219 + $0x74] sm:$0xf]
      %v343 = vld [vmem:[%s219 + $0x78] sm:$0xf]
      %v344 = vld [vmem:[%s219 + $0x7c] sm:$0xf]
      %v345 = vld [vmem:[%s219 + $0x80] sm:$0xf]
      %v346 = vld [vmem:[%s219 + $0x84] sm:$0xf]
      %v347 = vld [vmem:[%s219 + $0x88] sm:$0xf]
      %v348 = vld [vmem:[%s219 + $0x8c] sm:$0xf]
      %v349 = vld [vmem:[%s219 + $0x90] sm:$0xf]
      %v350 = vld [vmem:[%s219 + $0x94] sm:$0xf]
      %v351 = vld [vmem:[%s219 + $0x98] sm:$0xf]
      %v352 = vld [vmem:[%s219 + $0x9c] sm:$0xf]
      %v353 = vld [vmem:[%s219 + $0xa0] sm:$0xf]
      %v354 = vld [vmem:[%s219 + $0xa4] sm:$0xf]
      %v355 = vld [vmem:[%s219 + $0xa8] sm:$0xf]
      %v356 = vld [vmem:[%s219 + $0xac] sm:$0xf]
      %v357 = vld [vmem:[%s219 + $0xb0] sm:$0xf]
      %v358 = vld [vmem:[%s219 + $0xb4] sm:$0xf]
      %v359 = vld [vmem:[%s219 + $0xb8] sm:$0xf]
      %v360 = vld [vmem:[%s219 + $0xbc] sm:$0xf]
      %v361 = vld [vmem:[%s219 + $0xc0] sm:$0xf]
      %v362 = vld [vmem:[%s219 + $0xc4] sm:$0xf]
      %v363 = vld [vmem:[%s219 + $0xc8] sm:$0xf]
      %v364 = vld [vmem:[%s219 + $0xcc] sm:$0xf]
      %v365 = vld [vmem:[%s219 + $0xd0] sm:$0xf]
      %v366 = vld [vmem:[%s219 + $0xd4] sm:$0xf]
      %v367 = vld [vmem:[%s219 + $0xd8] sm:$0xf]
      %v368 = vld [vmem:[%s219 + $0xdc] sm:$0xf]
      %v369 = vld [vmem:[%s219 + $0xe0] sm:$0xf]
      %v370 = vld [vmem:[%s219 + $0xe4] sm:$0xf]
      %v371 = vld [vmem:[%s219 + $0xe8] sm:$0xf]
      %v372 = vld [vmem:[%s219 + $0xec] sm:$0xf]
      %v373 = vld [vmem:[%s219 + $0xf0] sm:$0xf]
      %v374 = vld [vmem:[%s219 + $0xf4] sm:$0xf]
      %v375 = vld [vmem:[%s219 + $0xf8] sm:$0xf]
      %v376 = vld [vmem:[%s219 + $0xfc] sm:$0xf]
      %v377 = vld [vmem:[%s219 + $0x100] sm:$0xf]
      %v378 = vld [vmem:[%s219 + $0x104] sm:$0xf]
      %v379 = vld [vmem:[%s219 + $0x108] sm:$0xf]
      %v380 = vld [vmem:[%s219 + $0x10c] sm:$0xf]
      %v381 = vld [vmem:[%s219 + $0x110] sm:$0xf]
      %v382 = vld [vmem:[%s219 + $0x114] sm:$0xf]
      %v383 = vld [vmem:[%s219 + $0x118] sm:$0xf]
      %v384 = vld [vmem:[%s219 + $0x11c] sm:$0xf]
      %v433 = vunpack.c.l.b16 %v265
      %v434 = vunpack.c.h.b16 %v265
      %v435 = vunpack.c.l.b16 %v266
      %v436 = vunpack.c.h.b16 %v266
      %v437 = vunpack.c.l.b16 %v267
      %v438 = vunpack.c.l.b16 %v268
      %v439 = vunpack.c.h.b16 %v268
      %v440 = vunpack.c.l.b16 %v269
      %v441 = vunpack.c.h.b16 %v269
      %v442 = vunpack.c.l.b16 %v270
      %v443 = vunpack.c.l.b16 %v271
      %v444 = vunpack.c.h.b16 %v271
      %v445 = vunpack.c.l.b16 %v272
      %v446 = vunpack.c.h.b16 %v272
      %v447 = vunpack.c.l.b16 %v273
      %v448 = vunpack.c.l.b16 %v274
      %v449 = vunpack.c.h.b16 %v274
      %v450 = vunpack.c.l.b16 %v275
      %v451 = vunpack.c.h.b16 %v275
      %v452 = vunpack.c.l.b16 %v276
      %v453 = vunpack.c.l.b16 %v277
      %v454 = vunpack.c.h.b16 %v277
      %v455 = vunpack.c.l.b16 %v278
      %v456 = vunpack.c.h.b16 %v278
      %v457 = vunpack.c.l.b16 %v279
      %v458 = vunpack.c.l.b16 %v280
      %v459 = vunpack.c.h.b16 %v280
      %v460 = vunpack.c.l.b16 %v281
      %v461 = vunpack.c.h.b16 %v281
      %v462 = vunpack.c.l.b16 %v282
      %v463 = vunpack.c.l.b16 %v283
      %v464 = vunpack.c.h.b16 %v283
      %v465 = vunpack.c.l.b16 %v284
      %v466 = vunpack.c.h.b16 %v284
      %v467 = vunpack.c.l.b16 %v285
      %v468 = vunpack.c.l.b16 %v286
      %v469 = vunpack.c.h.b16 %v286
      %v470 = vunpack.c.l.b16 %v287
      %v471 = vunpack.c.h.b16 %v287
      %v472 = vunpack.c.l.b16 %v288
      %v473 = vunpack.c.l.b16 %v289
      %v474 = vunpack.c.h.b16 %v289
      %v475 = vunpack.c.l.b16 %v290
      %v476 = vunpack.c.h.b16 %v290
      %v477 = vunpack.c.l.b16 %v291
      %v478 = vunpack.c.l.b16 %v292
      %v479 = vunpack.c.h.b16 %v292
      %v480 = vunpack.c.l.b16 %v293
      %v481 = vunpack.c.h.b16 %v293
      %v482 = vunpack.c.l.b16 %v294
      %v483 = vunpack.c.l.b16 %v295
      %v484 = vunpack.c.h.b16 %v295
      %v485 = vunpack.c.l.b16 %v296
      %v486 = vunpack.c.h.b16 %v296
      %v487 = vunpack.c.l.b16 %v297
      %v488 = vunpack.c.l.b16 %v298
      %v489 = vunpack.c.h.b16 %v298
      %v490 = vunpack.c.l.b16 %v299
      %v491 = vunpack.c.h.b16 %v299
      %v492 = vunpack.c.l.b16 %v300
      %v493 = vunpack.c.l.b16 %v301
      %v494 = vunpack.c.h.b16 %v301
      %v495 = vunpack.c.l.b16 %v302
      %v496 = vunpack.c.h.b16 %v302
      %v497 = vunpack.c.l.b16 %v303
      %v498 = vunpack.c.l.b16 %v304
      %v499 = vunpack.c.h.b16 %v304
      %v500 = vunpack.c.l.b16 %v305
      %v501 = vunpack.c.h.b16 %v305
      %v502 = vunpack.c.l.b16 %v306
      %v503 = vunpack.c.l.b16 %v307
      %v504 = vunpack.c.h.b16 %v307
      %v505 = vunpack.c.l.b16 %v308
      %v506 = vunpack.c.h.b16 %v308
      %v507 = vunpack.c.l.b16 %v309
      %v508 = vunpack.c.l.b16 %v310
      %v509 = vunpack.c.h.b16 %v310
      %v510 = vunpack.c.l.b16 %v311
      %v511 = vunpack.c.h.b16 %v311
      %v512 = vunpack.c.l.b16 %v312
      %v513 = vpack.c.b16 %v438, %v433
      %v514 = vpack.c.b16 %v439, %v434
      %v515 = vpack.c.b16 %v440, %v435
      %v516 = vpack.c.b16 %v441, %v436
      %v517 = vpack.c.b16 %v442, %v437
      %v518 = vpack.c.b16 %v448, %v443
      %v519 = vpack.c.b16 %v449, %v444
      %v520 = vpack.c.b16 %v450, %v445
      %v521 = vpack.c.b16 %v451, %v446
      %v522 = vpack.c.b16 %v452, %v447
      %v523 = vpack.c.b16 %v458, %v453
      %v524 = vpack.c.b16 %v459, %v454
      %v525 = vpack.c.b16 %v460, %v455
      %v526 = vpack.c.b16 %v461, %v456
      %v527 = vpack.c.b16 %v462, %v457
      %v528 = vpack.c.b16 %v468, %v463
      %v529 = vpack.c.b16 %v469, %v464
      %v530 = vpack.c.b16 %v470, %v465
      %v531 = vpack.c.b16 %v471, %v466
      %v532 = vpack.c.b16 %v472, %v467
      %v533 = vpack.c.b16 %v478, %v473
      %v534 = vpack.c.b16 %v479, %v474
      %v535 = vpack.c.b16 %v480, %v475
      %v536 = vpack.c.b16 %v481, %v476
      %v537 = vpack.c.b16 %v482, %v477
      %v538 = vpack.c.b16 %v488, %v483
      %v539 = vpack.c.b16 %v489, %v484
      %v540 = vpack.c.b16 %v490, %v485
      %v541 = vpack.c.b16 %v491, %v486
      %v542 = vpack.c.b16 %v492, %v487
      %v543 = vpack.c.b16 %v498, %v493
      %v544 = vpack.c.b16 %v499, %v494
      %v545 = vpack.c.b16 %v500, %v495
      %v546 = vpack.c.b16 %v501, %v496
      %v547 = vpack.c.b16 %v502, %v497
      %v548 = vpack.c.b16 %v508, %v503
      %v549 = vpack.c.b16 %v509, %v504
      %v550 = vpack.c.b16 %v510, %v505
      %v551 = vpack.c.b16 %v511, %v506
      %v552 = vpack.c.b16 %v512, %v507
      %v657 = vunpack.c.l.b16 %v313
      %v658 = vunpack.c.l.b16 %v314
      %v659 = vunpack.c.l.b16 %v315
      %v660 = vunpack.c.l.b16 %v316
      %v661 = vunpack.c.l.b16 %v317
      %v662 = vunpack.c.l.b16 %v318
      %v663 = vunpack.c.l.b16 %v319
      %v664 = vunpack.c.l.b16 %v320
      %v665 = vunpack.c.l.b16 %v321
      %v666 = vunpack.c.l.b16 %v322
      %v667 = vunpack.c.l.b16 %v323
      %v668 = vunpack.c.l.b16 %v324
      %v669 = vunpack.c.l.b16 %v325
      %v670 = vunpack.c.l.b16 %v326
      %v671 = vunpack.c.l.b16 %v327
      %v672 = vunpack.c.l.b16 %v328
      %v673 = vunpack.c.l.b16 %v329
      %v674 = vunpack.c.l.b16 %v330
      %v675 = vunpack.c.l.b16 %v331
      %v676 = vunpack.c.l.b16 %v332
      %v677 = vunpack.c.l.b16 %v333
      %v678 = vunpack.c.l.b16 %v334
      %v679 = vunpack.c.l.b16 %v335
      %v680 = vunpack.c.l.b16 %v336
      %v681 = vunpack.c.l.b16 %v337
      %v682 = vunpack.c.l.b16 %v338
      %v683 = vunpack.c.l.b16 %v339
      %v684 = vunpack.c.l.b16 %v340
      %v685 = vunpack.c.l.b16 %v341
      %v686 = vunpack.c.l.b16 %v342
      %v687 = vunpack.c.l.b16 %v343
      %v688 = vunpack.c.l.b16 %v344
      %v689 = vunpack.c.l.b16 %v345
      %v690 = vunpack.c.l.b16 %v346
      %v691 = vunpack.c.l.b16 %v347
      %v692 = vunpack.c.l.b16 %v348
      %v693 = vunpack.c.l.b16 %v349
      %v694 = vunpack.c.l.b16 %v350
      %v695 = vunpack.c.l.b16 %v351
      %v696 = vunpack.c.l.b16 %v352
      %v697 = vunpack.c.l.b16 %v353
      %v698 = vunpack.c.l.b16 %v354
      %v699 = vunpack.c.l.b16 %v355
      %v700 = vunpack.c.l.b16 %v356
      %v701 = vunpack.c.l.b16 %v357
      %v702 = vunpack.c.l.b16 %v358
      %v703 = vunpack.c.l.b16 %v359
      %v704 = vunpack.c.l.b16 %v360
      %v705 = vunpack.c.l.b16 %v361
      %v706 = vunpack.c.l.b16 %v362
      %v707 = vunpack.c.l.b16 %v363
      %v708 = vunpack.c.l.b16 %v364
      %v709 = vunpack.c.l.b16 %v365
      %v710 = vunpack.c.l.b16 %v366
      %v711 = vunpack.c.l.b16 %v367
      %v712 = vunpack.c.l.b16 %v368
      %v713 = vunpack.c.l.b16 %v369
      %v714 = vunpack.c.l.b16 %v370
      %v715 = vunpack.c.l.b16 %v371
      %v716 = vunpack.c.l.b16 %v372
      %v717 = vunpack.c.l.b16 %v373
      %v718 = vunpack.c.l.b16 %v374
      %v719 = vunpack.c.l.b16 %v375
      %v720 = vunpack.c.l.b16 %v376
      %v721 = vunpack.c.l.b16 %v377
      %v722 = vunpack.c.l.b16 %v378
      %v723 = vunpack.c.l.b16 %v379
      %v724 = vunpack.c.l.b16 %v380
      %v725 = vunpack.c.l.b16 %v381
      %v726 = vunpack.c.l.b16 %v382
      %v727 = vunpack.c.l.b16 %v383
      %v728 = vunpack.c.l.b16 %v384
      %v729 = vpack.c.b16 %v658, %v657
      %v730 = vpack.c.b16 %v660, %v659
      %v731 = vpack.c.b16 %v662, %v661
      %v732 = vpack.c.b16 %v664, %v663
      %v733 = vpack.c.b16 %v666, %v665
      %v734 = vpack.c.b16 %v668, %v667
      %v735 = vpack.c.b16 %v670, %v669
      %v736 = vpack.c.b16 %v672, %v671
      %v737 = vpack.c.b16 %v674, %v673
      %v738 = vpack.c.b16 %v676, %v675
      %v739 = vpack.c.b16 %v678, %v677
      %v740 = vpack.c.b16 %v680, %v679
      %v741 = vpack.c.b16 %v682, %v681
      %v742 = vpack.c.b16 %v684, %v683
      %v743 = vpack.c.b16 %v686, %v685
      %v744 = vpack.c.b16 %v688, %v687
      %v745 = vpack.c.b16 %v690, %v689
      %v746 = vpack.c.b16 %v692, %v691
      %v747 = vpack.c.b16 %v694, %v693
      %v748 = vpack.c.b16 %v696, %v695
      %v749 = vpack.c.b16 %v698, %v697
      %v750 = vpack.c.b16 %v700, %v699
      %v751 = vpack.c.b16 %v702, %v701
      %v752 = vpack.c.b16 %v704, %v703
      %v753 = vpack.c.b16 %v706, %v705
      %v754 = vpack.c.b16 %v708, %v707
      %v755 = vpack.c.b16 %v710, %v709
      %v756 = vpack.c.b16 %v712, %v711
      %v757 = vpack.c.b16 %v714, %v713
      %v758 = vpack.c.b16 %v716, %v715
      %v759 = vpack.c.b16 %v718, %v717
      %v760 = vpack.c.b16 %v720, %v719
      %v761 = vpack.c.b16 %v722, %v721
      %v762 = vpack.c.b16 %v724, %v723
      %v763 = vpack.c.b16 %v726, %v725
      %v764 = vpack.c.b16 %v728, %v727
      %vm801 = vcmask 523264
      %v803 = vsel %vm801, %v517, 0
      %v806 = vsel %vm801, %v522, 0
      %v809 = vsel %vm801, %v527, 0
      %v812 = vsel %vm801, %v532, 0
      %v815 = vsel %vm801, %v537, 0
      %v818 = vsel %vm801, %v542, 0
      %v821 = vsel %vm801, %v547, 0
      %v824 = vsel %vm801, %v552, 0
      %826 = vmatpush.bf16.msra.mxu0 %v736
      %827 = vmatpush.bf16.msra.mxu0 %v735
      %828 = vmatpush.bf16.msra.mxu0 %v734
      %829 = vmatpush.bf16.msra.mxu0 %v733
      %830 = vmatpush.bf16.msra.mxu0 %v732
      %831 = vmatpush.bf16.msra.mxu0 %v731
      %832 = vmatpush.bf16.msra.mxu0 %v730
      %833 = vmatpush.bf16.msra.mxu0 %v729
      %834 = vmatmul.bf16.gmra.mxu0 %v513
      %v835 = vpop.f32.mrf.mxu0
      %v836 = vadd.f32 0.0, %v835
      %v837 = vpop.f32.mrf.mxu0
      %v838 = vadd.f32 0.0, %v837
      %839 = vmatmul.bf16.gmra.mxu0 %v518
      %v840 = vpop.f32.mrf.mxu0
      %v841 = vadd.f32 0.0, %v840
      %v842 = vpop.f32.mrf.mxu0
      %v843 = vadd.f32 0.0, %v842
      %844 = vmatmul.bf16.gmra.mxu0 %v523
      %v845 = vpop.f32.mrf.mxu0
      %v846 = vadd.f32 0.0, %v845
      %v847 = vpop.f32.mrf.mxu0
      %v848 = vadd.f32 0.0, %v847
      %849 = vmatmul.bf16.gmra.mxu0 %v528
      %v850 = vpop.f32.mrf.mxu0
      %v851 = vadd.f32 0.0, %v850
      %v852 = vpop.f32.mrf.mxu0
      %v853 = vadd.f32 0.0, %v852
      %854 = vmatmul.bf16.gmra.mxu0 %v533
      %v855 = vpop.f32.mrf.mxu0
      %v856 = vadd.f32 0.0, %v855
      %v857 = vpop.f32.mrf.mxu0
      %v858 = vadd.f32 0.0, %v857
      %859 = vmatmul.bf16.gmra.mxu0 %v538
      %v860 = vpop.f32.mrf.mxu0
      %v861 = vadd.f32 0.0, %v860
      %v862 = vpop.f32.mrf.mxu0
      %v863 = vadd.f32 0.0, %v862
      %864 = vmatmul.bf16.gmra.mxu0 %v543
      %v865 = vpop.f32.mrf.mxu0
      %v866 = vadd.f32 0.0, %v865
      %v867 = vpop.f32.mrf.mxu0
      %v868 = vadd.f32 0.0, %v867
      %869 = vmatmul.bf16.gmra.mxu0 %v548
      %v870 = vpop.f32.mrf.mxu0
      %v871 = vadd.f32 0.0, %v870
      %v872 = vpop.f32.mrf.mxu0
      %v873 = vadd.f32 0.0, %v872
      %874 = vdwg.mxu0
      %875 = vmatpush.bf16.msra.mxu0 %v744
      %876 = vmatpush.bf16.msra.mxu0 %v743
      %877 = vmatpush.bf16.msra.mxu0 %v742
      %878 = vmatpush.bf16.msra.mxu0 %v741
      %879 = vmatpush.bf16.msra.mxu0 %v740
      %880 = vmatpush.bf16.msra.mxu0 %v739
      %881 = vmatpush.bf16.msra.mxu0 %v738
      %882 = vmatpush.bf16.msra.mxu0 %v737
      %883 = vmatmul.bf16.gmra.mxu0 %v514
      %v884 = vpop.f32.mrf.mxu0
      %v885 = vadd.f32 %v836, %v884
      %v886 = vpop.f32.mrf.mxu0
      %v887 = vadd.f32 %v838, %v886
      %888 = vmatmul.bf16.gmra.mxu0 %v519
      %v889 = vpop.f32.mrf.mxu0
      %v890 = vadd.f32 %v841, %v889
      %v891 = vpop.f32.mrf.mxu0
      %v892 = vadd.f32 %v843, %v891
      %893 = vmatmul.bf16.gmra.mxu0 %v524
      %v894 = vpop.f32.mrf.mxu0
      %v895 = vadd.f32 %v846, %v894
      %v896 = vpop.f32.mrf.mxu0
      %v897 = vadd.f32 %v848, %v896
      %898 = vmatmul.bf16.gmra.mxu0 %v529
      %v899 = vpop.f32.mrf.mxu0
      %v900 = vadd.f32 %v851, %v899
      %v901 = vpop.f32.mrf.mxu0
      %v902 = vadd.f32 %v853, %v901
      %903 = vmatmul.bf16.gmra.mxu0 %v534
      %v904 = vpop.f32.mrf.mxu0
      %v905 = vadd.f32 %v856, %v904
      %v906 = vpop.f32.mrf.mxu0
      %v907 = vadd.f32 %v858, %v906
      %908 = vmatmul.bf16.gmra.mxu0 %v539
      %v909 = vpop.f32.mrf.mxu0
      %v910 = vadd.f32 %v861, %v909
      %v911 = vpop.f32.mrf.mxu0
      %v912 = vadd.f32 %v863, %v911
      %913 = vmatmul.bf16.gmra.mxu0 %v544
      %v914 = vpop.f32.mrf.mxu0
      %v915 = vadd.f32 %v866, %v914
      %v916 = vpop.f32.mrf.mxu0
      %v917 = vadd.f32 %v868, %v916
      %918 = vmatmul.bf16.gmra.mxu0 %v549
      %v919 = vpop.f32.mrf.mxu0
      %v920 = vadd.f32 %v871, %v919
      %v921 = vpop.f32.mrf.mxu0
      %v922 = vadd.f32 %v873, %v921
      %923 = vdwg.mxu0
      %924 = vmatpush.bf16.msra.mxu0 %v752
      %925 = vmatpush.bf16.msra.mxu0 %v751
      %926 = vmatpush.bf16.msra.mxu0 %v750
      %927 = vmatpush.bf16.msra.mxu0 %v749
      %928 = vmatpush.bf16.msra.mxu0 %v748
      %929 = vmatpush.bf16.msra.mxu0 %v747
      %930 = vmatpush.bf16.msra.mxu0 %v746
      %931 = vmatpush.bf16.msra.mxu0 %v745
      %932 = vmatmul.bf16.gmra.mxu0 %v515
      %v933 = vpop.f32.mrf.mxu0
      %v934 = vadd.f32 %v885, %v933
      %v935 = vpop.f32.mrf.mxu0
      %v936 = vadd.f32 %v887, %v935
      %937 = vmatmul.bf16.gmra.mxu0 %v520
      %v938 = vpop.f32.mrf.mxu0
      %v939 = vadd.f32 %v890, %v938
      %v940 = vpop.f32.mrf.mxu0
      %v941 = vadd.f32 %v892, %v940
      %942 = vmatmul.bf16.gmra.mxu0 %v525
      %v943 = vpop.f32.mrf.mxu0
      %v944 = vadd.f32 %v895, %v943
      %v945 = vpop.f32.mrf.mxu0
      %v946 = vadd.f32 %v897, %v945
      %947 = vmatmul.bf16.gmra.mxu0 %v530
      %v948 = vpop.f32.mrf.mxu0
      %v949 = vadd.f32 %v900, %v948
      %v950 = vpop.f32.mrf.mxu0
      %v951 = vadd.f32 %v902, %v950
      %952 = vmatmul.bf16.gmra.mxu0 %v535
      %v953 = vpop.f32.mrf.mxu0
      %v954 = vadd.f32 %v905, %v953
      %v955 = vpop.f32.mrf.mxu0
      %v956 = vadd.f32 %v907, %v955
      %957 = vmatmul.bf16.gmra.mxu0 %v540
      %v958 = vpop.f32.mrf.mxu0
      %v959 = vadd.f32 %v910, %v958
      %v960 = vpop.f32.mrf.mxu0
      %v961 = vadd.f32 %v912, %v960
      %962 = vmatmul.bf16.gmra.mxu0 %v545
      %v963 = vpop.f32.mrf.mxu0
      %v964 = vadd.f32 %v915, %v963
      %v965 = vpop.f32.mrf.mxu0
      %v966 = vadd.f32 %v917, %v965
      %967 = vmatmul.bf16.gmra.mxu0 %v550
      %v968 = vpop.f32.mrf.mxu0
      %v969 = vadd.f32 %v920, %v968
      %v970 = vpop.f32.mrf.mxu0
      %v971 = vadd.f32 %v922, %v970
      %972 = vdwg.mxu0
      %973 = vmatpush.bf16.msra.mxu0 %v760
      %974 = vmatpush.bf16.msra.mxu0 %v759
      %975 = vmatpush.bf16.msra.mxu0 %v758
      %976 = vmatpush.bf16.msra.mxu0 %v757
      %977 = vmatpush.bf16.msra.mxu0 %v756
      %978 = vmatpush.bf16.msra.mxu0 %v755
      %979 = vmatpush.bf16.msra.mxu0 %v754
      %980 = vmatpush.bf16.msra.mxu0 %v753
      %981 = vmatmul.bf16.gmra.mxu0 %v516
      %v982 = vpop.f32.mrf.mxu0
      %v983 = vadd.f32 %v934, %v982
      %v984 = vpop.f32.mrf.mxu0
      %v985 = vadd.f32 %v936, %v984
      %986 = vmatmul.bf16.gmra.mxu0 %v521
      %v987 = vpop.f32.mrf.mxu0
      %v988 = vadd.f32 %v939, %v987
      %v989 = vpop.f32.mrf.mxu0
      %v990 = vadd.f32 %v941, %v989
      %991 = vmatmul.bf16.gmra.mxu0 %v526
      %v992 = vpop.f32.mrf.mxu0
      %v993 = vadd.f32 %v944, %v992
      %v994 = vpop.f32.mrf.mxu0
      %v995 = vadd.f32 %v946, %v994
      %996 = vmatmul.bf16.gmra.mxu0 %v531
      %v997 = vpop.f32.mrf.mxu0
      %v998 = vadd.f32 %v949, %v997
      %v999 = vpop.f32.mrf.mxu0
      %v1000 = vadd.f32 %v951, %v999
      %1001 = vmatmul.bf16.gmra.mxu0 %v536
      %v1002 = vpop.f32.mrf.mxu0
      %v1003 = vadd.f32 %v954, %v1002
      %v1004 = vpop.f32.mrf.mxu0
      %v1005 = vadd.f32 %v956, %v1004
      %1006 = vmatmul.bf16.gmra.mxu0 %v541
      %v1007 = vpop.f32.mrf.mxu0
      %v1008 = vadd.f32 %v959, %v1007
      %v1009 = vpop.f32.mrf.mxu0
      %v1010 = vadd.f32 %v961, %v1009
      %1011 = vmatmul.bf16.gmra.mxu0 %v546
      %v1012 = vpop.f32.mrf.mxu0
      %v1013 = vadd.f32 %v964, %v1012
      %v1014 = vpop.f32.mrf.mxu0
      %v1015 = vadd.f32 %v966, %v1014
      %1016 = vmatmul.bf16.gmra.mxu0 %v551
      %v1017 = vpop.f32.mrf.mxu0
      %v1018 = vadd.f32 %v969, %v1017
      %v1019 = vpop.f32.mrf.mxu0
      %v1020 = vadd.f32 %v971, %v1019
      %1021 = vdwg.mxu0
      %1022 = vmatpush.bf16.msra.mxu0 0
      %1023 = vmatpush.bf16.msra.mxu0 0
      %1024 = vmatpush.bf16.msra.mxu0 0
      %1025 = vmatpush.bf16.msra.mxu0 0
      %1026 = vmatpush.bf16.msra.mxu0 %v764
      %1027 = vmatpush.bf16.msra.mxu0 %v763
      %1028 = vmatpush.bf16.msra.mxu0 %v762
      %1029 = vmatpush.bf16.msra.mxu0 %v761
      %1030 = vmatmul.bf16.gmra.mxu0 %v803
      %v1031 = vpop.f32.mrf.mxu0
      %v1032 = vadd.f32 %v983, %v1031
      %v1033 = vpop.f32.mrf.mxu0
      %v1034 = vadd.f32 %v985, %v1033
      %1035 = vmatmul.bf16.gmra.mxu0 %v806
      %v1036 = vpop.f32.mrf.mxu0
      %v1037 = vadd.f32 %v988, %v1036
      %v1038 = vpop.f32.mrf.mxu0
      %v1039 = vadd.f32 %v990, %v1038
      %1040 = vmatmul.bf16.gmra.mxu0 %v809
      %v1041 = vpop.f32.mrf.mxu0
      %v1042 = vadd.f32 %v993, %v1041
      %v1043 = vpop.f32.mrf.mxu0
      %v1044 = vadd.f32 %v995, %v1043
      %1045 = vmatmul.bf16.gmra.mxu0 %v812
      %v1046 = vpop.f32.mrf.mxu0
      %v1047 = vadd.f32 %v998, %v1046
      %v1048 = vpop.f32.mrf.mxu0
      %v1049 = vadd.f32 %v1000, %v1048
      %1050 = vmatmul.bf16.gmra.mxu0 %v815
      %v1051 = vpop.f32.mrf.mxu0
      %v1052 = vadd.f32 %v1003, %v1051
      %v1053 = vpop.f32.mrf.mxu0
      %v1054 = vadd.f32 %v1005, %v1053
      %1055 = vmatmul.bf16.gmra.mxu0 %v818
      %v1056 = vpop.f32.mrf.mxu0
      %v1057 = vadd.f32 %v1008, %v1056
      %v1058 = vpop.f32.mrf.mxu0
      %v1059 = vadd.f32 %v1010, %v1058
      %1060 = vmatmul.bf16.gmra.mxu0 %v821
      %v1061 = vpop.f32.mrf.mxu0
      %v1062 = vadd.f32 %v1013, %v1061
      %v1063 = vpop.f32.mrf.mxu0
      %v1064 = vadd.f32 %v1015, %v1063
      %1065 = vmatmul.bf16.gmra.mxu0 %v824
      %v1066 = vpop.f32.mrf.mxu0
      %v1067 = vadd.f32 %v1018, %v1066
      %v1068 = vpop.f32.mrf.mxu0
      %v1069 = vadd.f32 %v1020, %v1068
      %1070 = vdwg.mxu0
      %v1071 = vadd.f32 %v249, %v1032
      %v1072 = vadd.f32 %v250, %v1034
      %v1073 = vadd.f32 %v251, %v1037
      %v1074 = vadd.f32 %v252, %v1039
      %v1075 = vadd.f32 %v253, %v1042
      %v1076 = vadd.f32 %v254, %v1044
      %v1077 = vadd.f32 %v255, %v1047
      %v1078 = vadd.f32 %v256, %v1049
      %v1079 = vadd.f32 %v257, %v1052
      %v1080 = vadd.f32 %v258, %v1054
      %v1081 = vadd.f32 %v259, %v1057
      %v1082 = vadd.f32 %v260, %v1059
      %v1083 = vadd.f32 %v261, %v1062
      %v1084 = vadd.f32 %v262, %v1064
      %v1085 = vadd.f32 %v263, %v1067
      %v1086 = vadd.f32 %v264, %v1069
      %vm1087 = vcmask 785408
      %1088 = vst.msk [vmem:[#allocation2] sm:$0xff] %vm1087, %v1071
      %1089 = vst.msk [vmem:[#allocation2 + $0x8] sm:$0xff] %vm1087, %v1072
      %1090 = vst.msk [vmem:[#allocation2 + $0x10] sm:$0xff] %vm1087, %v1073
      %1091 = vst.msk [vmem:[#allocation2 + $0x18] sm:$0xff] %vm1087, %v1074
      %1092 = vst.msk [vmem:[#allocation2 + $0x20] sm:$0xff] %vm1087, %v1075
      %1093 = vst.msk [vmem:[#allocation2 + $0x28] sm:$0xff] %vm1087, %v1076
      %1094 = vst.msk [vmem:[#allocation2 + $0x30] sm:$0xff] %vm1087, %v1077
      %1095 = vst.msk [vmem:[#allocation2 + $0x38] sm:$0xff] %vm1087, %v1078
      %1096 = vst.msk [vmem:[#allocation2 + $0x40] sm:$0xff] %vm1087, %v1079
      %1097 = vst.msk [vmem:[#allocation2 + $0x48] sm:$0xff] %vm1087, %v1080
      %1098 = vst.msk [vmem:[#allocation2 + $0x50] sm:$0xff] %vm1087, %v1081
      %1099 = vst.msk [vmem:[#allocation2 + $0x58] sm:$0xff] %vm1087, %v1082
      %1100 = vst.msk [vmem:[#allocation2 + $0x60] sm:$0xff] %vm1087, %v1083
      %1101 = vst.msk [vmem:[#allocation2 + $0x68] sm:$0xff] %vm1087, %v1084
      %1102 = vst.msk [vmem:[#allocation2 + $0x70] sm:$0xff] %vm1087, %v1085
      %1103 = vst.msk [vmem:[#allocation2 + $0x78] sm:$0xff] %vm1087, %v1086
      // Predicated region
      $region37: #{_lambda_.7} parent=31 // pred_check
        %p1104 = pneg %p228
      $region38: #{_lambda_.7} parent=31 // pred_check_branch
        %1106 = sbr.rel (%p1104) target = $region40
      $region39: #{_lambda_.7} parent=31 // pred_region
        %v1107 = vld [vmem:[#allocation2] sm:$0xff]
        %v1108 = vld [vmem:[#allocation2 + $0x8] sm:$0xff]
        %v1109 = vld [vmem:[#allocation2 + $0x10] sm:$0xff]
        %v1110 = vld [vmem:[#allocation2 + $0x18] sm:$0xff]
        %v1111 = vld [vmem:[#allocation2 + $0x20] sm:$0xff]
        %v1112 = vld [vmem:[#allocation2 + $0x28] sm:$0xff]
        %v1113 = vld [vmem:[#allocation2 + $0x30] sm:$0xff]
        %v1114 = vld [vmem:[#allocation2 + $0x38] sm:$0xff]
        %v1115 = vld [vmem:[#allocation2 + $0x40] sm:$0xff]
        %v1116 = vld [vmem:[#allocation2 + $0x48] sm:$0xff]
        %v1117 = vld [vmem:[#allocation2 + $0x50] sm:$0xff]
        %v1118 = vld [vmem:[#allocation2 + $0x58] sm:$0xff]
        %v1119 = vld [vmem:[#allocation2 + $0x60] sm:$0xff]
        %v1120 = vld [vmem:[#allocation2 + $0x68] sm:$0xff]
        %v1121 = vld [vmem:[#allocation2 + $0x70] sm:$0xff]
        %v1122 = vld [vmem:[#allocation2 + $0x78] sm:$0xff]
        %v1123 = vld [vmem:[%s2] sm:$0x1]
        %v1125 = vperm.slane %v1123, 0
        %v1127 = vadd.f32 %v1107, %v1125
        %v1128 = vadd.f32 %v1108, %v1125
        %v1129 = vadd.f32 %v1109, %v1125
        %v1130 = vadd.f32 %v1110, %v1125
        %v1131 = vadd.f32 %v1111, %v1125
        %v1132 = vadd.f32 %v1112, %v1125
        %v1133 = vadd.f32 %v1113, %v1125
        %v1134 = vadd.f32 %v1114, %v1125
        %v1135 = vadd.f32 %v1115, %v1125
        %v1136 = vadd.f32 %v1116, %v1125
        %v1137 = vadd.f32 %v1117, %v1125
        %v1138 = vadd.f32 %v1118, %v1125
        %v1139 = vadd.f32 %v1119, %v1125
        %v1140 = vadd.f32 %v1120, %v1125
        %v1141 = vadd.f32 %v1121, %v1125
        %v1142 = vadd.f32 %v1122, %v1125
        %v1143 = vmax.f32 %v1127, 0.0
        %v1144 = vmax.f32 %v1128, 0.0
        %v1145 = vmax.f32 %v1129, 0.0
        %v1146 = vmax.f32 %v1130, 0.0
        %v1147 = vmax.f32 %v1131, 0.0
        %v1148 = vmax.f32 %v1132, 0.0
        %v1149 = vmax.f32 %v1133, 0.0
        %v1150 = vmax.f32 %v1134, 0.0
        %v1151 = vmax.f32 %v1135, 0.0
        %v1152 = vmax.f32 %v1136, 0.0
        %v1153 = vmax.f32 %v1137, 0.0
        %v1154 = vmax.f32 %v1138, 0.0
        %v1155 = vmax.f32 %v1139, 0.0
        %v1156 = vmax.f32 %v1140, 0.0
        %v1157 = vmax.f32 %v1141, 0.0
        %v1158 = vmax.f32 %v1142, 0.0
        %1159 = vst.msk [vmem:[%s225] sm:$0xff] %vm1087, %v1143
        %1160 = vst.msk [vmem:[%s225 + $0x8] sm:$0xff] %vm1087, %v1144
        %1161 = vst.msk [vmem:[%s225 + $0x10] sm:$0xff] %vm1087, %v1145
        %1162 = vst.msk [vmem:[%s225 + $0x18] sm:$0xff] %vm1087, %v1146
        %1163 = vst.msk [vmem:[%s225 + $0x20] sm:$0xff] %vm1087, %v1147
        %1164 = vst.msk [vmem:[%s225 + $0x28] sm:$0xff] %vm1087, %v1148
        %1165 = vst.msk [vmem:[%s225 + $0x30] sm:$0xff] %vm1087, %v1149
        %1166 = vst.msk [vmem:[%s225 + $0x38] sm:$0xff] %vm1087, %v1150
        %1167 = vst.msk [vmem:[%s225 + $0x40] sm:$0xff] %vm1087, %v1151
        %1168 = vst.msk [vmem:[%s225 + $0x48] sm:$0xff] %vm1087, %v1152
        %1169 = vst.msk [vmem:[%s225 + $0x50] sm:$0xff] %vm1087, %v1153
        %1170 = vst.msk [vmem:[%s225 + $0x58] sm:$0xff] %vm1087, %v1154
        %1171 = vst.msk [vmem:[%s225 + $0x60] sm:$0xff] %vm1087, %v1155
        %1172 = vst.msk [vmem:[%s225 + $0x68] sm:$0xff] %vm1087, %v1156
        %1173 = vst.msk [vmem:[%s225 + $0x70] sm:$0xff] %vm1087, %v1157
        %1174 = vst.msk [vmem:[%s225 + $0x78] sm:$0xff] %vm1087, %v1158
      $region40: #{_lambda_.7} parent=31 // pred_fallthru
        _
      %s1175 = smul.u32 16, %s18
      %p1176 = scmp.lt.s32.totalorder %s1175, 63
      %s1177 = scalar_select %p1176, %s1175, 63
      %s1178 = smul.addr %s1177, 8
      %s1179 = scalar_lea.vmem %s3, %s1178
      // Predicated region
      $region41: #{_lambda_.7} parent=31 // pred_check
        %p1180 = pneg %p119
      $region42: #{_lambda_.7} parent=31 // pred_check_branch
        %1182 = sbr.rel (%p1180) target = $region44
      $region43: #{_lambda_.7} parent=31 // pred_region
        %s1183 = smul.u32 16, %s18
      $region44: #{_lambda_.7} parent=31 // pred_fallthru
        _
    $region32: #{_lambda_.7} parent=5 // pred_fallthru
      _
    %p1184 = scmp.le.s32.totalorder 2, %s9
    // Predicated region
    $region45: #{_lambda_.7} parent=5 // pred_check
      %p1185 = pneg %p1184
    $region46: #{_lambda_.7} parent=5 // pred_check_branch
      %1187 = sbr.rel (%p1185) target = $region48
    $region47: #{_lambda_.7} parent=5 // pred_region
      %s1188 = ssub.s32 %s9, 2
      // Predicated region
      $region49: #{_lambda_.7} parent=47 // pred_check
        %p1189 = pneg %p125
      $region50: #{_lambda_.7} parent=47 // pred_check_branch
        %1191 = sbr.rel (%p1189) target = $region52
      $region51: #{_lambda_.7} parent=47 // pred_region
        %s1192 = smul.u32 16, %s20
        %p1193 = scmp.lt.s32.totalorder %s1192, 63
        %s1194 = scalar_select %p1193, %s1192, 63
        %s1195 = smul.addr %s1194, 8
        %s1196 = scalar_lea.vmem %s3, %s1195
      $region52: #{_lambda_.7} parent=47 // pred_fallthru
        _
    $region48: #{_lambda_.7} parent=5 // pred_fallthru
      _
  $region6: #{_lambda_.7} parent=0 // loop_footer
    %s13 = sadd.s32 1, %s9
  $region7: #{_lambda_.7} parent=0 // loop_footer_branch
    %8 = sbr.rel target = $region3
  $region8: #{_lambda_.7} parent=0 // loop_exit
    _

// kernel: _lambda_.8
$region0: #{_lambda_.8}
  #allocation0 [shape = 'u32[]', space=smem, size = 0x4, offset = 0x4, fixed_abs, tag = 'smem constant byte address 0x4 - core index']
  #allocation1 [shape = 'u32[72,128]{1,0:T(1,128)}', space=vmem, size = 0x9000, scoped, tag = 'internal scratch']
  #allocation2 [shape = 'f32[104,96]{1,0:T(8,128)}', space=vmem, size = 0xd000, scoped, tag = 'scratch operand']
  %s0 = inlined_call_operand.vmem [shape: bf16[104,864], index: 0, kind: input, shape index: {}]
  %s1 = inlined_call_operand.vmem [shape: bf16[864,96], index: 1, kind: input, shape index: {}]
  %s2 = inlined_call_operand.vmem [shape: f32[1,96], index: 2, kind: input, shape index: {}]
  %s3 = inlined_call_operand.vmem [shape: f32[104,96], index: 3, kind: output, shape index: {}]
  %s4 = sld [smem:[#allocation0]]
  $region30: #{_lambda_.8} parent=0
    _
  %s6 = ssub.s32 1, %s4
  %s7 = scalar_select 0, %s6, %s4
  // Predicated region
  $region2: #{_lambda_.8} parent=0 // pred_check
    _
  $region3: #{_lambda_.8} parent=0 // pred_check_branch
    %9 = sbr.rel (0) target = $region5
  $region4: #{_lambda_.8} parent=0 // pred_region
    _
  $region5: #{_lambda_.8} parent=0 // pred_fallthru
    _
  // Predicated region
  $region6: #{_lambda_.8} parent=0 // pred_check
    _
  $region7: #{_lambda_.8} parent=0 // pred_check_branch
    %11 = sbr.rel (0) target = $region9
  $region8: #{_lambda_.8} parent=0 // pred_region
    _
  $region9: #{_lambda_.8} parent=0 // pred_fallthru
    _
  // Predicated region
  $region10: #{_lambda_.8} parent=0 // pred_check
    _
  $region11: #{_lambda_.8} parent=0 // pred_check_branch
    %13 = sbr.rel (0) target = $region13
  $region12: #{_lambda_.8} parent=0 // pred_region
    _
  $region13: #{_lambda_.8} parent=0 // pred_fallthru
    _
  %p15 = scmp.eq.s32.totalorder 0, 0
  // Predicated region
  $region14: #{_lambda_.8} parent=0 // pred_check
    %p16 = pneg %p15
  $region15: #{_lambda_.8} parent=0 // pred_check_branch
    %18 = sbr.rel (%p16) target = $region17
  $region16: #{_lambda_.8} parent=0 // pred_region
    %vm19 = vcmask 785408
    %20 = vst.msk [vmem:[#allocation2] sm:$0xff] %vm19, 0.0
    %21 = vst.msk [vmem:[#allocation2 + $0x8] sm:$0xff] %vm19, 0.0
    %22 = vst.msk [vmem:[#allocation2 + $0x10] sm:$0xff] %vm19, 0.0
    %23 = vst.msk [vmem:[#allocation2 + $0x18] sm:$0xff] %vm19, 0.0
    %24 = vst.msk [vmem:[#allocation2 + $0x20] sm:$0xff] %vm19, 0.0
    %25 = vst.msk [vmem:[#allocation2 + $0x28] sm:$0xff] %vm19, 0.0
    %26 = vst.msk [vmem:[#allocation2 + $0x30] sm:$0xff] %vm19, 0.0
    %27 = vst.msk [vmem:[#allocation2 + $0x38] sm:$0xff] %vm19, 0.0
    %28 = vst.msk [vmem:[#allocation2 + $0x40] sm:$0xff] %vm19, 0.0
    %29 = vst.msk [vmem:[#allocation2 + $0x48] sm:$0xff] %vm19, 0.0
    %30 = vst.msk [vmem:[#allocation2 + $0x50] sm:$0xff] %vm19, 0.0
    %31 = vst.msk [vmem:[#allocation2 + $0x58] sm:$0xff] %vm19, 0.0
    %32 = vst.msk [vmem:[#allocation2 + $0x60] sm:$0xff] %vm19, 0.0
  $region17: #{_lambda_.8} parent=0 // pred_fallthru
    _
  %v33 = vld [vmem:[#allocation2] sm:$0xff]
  %v34 = vld [vmem:[#allocation2 + $0x8] sm:$0xff]
  %v35 = vld [vmem:[#allocation2 + $0x10] sm:$0xff]
  %v36 = vld [vmem:[#allocation2 + $0x18] sm:$0xff]
  %v37 = vld [vmem:[#allocation2 + $0x20] sm:$0xff]
  %v38 = vld [vmem:[#allocation2 + $0x28] sm:$0xff]
  %v39 = vld [vmem:[#allocation2 + $0x30] sm:$0xff]
  %v40 = vld [vmem:[#allocation2 + $0x38] sm:$0xff]
  %v41 = vld [vmem:[#allocation2 + $0x40] sm:$0xff]
  %v42 = vld [vmem:[#allocation2 + $0x48] sm:$0xff]
  %v43 = vld [vmem:[#allocation2 + $0x50] sm:$0xff]
  %v44 = vld [vmem:[#allocation2 + $0x58] sm:$0xff]
  %v45 = vld [vmem:[#allocation2 + $0x60] sm:$0xff]
  %v46 = vld [vmem:[%s0] sm:$0xff]
  %v47 = vld [vmem:[%s0 + $0x8] sm:$0xff]
  %v48 = vld [vmem:[%s0 + $0x10] sm:$0xff]
  %v49 = vld [vmem:[%s0 + $0x18] sm:$0xf]
  %v50 = vld [vmem:[%s0 + $0x1c] sm:$0xff]
  %v51 = vld [vmem:[%s0 + $0x24] sm:$0xff]
  %v52 = vld [vmem:[%s0 + $0x2c] sm:$0xff]
  %v53 = vld [vmem:[%s0 + $0x34] sm:$0xf]
  %v54 = vld [vmem:[%s0 + $0x38] sm:$0xff]
  %v55 = vld [vmem:[%s0 + $0x40] sm:$0xff]
  %v56 = vld [vmem:[%s0 + $0x48] sm:$0xff]
  %v57 = vld [vmem:[%s0 + $0x50] sm:$0xf]
  %v58 = vld [vmem:[%s0 + $0x54] sm:$0xff]
  %v59 = vld [vmem:[%s0 + $0x5c] sm:$0xff]
  %v60 = vld [vmem:[%s0 + $0x64] sm:$0xff]
  %v61 = vld [vmem:[%s0 + $0x6c] sm:$0xf]
  %v62 = vld [vmem:[%s0 + $0x70] sm:$0xff]
  %v63 = vld [vmem:[%s0 + $0x78] sm:$0xff]
  %v64 = vld [vmem:[%s0 + $0x80] sm:$0xff]
  %v65 = vld [vmem:[%s0 + $0x88] sm:$0xf]
  %v66 = vld [vmem:[%s0 + $0x8c] sm:$0xff]
  %v67 = vld [vmem:[%s0 + $0x94] sm:$0xff]
  %v68 = vld [vmem:[%s0 + $0x9c] sm:$0xff]
  %v69 = vld [vmem:[%s0 + $0xa4] sm:$0xf]
  %v70 = vld [vmem:[%s0 + $0xa8] sm:$0xff]
  %v71 = vld [vmem:[%s0 + $0xb0] sm:$0xff]
  %v72 = vld [vmem:[%s0 + $0xb8] sm:$0xff]
  %v73 = vld [vmem:[%s0 + $0xc0] sm:$0xf]
  %v74 = vld [vmem:[%s0 + $0xc4] sm:$0xff]
  %v75 = vld [vmem:[%s0 + $0xcc] sm:$0xff]
  %v76 = vld [vmem:[%s0 + $0xd4] sm:$0xff]
  %v77 = vld [vmem:[%s0 + $0xdc] sm:$0xf]
  %v78 = vld [vmem:[%s0 + $0xe0] sm:$0xff]
  %v79 = vld [vmem:[%s0 + $0xe8] sm:$0xff]
  %v80 = vld [vmem:[%s0 + $0xf0] sm:$0xff]
  %v81 = vld [vmem:[%s0 + $0xf8] sm:$0xf]
  %v82 = vld [vmem:[%s0 + $0xfc] sm:$0xff]
  %v83 = vld [vmem:[%s0 + $0x104] sm:$0xff]
  %v84 = vld [vmem:[%s0 + $0x10c] sm:$0xff]
  %v85 = vld [vmem:[%s0 + $0x114] sm:$0xf]
  %v86 = vld [vmem:[%s0 + $0x118] sm:$0xff]
  %v87 = vld [vmem:[%s0 + $0x120] sm:$0xff]
  %v88 = vld [vmem:[%s0 + $0x128] sm:$0xff]
  %v89 = vld [vmem:[%s0 + $0x130] sm:$0xf]
  %v90 = vld [vmem:[%s0 + $0x134] sm:$0xff]
  %v91 = vld [vmem:[%s0 + $0x13c] sm:$0xff]
  %v92 = vld [vmem:[%s0 + $0x144] sm:$0xff]
  %v93 = vld [vmem:[%s0 + $0x14c] sm:$0xf]
  %v94 = vld [vmem:[%s0 + $0x150] sm:$0xff]
  %v95 = vld [vmem:[%s0 + $0x158] sm:$0xff]
  %v96 = vld [vmem:[%s0 + $0x160] sm:$0xff]
  %v97 = vld [vmem:[%s0 + $0x168] sm:$0xf]
  %v98 = vld [vmem:[%s1] sm:$0xf]
  %v99 = vld [vmem:[%s1 + $0x4] sm:$0xf]
  %v100 = vld [vmem:[%s1 + $0x8] sm:$0xf]
  %v101 = vld [vmem:[%s1 + $0xc] sm:$0xf]
  %v102 = vld [vmem:[%s1 + $0x10] sm:$0xf]
  %v103 = vld [vmem:[%s1 + $0x14] sm:$0xf]
  %v104 = vld [vmem:[%s1 + $0x18] sm:$0xf]
  %v105 = vld [vmem:[%s1 + $0x1c] sm:$0xf]
  %v106 = vld [vmem:[%s1 + $0x20] sm:$0xf]
  %v107 = vld [vmem:[%s1 + $0x24] sm:$0xf]
  %v108 = vld [vmem:[%s1 + $0x28] sm:$0xf]
  %v109 = vld [vmem:[%s1 + $0x2c] sm:$0xf]
  %v110 = vld [vmem:[%s1 + $0x30] sm:$0xf]
  %v111 = vld [vmem:[%s1 + $0x34] sm:$0xf]
  %v112 = vld [vmem:[%s1 + $0x38] sm:$0xf]
  %v113 = vld [vmem:[%s1 + $0x3c] sm:$0xf]
  %v114 = vld [vmem:[%s1 + $0x40] sm:$0xf]
  %v115 = vld [vmem:[%s1 + $0x44] sm:$0xf]
  %v116 = vld [vmem:[%s1 + $0x48] sm:$0xf]
  %v117 = vld [vmem:[%s1 + $0x4c] sm:$0xf]
  %v118 = vld [vmem:[%s1 + $0x50] sm:$0xf]
  %v119 = vld [vmem:[%s1 + $0x54] sm:$0xf]
  %v120 = vld [vmem:[%s1 + $0x58] sm:$0xf]
  %v121 = vld [vmem:[%s1 + $0x5c] sm:$0xf]
  %v122 = vld [vmem:[%s1 + $0x60] sm:$0xf]
  %v123 = vld [vmem:[%s1 + $0x64] sm:$0xf]
  %v124 = vld [vmem:[%s1 + $0x68] sm:$0xf]
  %v125 = vld [vmem:[%s1 + $0x6c] sm:$0xf]
  %v126 = vld [vmem:[%s1 + $0x70] sm:$0xf]
  %v127 = vld [vmem:[%s1 + $0x74] sm:$0xf]
  %v128 = vld [vmem:[%s1 + $0x78] sm:$0xf]
  %v129 = vld [vmem:[%s1 + $0x7c] sm:$0xf]
  %v130 = vld [vmem:[%s1 + $0x80] sm:$0xf]
  %v131 = vld [vmem:[%s1 + $0x84] sm:$0xf]
  %v132 = vld [vmem:[%s1 + $0x88] sm:$0xf]
  %v133 = vld [vmem:[%s1 + $0x8c] sm:$0xf]
  %v134 = vld [vmem:[%s1 + $0x90] sm:$0xf]
  %v135 = vld [vmem:[%s1 + $0x94] sm:$0xf]
  %v136 = vld [vmem:[%s1 + $0x98] sm:$0xf]
  %v137 = vld [vmem:[%s1 + $0x9c] sm:$0xf]
  %v138 = vld [vmem:[%s1 + $0xa0] sm:$0xf]
  %v139 = vld [vmem:[%s1 + $0xa4] sm:$0xf]
  %v140 = vld [vmem:[%s1 + $0xa8] sm:$0xf]
  %v141 = vld [vmem:[%s1 + $0xac] sm:$0xf]
  %v142 = vld [vmem:[%s1 + $0xb0] sm:$0xf]
  %v143 = vld [vmem:[%s1 + $0xb4] sm:$0xf]
  %v144 = vld [vmem:[%s1 + $0xb8] sm:$0xf]
  %v145 = vld [vmem:[%s1 + $0xbc] sm:$0xf]
  %v146 = vld [vmem:[%s1 + $0xc0] sm:$0xf]
  %v147 = vld [vmem:[%s1 + $0xc4] sm:$0xf]
  %v148 = vld [vmem:[%s1 + $0xc8] sm:$0xf]
  %v149 = vld [vmem:[%s1 + $0xcc] sm:$0xf]
  %v150 = vld [vmem:[%s1 + $0xd0] sm:$0xf]
  %v151 = vld [vmem:[%s1 + $0xd4] sm:$0xf]
  %v152 = vld [vmem:[%s1 + $0xd8] sm:$0xf]
  %v153 = vld [vmem:[%s1 + $0xdc] sm:$0xf]
  %v154 = vld [vmem:[%s1 + $0xe0] sm:$0xf]
  %v155 = vld [vmem:[%s1 + $0xe4] sm:$0xf]
  %v156 = vld [vmem:[%s1 + $0xe8] sm:$0xf]
  %v157 = vld [vmem:[%s1 + $0xec] sm:$0xf]
  %v158 = vld [vmem:[%s1 + $0xf0] sm:$0xf]
  %v159 = vld [vmem:[%s1 + $0xf4] sm:$0xf]
  %v160 = vld [vmem:[%s1 + $0xf8] sm:$0xf]
  %v161 = vld [vmem:[%s1 + $0xfc] sm:$0xf]
  %v162 = vld [vmem:[%s1 + $0x100] sm:$0xf]
  %v163 = vld [vmem:[%s1 + $0x104] sm:$0xf]
  %v164 = vld [vmem:[%s1 + $0x108] sm:$0xf]
  %v165 = vld [vmem:[%s1 + $0x10c] sm:$0xf]
  %v166 = vld [vmem:[%s1 + $0x110] sm:$0xf]
  %v167 = vld [vmem:[%s1 + $0x114] sm:$0xf]
  %v168 = vld [vmem:[%s1 + $0x118] sm:$0xf]
  %v169 = vld [vmem:[%s1 + $0x11c] sm:$0xf]
  %v170 = vld [vmem:[%s1 + $0x120] sm:$0xf]
  %v171 = vld [vmem:[%s1 + $0x124] sm:$0xf]
  %v172 = vld [vmem:[%s1 + $0x128] sm:$0xf]
  %v173 = vld [vmem:[%s1 + $0x12c] sm:$0xf]
  %v174 = vld [vmem:[%s1 + $0x130] sm:$0xf]
  %v175 = vld [vmem:[%s1 + $0x134] sm:$0xf]
  %v176 = vld [vmem:[%s1 + $0x138] sm:$0xf]
  %v177 = vld [vmem:[%s1 + $0x13c] sm:$0xf]
  %v178 = vld [vmem:[%s1 + $0x140] sm:$0xf]
  %v179 = vld [vmem:[%s1 + $0x144] sm:$0xf]
  %v180 = vld [vmem:[%s1 + $0x148] sm:$0xf]
  %v181 = vld [vmem:[%s1 + $0x14c] sm:$0xf]
  %v182 = vld [vmem:[%s1 + $0x150] sm:$0xf]
  %v183 = vld [vmem:[%s1 + $0x154] sm:$0xf]
  %v184 = vld [vmem:[%s1 + $0x158] sm:$0xf]
  %v185 = vld [vmem:[%s1 + $0x15c] sm:$0xf]
  %v186 = vld [vmem:[%s1 + $0x160] sm:$0xf]
  %v187 = vld [vmem:[%s1 + $0x164] sm:$0xf]
  %v188 = vld [vmem:[%s1 + $0x168] sm:$0xf]
  %v189 = vld [vmem:[%s1 + $0x16c] sm:$0xf]
  %v190 = vld [vmem:[%s1 + $0x170] sm:$0xf]
  %v191 = vld [vmem:[%s1 + $0x174] sm:$0xf]
  %v192 = vld [vmem:[%s1 + $0x178] sm:$0xf]
  %v193 = vld [vmem:[%s1 + $0x17c] sm:$0xf]
  %v194 = vld [vmem:[%s1 + $0x180] sm:$0xf]
  %v195 = vld [vmem:[%s1 + $0x184] sm:$0xf]
  %v196 = vld [vmem:[%s1 + $0x188] sm:$0xf]
  %v197 = vld [vmem:[%s1 + $0x18c] sm:$0xf]
  %v198 = vld [vmem:[%s1 + $0x190] sm:$0xf]
  %v199 = vld [vmem:[%s1 + $0x194] sm:$0xf]
  %v200 = vld [vmem:[%s1 + $0x198] sm:$0xf]
  %v201 = vld [vmem:[%s1 + $0x19c] sm:$0xf]
  %v202 = vld [vmem:[%s1 + $0x1a0] sm:$0xf]
  %v203 = vld [vmem:[%s1 + $0x1a4] sm:$0xf]
  %v204 = vld [vmem:[%s1 + $0x1a8] sm:$0xf]
  %v205 = vld [vmem:[%s1 + $0x1ac] sm:$0xf]
  %v258 = vunpack.c.l.b16 %v46
  %v259 = vunpack.c.h.b16 %v46
  %v260 = vunpack.c.l.b16 %v47
  %v261 = vunpack.c.h.b16 %v47
  %v262 = vunpack.c.l.b16 %v48
  %v263 = vunpack.c.h.b16 %v48
  %v264 = vunpack.c.l.b16 %v49
  %v265 = vunpack.c.l.b16 %v50
  %v266 = vunpack.c.h.b16 %v50
  %v267 = vunpack.c.l.b16 %v51
  %v268 = vunpack.c.h.b16 %v51
  %v269 = vunpack.c.l.b16 %v52
  %v270 = vunpack.c.h.b16 %v52
  %v271 = vunpack.c.l.b16 %v53
  %v272 = vunpack.c.l.b16 %v54
  %v273 = vunpack.c.h.b16 %v54
  %v274 = vunpack.c.l.b16 %v55
  %v275 = vunpack.c.h.b16 %v55
  %v276 = vunpack.c.l.b16 %v56
  %v277 = vunpack.c.h.b16 %v56
  %v278 = vunpack.c.l.b16 %v57
  %v279 = vunpack.c.l.b16 %v58
  %v280 = vunpack.c.h.b16 %v58
  %v281 = vunpack.c.l.b16 %v59
  %v282 = vunpack.c.h.b16 %v59
  %v283 = vunpack.c.l.b16 %v60
  %v284 = vunpack.c.h.b16 %v60
  %v285 = vunpack.c.l.b16 %v61
  %v286 = vunpack.c.l.b16 %v62
  %v287 = vunpack.c.h.b16 %v62
  %v288 = vunpack.c.l.b16 %v63
  %v289 = vunpack.c.h.b16 %v63
  %v290 = vunpack.c.l.b16 %v64
  %v291 = vunpack.c.h.b16 %v64
  %v292 = vunpack.c.l.b16 %v65
  %v293 = vunpack.c.l.b16 %v66
  %v294 = vunpack.c.h.b16 %v66
  %v295 = vunpack.c.l.b16 %v67
  %v296 = vunpack.c.h.b16 %v67
  %v297 = vunpack.c.l.b16 %v68
  %v298 = vunpack.c.h.b16 %v68
  %v299 = vunpack.c.l.b16 %v69
  %v300 = vunpack.c.l.b16 %v70
  %v301 = vunpack.c.h.b16 %v70
  %v302 = vunpack.c.l.b16 %v71
  %v303 = vunpack.c.h.b16 %v71
  %v304 = vunpack.c.l.b16 %v72
  %v305 = vunpack.c.h.b16 %v72
  %v306 = vunpack.c.l.b16 %v73
  %v307 = vunpack.c.l.b16 %v74
  %v308 = vunpack.c.h.b16 %v74
  %v309 = vunpack.c.l.b16 %v75
  %v310 = vunpack.c.h.b16 %v75
  %v311 = vunpack.c.l.b16 %v76
  %v312 = vunpack.c.h.b16 %v76
  %v313 = vunpack.c.l.b16 %v77
  %v314 = vunpack.c.l.b16 %v78
  %v315 = vunpack.c.h.b16 %v78
  %v316 = vunpack.c.l.b16 %v79
  %v317 = vunpack.c.h.b16 %v79
  %v318 = vunpack.c.l.b16 %v80
  %v319 = vunpack.c.h.b16 %v80
  %v320 = vunpack.c.l.b16 %v81
  %v321 = vunpack.c.l.b16 %v82
  %v322 = vunpack.c.h.b16 %v82
  %v323 = vunpack.c.l.b16 %v83
  %v324 = vunpack.c.h.b16 %v83
  %v325 = vunpack.c.l.b16 %v84
  %v326 = vunpack.c.h.b16 %v84
  %v327 = vunpack.c.l.b16 %v85
  %v328 = vunpack.c.l.b16 %v86
  %v329 = vunpack.c.h.b16 %v86
  %v330 = vunpack.c.l.b16 %v87
  %v331 = vunpack.c.h.b16 %v87
  %v332 = vunpack.c.l.b16 %v88
  %v333 = vunpack.c.h.b16 %v88
  %v334 = vunpack.c.l.b16 %v89
  %v335 = vunpack.c.l.b16 %v90
  %v336 = vunpack.c.h.b16 %v90
  %v337 = vunpack.c.l.b16 %v91
  %v338 = vunpack.c.h.b16 %v91
  %v339 = vunpack.c.l.b16 %v92
  %v340 = vunpack.c.h.b16 %v92
  %v341 = vunpack.c.l.b16 %v93
  %v342 = vunpack.c.l.b16 %v94
  %v343 = vunpack.c.h.b16 %v94
  %v344 = vunpack.c.l.b16 %v95
  %v345 = vunpack.c.h.b16 %v95
  %v346 = vunpack.c.l.b16 %v96
  %v347 = vunpack.c.h.b16 %v96
  %v348 = vunpack.c.l.b16 %v97
  %v349 = vpack.c.b16 %v265, %v258
  %v350 = vpack.c.b16 %v266, %v259
  %v351 = vpack.c.b16 %v267, %v260
  %v352 = vpack.c.b16 %v268, %v261
  %v353 = vpack.c.b16 %v269, %v262
  %v354 = vpack.c.b16 %v270, %v263
  %v355 = vpack.c.b16 %v271, %v264
  %v356 = vpack.c.b16 %v279, %v272
  %v357 = vpack.c.b16 %v280, %v273
  %v358 = vpack.c.b16 %v281, %v274
  %v359 = vpack.c.b16 %v282, %v275
  %v360 = vpack.c.b16 %v283, %v276
  %v361 = vpack.c.b16 %v284, %v277
  %v362 = vpack.c.b16 %v285, %v278
  %v363 = vpack.c.b16 %v293, %v286
  %v364 = vpack.c.b16 %v294, %v287
  %v365 = vpack.c.b16 %v295, %v288
  %v366 = vpack.c.b16 %v296, %v289
  %v367 = vpack.c.b16 %v297, %v290
  %v368 = vpack.c.b16 %v298, %v291
  %v369 = vpack.c.b16 %v299, %v292
  %v370 = vpack.c.b16 %v307, %v300
  %v371 = vpack.c.b16 %v308, %v301
  %v372 = vpack.c.b16 %v309, %v302
  %v373 = vpack.c.b16 %v310, %v303
  %v374 = vpack.c.b16 %v311, %v304
  %v375 = vpack.c.b16 %v312, %v305
  %v376 = vpack.c.b16 %v313, %v306
  %v377 = vpack.c.b16 %v321, %v314
  %v378 = vpack.c.b16 %v322, %v315
  %v379 = vpack.c.b16 %v323, %v316
  %v380 = vpack.c.b16 %v324, %v317
  %v381 = vpack.c.b16 %v325, %v318
  %v382 = vpack.c.b16 %v326, %v319
  %v383 = vpack.c.b16 %v327, %v320
  %v384 = vpack.c.b16 %v335, %v328
  %v385 = vpack.c.b16 %v336, %v329
  %v386 = vpack.c.b16 %v337, %v330
  %v387 = vpack.c.b16 %v338, %v331
  %v388 = vpack.c.b16 %v339, %v332
  %v389 = vpack.c.b16 %v340, %v333
  %v390 = vpack.c.b16 %v341, %v334
  %v391 = vpack.c.b16 %v342, %v342
  %v392 = vpack.c.b16 %v343, %v343
  %v393 = vpack.c.b16 %v344, %v344
  %v394 = vpack.c.b16 %v345, %v345
  %v395 = vpack.c.b16 %v346, %v346
  %v396 = vpack.c.b16 %v347, %v347
  %v397 = vpack.c.b16 %v348, %v348
  %v548 = vunpack.c.l.b16 %v98
  %v549 = vunpack.c.l.b16 %v99
  %v550 = vunpack.c.l.b16 %v100
  %v551 = vunpack.c.l.b16 %v101
  %v552 = vunpack.c.l.b16 %v102
  %v553 = vunpack.c.l.b16 %v103
  %v554 = vunpack.c.l.b16 %v104
  %v555 = vunpack.c.l.b16 %v105
  %v556 = vunpack.c.l.b16 %v106
  %v557 = vunpack.c.l.b16 %v107
  %v558 = vunpack.c.l.b16 %v108
  %v559 = vunpack.c.l.b16 %v109
  %v560 = vunpack.c.l.b16 %v110
  %v561 = vunpack.c.l.b16 %v111
  %v562 = vunpack.c.l.b16 %v112
  %v563 = vunpack.c.l.b16 %v113
  %v564 = vunpack.c.l.b16 %v114
  %v565 = vunpack.c.l.b16 %v115
  %v566 = vunpack.c.l.b16 %v116
  %v567 = vunpack.c.l.b16 %v117
  %v568 = vunpack.c.l.b16 %v118
  %v569 = vunpack.c.l.b16 %v119
  %v570 = vunpack.c.l.b16 %v120
  %v571 = vunpack.c.l.b16 %v121
  %v572 = vunpack.c.l.b16 %v122
  %v573 = vunpack.c.l.b16 %v123
  %v574 = vunpack.c.l.b16 %v124
  %v575 = vunpack.c.l.b16 %v125
  %v576 = vunpack.c.l.b16 %v126
  %v577 = vunpack.c.l.b16 %v127
  %v578 = vunpack.c.l.b16 %v128
  %v579 = vunpack.c.l.b16 %v129
  %v580 = vunpack.c.l.b16 %v130
  %v581 = vunpack.c.l.b16 %v131
  %v582 = vunpack.c.l.b16 %v132
  %v583 = vunpack.c.l.b16 %v133
  %v584 = vunpack.c.l.b16 %v134
  %v585 = vunpack.c.l.b16 %v135
  %v586 = vunpack.c.l.b16 %v136
  %v587 = vunpack.c.l.b16 %v137
  %v588 = vunpack.c.l.b16 %v138
  %v589 = vunpack.c.l.b16 %v139
  %v590 = vunpack.c.l.b16 %v140
  %v591 = vunpack.c.l.b16 %v141
  %v592 = vunpack.c.l.b16 %v142
  %v593 = vunpack.c.l.b16 %v143
  %v594 = vunpack.c.l.b16 %v144
  %v595 = vunpack.c.l.b16 %v145
  %v596 = vunpack.c.l.b16 %v146
  %v597 = vunpack.c.l.b16 %v147
  %v598 = vunpack.c.l.b16 %v148
  %v599 = vunpack.c.l.b16 %v149
  %v600 = vunpack.c.l.b16 %v150
  %v601 = vunpack.c.l.b16 %v151
  %v602 = vunpack.c.l.b16 %v152
  %v603 = vunpack.c.l.b16 %v153
  %v604 = vunpack.c.l.b16 %v154
  %v605 = vunpack.c.l.b16 %v155
  %v606 = vunpack.c.l.b16 %v156
  %v607 = vunpack.c.l.b16 %v157
  %v608 = vunpack.c.l.b16 %v158
  %v609 = vunpack.c.l.b16 %v159
  %v610 = vunpack.c.l.b16 %v160
  %v611 = vunpack.c.l.b16 %v161
  %v612 = vunpack.c.l.b16 %v162
  %v613 = vunpack.c.l.b16 %v163
  %v614 = vunpack.c.l.b16 %v164
  %v615 = vunpack.c.l.b16 %v165
  %v616 = vunpack.c.l.b16 %v166
  %v617 = vunpack.c.l.b16 %v167
  %v618 = vunpack.c.l.b16 %v168
  %v619 = vunpack.c.l.b16 %v169
  %v620 = vunpack.c.l.b16 %v170
  %v621 = vunpack.c.l.b16 %v171
  %v622 = vunpack.c.l.b16 %v172
  %v623 = vunpack.c.l.b16 %v173
  %v624 = vunpack.c.l.b16 %v174
  %v625 = vunpack.c.l.b16 %v175
  %v626 = vunpack.c.l.b16 %v176
  %v627 = vunpack.c.l.b16 %v177
  %v628 = vunpack.c.l.b16 %v178
  %v629 = vunpack.c.l.b16 %v179
  %v630 = vunpack.c.l.b16 %v180
  %v631 = vunpack.c.l.b16 %v181
  %v632 = vunpack.c.l.b16 %v182
  %v633 = vunpack.c.l.b16 %v183
  %v634 = vunpack.c.l.b16 %v184
  %v635 = vunpack.c.l.b16 %v185
  %v636 = vunpack.c.l.b16 %v186
  %v637 = vunpack.c.l.b16 %v187
  %v638 = vunpack.c.l.b16 %v188
  %v639 = vunpack.c.l.b16 %v189
  %v640 = vunpack.c.l.b16 %v190
  %v641 = vunpack.c.l.b16 %v191
  %v642 = vunpack.c.l.b16 %v192
  %v643 = vunpack.c.l.b16 %v193
  %v644 = vunpack.c.l.b16 %v194
  %v645 = vunpack.c.l.b16 %v195
  %v646 = vunpack.c.l.b16 %v196
  %v647 = vunpack.c.l.b16 %v197
  %v648 = vunpack.c.l.b16 %v198
  %v649 = vunpack.c.l.b16 %v199
  %v650 = vunpack.c.l.b16 %v200
  %v651 = vunpack.c.l.b16 %v201
  %v652 = vunpack.c.l.b16 %v202
  %v653 = vunpack.c.l.b16 %v203
  %v654 = vunpack.c.l.b16 %v204
  %v655 = vunpack.c.l.b16 %v205
  %v656 = vpack.c.b16 %v549, %v548
  %v657 = vpack.c.b16 %v551, %v550
  %v658 = vpack.c.b16 %v553, %v552
  %v659 = vpack.c.b16 %v555, %v554
  %v660 = vpack.c.b16 %v557, %v556
  %v661 = vpack.c.b16 %v559, %v558
  %v662 = vpack.c.b16 %v561, %v560
  %v663 = vpack.c.b16 %v563, %v562
  %v664 = vpack.c.b16 %v565, %v564
  %v665 = vpack.c.b16 %v567, %v566
  %v666 = vpack.c.b16 %v569, %v568
  %v667 = vpack.c.b16 %v571, %v570
  %v668 = vpack.c.b16 %v573, %v572
  %v669 = vpack.c.b16 %v575, %v574
  %v670 = vpack.c.b16 %v577, %v576
  %v671 = vpack.c.b16 %v579, %v578
  %v672 = vpack.c.b16 %v581, %v580
  %v673 = vpack.c.b16 %v583, %v582
  %v674 = vpack.c.b16 %v585, %v584
  %v675 = vpack.c.b16 %v587, %v586
  %v676 = vpack.c.b16 %v589, %v588
  %v677 = vpack.c.b16 %v591, %v590
  %v678 = vpack.c.b16 %v593, %v592
  %v679 = vpack.c.b16 %v595, %v594
  %v680 = vpack.c.b16 %v597, %v596
  %v681 = vpack.c.b16 %v599, %v598
  %v682 = vpack.c.b16 %v601, %v600
  %v683 = vpack.c.b16 %v603, %v602
  %v684 = vpack.c.b16 %v605, %v604
  %v685 = vpack.c.b16 %v607, %v606
  %v686 = vpack.c.b16 %v609, %v608
  %v687 = vpack.c.b16 %v611, %v610
  %v688 = vpack.c.b16 %v613, %v612
  %v689 = vpack.c.b16 %v615, %v614
  %v690 = vpack.c.b16 %v617, %v616
  %v691 = vpack.c.b16 %v619, %v618
  %v692 = vpack.c.b16 %v621, %v620
  %v693 = vpack.c.b16 %v623, %v622
  %v694 = vpack.c.b16 %v625, %v624
  %v695 = vpack.c.b16 %v627, %v626
  %v696 = vpack.c.b16 %v629, %v628
  %v697 = vpack.c.b16 %v631, %v630
  %v698 = vpack.c.b16 %v633, %v632
  %v699 = vpack.c.b16 %v635, %v634
  %v700 = vpack.c.b16 %v637, %v636
  %v701 = vpack.c.b16 %v639, %v638
  %v702 = vpack.c.b16 %v641, %v640
  %v703 = vpack.c.b16 %v643, %v642
  %v704 = vpack.c.b16 %v645, %v644
  %v705 = vpack.c.b16 %v647, %v646
  %v706 = vpack.c.b16 %v649, %v648
  %v707 = vpack.c.b16 %v651, %v650
  %v708 = vpack.c.b16 %v653, %v652
  %v709 = vpack.c.b16 %v655, %v654
  %vm764 = vcmask 785408
  %v766 = vsel %vm764, %v355, 0
  %v769 = vsel %vm764, %v362, 0
  %v772 = vsel %vm764, %v369, 0
  %v775 = vsel %vm764, %v376, 0
  %v778 = vsel %vm764, %v383, 0
  %v781 = vsel %vm764, %v390, 0
  %v784 = vsel %vm764, %v397, 0
  %786 = vmatpush.bf16.msra.mxu0 %v663
  %787 = vmatpush.bf16.msra.mxu0 %v662
  %788 = vmatpush.bf16.msra.mxu0 %v661
  %789 = vmatpush.bf16.msra.mxu0 %v660
  %790 = vmatpush.bf16.msra.mxu0 %v659
  %791 = vmatpush.bf16.msra.mxu0 %v658
  %792 = vmatpush.bf16.msra.mxu0 %v657
  %793 = vmatpush.bf16.msra.mxu0 %v656
  %794 = vmatmul.bf16.gmra.mxu0 %v349
  %v795 = vpop.f32.mrf.mxu0
  %v796 = vadd.f32 0.0, %v795
  %v797 = vpop.f32.mrf.mxu0
  %v798 = vadd.f32 0.0, %v797
  %799 = vmatmul.bf16.gmra.mxu0 %v356
  %v800 = vpop.f32.mrf.mxu0
  %v801 = vadd.f32 0.0, %v800
  %v802 = vpop.f32.mrf.mxu0
  %v803 = vadd.f32 0.0, %v802
  %804 = vmatmul.bf16.gmra.mxu0 %v363
  %v805 = vpop.f32.mrf.mxu0
  %v806 = vadd.f32 0.0, %v805
  %v807 = vpop.f32.mrf.mxu0
  %v808 = vadd.f32 0.0, %v807
  %809 = vmatmul.bf16.gmra.mxu0 %v370
  %v810 = vpop.f32.mrf.mxu0
  %v811 = vadd.f32 0.0, %v810
  %v812 = vpop.f32.mrf.mxu0
  %v813 = vadd.f32 0.0, %v812
  %814 = vmatmul.bf16.gmra.mxu0 %v377
  %v815 = vpop.f32.mrf.mxu0
  %v816 = vadd.f32 0.0, %v815
  %v817 = vpop.f32.mrf.mxu0
  %v818 = vadd.f32 0.0, %v817
  %819 = vmatmul.bf16.gmra.mxu0 %v384
  %v820 = vpop.f32.mrf.mxu0
  %v821 = vadd.f32 0.0, %v820
  %v822 = vpop.f32.mrf.mxu0
  %v823 = vadd.f32 0.0, %v822
  %824 = vmatmul.bf16.gmra.mxu0 %v391
  %v825 = vpop.f32.mrf.mxu0
  %v826 = vadd.f32 0.0, %v825
  %v827 = vpop.f32.mrf.mxu0
  %828 = vdwg.mxu0
  %829 = vmatpush.bf16.msra.mxu0 %v671
  %830 = vmatpush.bf16.msra.mxu0 %v670
  %831 = vmatpush.bf16.msra.mxu0 %v669
  %832 = vmatpush.bf16.msra.mxu0 %v668
  %833 = vmatpush.bf16.msra.mxu0 %v667
  %834 = vmatpush.bf16.msra.mxu0 %v666
  %835 = vmatpush.bf16.msra.mxu0 %v665
  %836 = vmatpush.bf16.msra.mxu0 %v664
  %837 = vmatmul.bf16.gmra.mxu0 %v350
  %v838 = vpop.f32.mrf.mxu0
  %v839 = vadd.f32 %v796, %v838
  %v840 = vpop.f32.mrf.mxu0
  %v841 = vadd.f32 %v798, %v840
  %842 = vmatmul.bf16.gmra.mxu0 %v357
  %v843 = vpop.f32.mrf.mxu0
  %v844 = vadd.f32 %v801, %v843
  %v845 = vpop.f32.mrf.mxu0
  %v846 = vadd.f32 %v803, %v845
  %847 = vmatmul.bf16.gmra.mxu0 %v364
  %v848 = vpop.f32.mrf.mxu0
  %v849 = vadd.f32 %v806, %v848
  %v850 = vpop.f32.mrf.mxu0
  %v851 = vadd.f32 %v808, %v850
  %852 = vmatmul.bf16.gmra.mxu0 %v371
  %v853 = vpop.f32.mrf.mxu0
  %v854 = vadd.f32 %v811, %v853
  %v855 = vpop.f32.mrf.mxu0
  %v856 = vadd.f32 %v813, %v855
  %857 = vmatmul.bf16.gmra.mxu0 %v378
  %v858 = vpop.f32.mrf.mxu0
  %v859 = vadd.f32 %v816, %v858
  %v860 = vpop.f32.mrf.mxu0
  %v861 = vadd.f32 %v818, %v860
  %862 = vmatmul.bf16.gmra.mxu0 %v385
  %v863 = vpop.f32.mrf.mxu0
  %v864 = vadd.f32 %v821, %v863
  %v865 = vpop.f32.mrf.mxu0
  %v866 = vadd.f32 %v823, %v865
  %867 = vmatmul.bf16.gmra.mxu0 %v392
  %v868 = vpop.f32.mrf.mxu0
  %v869 = vadd.f32 %v826, %v868
  %v870 = vpop.f32.mrf.mxu0
  %871 = vdwg.mxu0
  %872 = vmatpush.bf16.msra.mxu0 %v679
  %873 = vmatpush.bf16.msra.mxu0 %v678
  %874 = vmatpush.bf16.msra.mxu0 %v677
  %875 = vmatpush.bf16.msra.mxu0 %v676
  %876 = vmatpush.bf16.msra.mxu0 %v675
  %877 = vmatpush.bf16.msra.mxu0 %v674
  %878 = vmatpush.bf16.msra.mxu0 %v673
  %879 = vmatpush.bf16.msra.mxu0 %v672
  %880 = vmatmul.bf16.gmra.mxu0 %v351
  %v881 = vpop.f32.mrf.mxu0
  %v882 = vadd.f32 %v839, %v881
  %v883 = vpop.f32.mrf.mxu0
  %v884 = vadd.f32 %v841, %v883
  %885 = vmatmul.bf16.gmra.mxu0 %v358
  %v886 = vpop.f32.mrf.mxu0
  %v887 = vadd.f32 %v844, %v886
  %v888 = vpop.f32.mrf.mxu0
  %v889 = vadd.f32 %v846, %v888
  %890 = vmatmul.bf16.gmra.mxu0 %v365
  %v891 = vpop.f32.mrf.mxu0
  %v892 = vadd.f32 %v849, %v891
  %v893 = vpop.f32.mrf.mxu0
  %v894 = vadd.f32 %v851, %v893
  %895 = vmatmul.bf16.gmra.mxu0 %v372
  %v896 = vpop.f32.mrf.mxu0
  %v897 = vadd.f32 %v854, %v896
  %v898 = vpop.f32.mrf.mxu0
  %v899 = vadd.f32 %v856, %v898
  %900 = vmatmul.bf16.gmra.mxu0 %v379
  %v901 = vpop.f32.mrf.mxu0
  %v902 = vadd.f32 %v859, %v901
  %v903 = vpop.f32.mrf.mxu0
  %v904 = vadd.f32 %v861, %v903
  %905 = vmatmul.bf16.gmra.mxu0 %v386
  %v906 = vpop.f32.mrf.mxu0
  %v907 = vadd.f32 %v864, %v906
  %v908 = vpop.f32.mrf.mxu0
  %v909 = vadd.f32 %v866, %v908
  %910 = vmatmul.bf16.gmra.mxu0 %v393
  %v911 = vpop.f32.mrf.mxu0
  %v912 = vadd.f32 %v869, %v911
  %v913 = vpop.f32.mrf.mxu0
  %914 = vdwg.mxu0
  %915 = vmatpush.bf16.msra.mxu0 %v687
  %916 = vmatpush.bf16.msra.mxu0 %v686
  %917 = vmatpush.bf16.msra.mxu0 %v685
  %918 = vmatpush.bf16.msra.mxu0 %v684
  %919 = vmatpush.bf16.msra.mxu0 %v683
  %920 = vmatpush.bf16.msra.mxu0 %v682
  %921 = vmatpush.bf16.msra.mxu0 %v681
  %922 = vmatpush.bf16.msra.mxu0 %v680
  %923 = vmatmul.bf16.gmra.mxu0 %v352
  %v924 = vpop.f32.mrf.mxu0
  %v925 = vadd.f32 %v882, %v924
  %v926 = vpop.f32.mrf.mxu0
  %v927 = vadd.f32 %v884, %v926
  %928 = vmatmul.bf16.gmra.mxu0 %v359
  %v929 = vpop.f32.mrf.mxu0
  %v930 = vadd.f32 %v887, %v929
  %v931 = vpop.f32.mrf.mxu0
  %v932 = vadd.f32 %v889, %v931
  %933 = vmatmul.bf16.gmra.mxu0 %v366
  %v934 = vpop.f32.mrf.mxu0
  %v935 = vadd.f32 %v892, %v934
  %v936 = vpop.f32.mrf.mxu0
  %v937 = vadd.f32 %v894, %v936
  %938 = vmatmul.bf16.gmra.mxu0 %v373
  %v939 = vpop.f32.mrf.mxu0
  %v940 = vadd.f32 %v897, %v939
  %v941 = vpop.f32.mrf.mxu0
  %v942 = vadd.f32 %v899, %v941
  %943 = vmatmul.bf16.gmra.mxu0 %v380
  %v944 = vpop.f32.mrf.mxu0
  %v945 = vadd.f32 %v902, %v944
  %v946 = vpop.f32.mrf.mxu0
  %v947 = vadd.f32 %v904, %v946
  %948 = vmatmul.bf16.gmra.mxu0 %v387
  %v949 = vpop.f32.mrf.mxu0
  %v950 = vadd.f32 %v907, %v949
  %v951 = vpop.f32.mrf.mxu0
  %v952 = vadd.f32 %v909, %v951
  %953 = vmatmul.bf16.gmra.mxu0 %v394
  %v954 = vpop.f32.mrf.mxu0
  %v955 = vadd.f32 %v912, %v954
  %v956 = vpop.f32.mrf.mxu0
  %957 = vdwg.mxu0
  %958 = vmatpush.bf16.msra.mxu0 %v695
  %959 = vmatpush.bf16.msra.mxu0 %v694
  %960 = vmatpush.bf16.msra.mxu0 %v693
  %961 = vmatpush.bf16.msra.mxu0 %v692
  %962 = vmatpush.bf16.msra.mxu0 %v691
  %963 = vmatpush.bf16.msra.mxu0 %v690
  %964 = vmatpush.bf16.msra.mxu0 %v689
  %965 = vmatpush.bf16.msra.mxu0 %v688
  %966 = vmatmul.bf16.gmra.mxu0 %v353
  %v967 = vpop.f32.mrf.mxu0
  %v968 = vadd.f32 %v925, %v967
  %v969 = vpop.f32.mrf.mxu0
  %v970 = vadd.f32 %v927, %v969
  %971 = vmatmul.bf16.gmra.mxu0 %v360
  %v972 = vpop.f32.mrf.mxu0
  %v973 = vadd.f32 %v930, %v972
  %v974 = vpop.f32.mrf.mxu0
  %v975 = vadd.f32 %v932, %v974
  %976 = vmatmul.bf16.gmra.mxu0 %v367
  %v977 = vpop.f32.mrf.mxu0
  %v978 = vadd.f32 %v935, %v977
  %v979 = vpop.f32.mrf.mxu0
  %v980 = vadd.f32 %v937, %v979
  %981 = vmatmul.bf16.gmra.mxu0 %v374
  %v982 = vpop.f32.mrf.mxu0
  %v983 = vadd.f32 %v940, %v982
  %v984 = vpop.f32.mrf.mxu0
  %v985 = vadd.f32 %v942, %v984
  %986 = vmatmul.bf16.gmra.mxu0 %v381
  %v987 = vpop.f32.mrf.mxu0
  %v988 = vadd.f32 %v945, %v987
  %v989 = vpop.f32.mrf.mxu0
  %v990 = vadd.f32 %v947, %v989
  %991 = vmatmul.bf16.gmra.mxu0 %v388
  %v992 = vpop.f32.mrf.mxu0
  %v993 = vadd.f32 %v950, %v992
  %v994 = vpop.f32.mrf.mxu0
  %v995 = vadd.f32 %v952, %v994
  %996 = vmatmul.bf16.gmra.mxu0 %v395
  %v997 = vpop.f32.mrf.mxu0
  %v998 = vadd.f32 %v955, %v997
  %v999 = vpop.f32.mrf.mxu0
  %1000 = vdwg.mxu0
  %1001 = vmatpush.bf16.msra.mxu0 %v703
  %1002 = vmatpush.bf16.msra.mxu0 %v702
  %1003 = vmatpush.bf16.msra.mxu0 %v701
  %1004 = vmatpush.bf16.msra.mxu0 %v700
  %1005 = vmatpush.bf16.msra.mxu0 %v699
  %1006 = vmatpush.bf16.msra.mxu0 %v698
  %1007 = vmatpush.bf16.msra.mxu0 %v697
  %1008 = vmatpush.bf16.msra.mxu0 %v696
  %1009 = vmatmul.bf16.gmra.mxu0 %v354
  %v1010 = vpop.f32.mrf.mxu0
  %v1011 = vadd.f32 %v968, %v1010
  %v1012 = vpop.f32.mrf.mxu0
  %v1013 = vadd.f32 %v970, %v1012
  %1014 = vmatmul.bf16.gmra.mxu0 %v361
  %v1015 = vpop.f32.mrf.mxu0
  %v1016 = vadd.f32 %v973, %v1015
  %v1017 = vpop.f32.mrf.mxu0
  %v1018 = vadd.f32 %v975, %v1017
  %1019 = vmatmul.bf16.gmra.mxu0 %v368
  %v1020 = vpop.f32.mrf.mxu0
  %v1021 = vadd.f32 %v978, %v1020
  %v1022 = vpop.f32.mrf.mxu0
  %v1023 = vadd.f32 %v980, %v1022
  %1024 = vmatmul.bf16.gmra.mxu0 %v375
  %v1025 = vpop.f32.mrf.mxu0
  %v1026 = vadd.f32 %v983, %v1025
  %v1027 = vpop.f32.mrf.mxu0
  %v1028 = vadd.f32 %v985, %v1027
  %1029 = vmatmul.bf16.gmra.mxu0 %v382
  %v1030 = vpop.f32.mrf.mxu0
  %v1031 = vadd.f32 %v988, %v1030
  %v1032 = vpop.f32.mrf.mxu0
  %v1033 = vadd.f32 %v990, %v1032
  %1034 = vmatmul.bf16.gmra.mxu0 %v389
  %v1035 = vpop.f32.mrf.mxu0
  %v1036 = vadd.f32 %v993, %v1035
  %v1037 = vpop.f32.mrf.mxu0
  %v1038 = vadd.f32 %v995, %v1037
  %1039 = vmatmul.bf16.gmra.mxu0 %v396
  %v1040 = vpop.f32.mrf.mxu0
  %v1041 = vadd.f32 %v998, %v1040
  %v1042 = vpop.f32.mrf.mxu0
  %1043 = vdwg.mxu0
  %1044 = vmatpush.bf16.msra.mxu0 0
  %1045 = vmatpush.bf16.msra.mxu0 0
  %1046 = vmatpush.bf16.msra.mxu0 %v709
  %1047 = vmatpush.bf16.msra.mxu0 %v708
  %1048 = vmatpush.bf16.msra.mxu0 %v707
  %1049 = vmatpush.bf16.msra.mxu0 %v706
  %1050 = vmatpush.bf16.msra.mxu0 %v705
  %1051 = vmatpush.bf16.msra.mxu0 %v704
  %1052 = vmatmul.bf16.gmra.mxu0 %v766
  %v1053 = vpop.f32.mrf.mxu0
  %v1054 = vadd.f32 %v1011, %v1053
  %v1055 = vpop.f32.mrf.mxu0
  %v1056 = vadd.f32 %v1013, %v1055
  %1057 = vmatmul.bf16.gmra.mxu0 %v769
  %v1058 = vpop.f32.mrf.mxu0
  %v1059 = vadd.f32 %v1016, %v1058
  %v1060 = vpop.f32.mrf.mxu0
  %v1061 = vadd.f32 %v1018, %v1060
  %1062 = vmatmul.bf16.gmra.mxu0 %v772
  %v1063 = vpop.f32.mrf.mxu0
  %v1064 = vadd.f32 %v1021, %v1063
  %v1065 = vpop.f32.mrf.mxu0
  %v1066 = vadd.f32 %v1023, %v1065
  %1067 = vmatmul.bf16.gmra.mxu0 %v775
  %v1068 = vpop.f32.mrf.mxu0
  %v1069 = vadd.f32 %v1026, %v1068
  %v1070 = vpop.f32.mrf.mxu0
  %v1071 = vadd.f32 %v1028, %v1070
  %1072 = vmatmul.bf16.gmra.mxu0 %v778
  %v1073 = vpop.f32.mrf.mxu0
  %v1074 = vadd.f32 %v1031, %v1073
  %v1075 = vpop.f32.mrf.mxu0
  %v1076 = vadd.f32 %v1033, %v1075
  %1077 = vmatmul.bf16.gmra.mxu0 %v781
  %v1078 = vpop.f32.mrf.mxu0
  %v1079 = vadd.f32 %v1036, %v1078
  %v1080 = vpop.f32.mrf.mxu0
  %v1081 = vadd.f32 %v1038, %v1080
  %1082 = vmatmul.bf16.gmra.mxu0 %v784
  %v1083 = vpop.f32.mrf.mxu0
  %v1084 = vadd.f32 %v1041, %v1083
  %v1085 = vpop.f32.mrf.mxu0
  %1086 = vdwg.mxu0
  %v1087 = vadd.f32 %v33, %v1054
  %v1088 = vadd.f32 %v34, %v1056
  %v1089 = vadd.f32 %v35, %v1059
  %v1090 = vadd.f32 %v36, %v1061
  %v1091 = vadd.f32 %v37, %v1064
  %v1092 = vadd.f32 %v38, %v1066
  %v1093 = vadd.f32 %v39, %v1069
  %v1094 = vadd.f32 %v40, %v1071
  %v1095 = vadd.f32 %v41, %v1074
  %v1096 = vadd.f32 %v42, %v1076
  %v1097 = vadd.f32 %v43, %v1079
  %v1098 = vadd.f32 %v44, %v1081
  %v1099 = vadd.f32 %v45, %v1084
  %1100 = vst.msk [vmem:[#allocation2] sm:$0xff] %vm764, %v1087
  %1101 = vst.msk [vmem:[#allocation2 + $0x8] sm:$0xff] %vm764, %v1088
  %1102 = vst.msk [vmem:[#allocation2 + $0x10] sm:$0xff] %vm764, %v1089
  %1103 = vst.msk [vmem:[#allocation2 + $0x18] sm:$0xff] %vm764, %v1090
  %1104 = vst.msk [vmem:[#allocation2 + $0x20] sm:$0xff] %vm764, %v1091
  %1105 = vst.msk [vmem:[#allocation2 + $0x28] sm:$0xff] %vm764, %v1092
  %1106 = vst.msk [vmem:[#allocation2 + $0x30] sm:$0xff] %vm764, %v1093
  %1107 = vst.msk [vmem:[#allocation2 + $0x38] sm:$0xff] %vm764, %v1094
  %1108 = vst.msk [vmem:[#allocation2 + $0x40] sm:$0xff] %vm764, %v1095
  %1109 = vst.msk [vmem:[#allocation2 + $0x48] sm:$0xff] %vm764, %v1096
  %1110 = vst.msk [vmem:[#allocation2 + $0x50] sm:$0xff] %vm764, %v1097
  %1111 = vst.msk [vmem:[#allocation2 + $0x58] sm:$0xff] %vm764, %v1098
  %1112 = vst.msk [vmem:[#allocation2 + $0x60] sm:$0xff] %vm764, %v1099
  // Predicated region
  $region18: #{_lambda_.8} parent=0 // pred_check
    %p1113 = pneg %p15
  $region19: #{_lambda_.8} parent=0 // pred_check_branch
    %1115 = sbr.rel (%p1113) target = $region21
  $region20: #{_lambda_.8} parent=0 // pred_region
    %v1116 = vld [vmem:[#allocation2] sm:$0xff]
    %v1117 = vld [vmem:[#allocation2 + $0x8] sm:$0xff]
    %v1118 = vld [vmem:[#allocation2 + $0x10] sm:$0xff]
    %v1119 = vld [vmem:[#allocation2 + $0x18] sm:$0xff]
    %v1120 = vld [vmem:[#allocation2 + $0x20] sm:$0xff]
    %v1121 = vld [vmem:[#allocation2 + $0x28] sm:$0xff]
    %v1122 = vld [vmem:[#allocation2 + $0x30] sm:$0xff]
    %v1123 = vld [vmem:[#allocation2 + $0x38] sm:$0xff]
    %v1124 = vld [vmem:[#allocation2 + $0x40] sm:$0xff]
    %v1125 = vld [vmem:[#allocation2 + $0x48] sm:$0xff]
    %v1126 = vld [vmem:[#allocation2 + $0x50] sm:$0xff]
    %v1127 = vld [vmem:[#allocation2 + $0x58] sm:$0xff]
    %v1128 = vld [vmem:[#allocation2 + $0x60] sm:$0xff]
    %v1129 = vld [vmem:[%s2] sm:$0x1]
    %v1131 = vperm.slane %v1129, 0
    %v1133 = vadd.f32 %v1116, %v1131
    %v1134 = vadd.f32 %v1117, %v1131
    %v1135 = vadd.f32 %v1118, %v1131
    %v1136 = vadd.f32 %v1119, %v1131
    %v1137 = vadd.f32 %v1120, %v1131
    %v1138 = vadd.f32 %v1121, %v1131
    %v1139 = vadd.f32 %v1122, %v1131
    %v1140 = vadd.f32 %v1123, %v1131
    %v1141 = vadd.f32 %v1124, %v1131
    %v1142 = vadd.f32 %v1125, %v1131
    %v1143 = vadd.f32 %v1126, %v1131
    %v1144 = vadd.f32 %v1127, %v1131
    %v1145 = vadd.f32 %v1128, %v1131
    %v1146 = vmax.f32 %v1133, 0.0
    %v1147 = vmax.f32 %v1134, 0.0
    %v1148 = vmax.f32 %v1135, 0.0
    %v1149 = vmax.f32 %v1136, 0.0
    %v1150 = vmax.f32 %v1137, 0.0
    %v1151 = vmax.f32 %v1138, 0.0
    %v1152 = vmax.f32 %v1139, 0.0
    %v1153 = vmax.f32 %v1140, 0.0
    %v1154 = vmax.f32 %v1141, 0.0
    %v1155 = vmax.f32 %v1142, 0.0
    %v1156 = vmax.f32 %v1143, 0.0
    %v1157 = vmax.f32 %v1144, 0.0
    %v1158 = vmax.f32 %v1145, 0.0
    %1159 = vst.msk [vmem:[%s3] sm:$0xff] %vm764, %v1146
    %1160 = vst.msk [vmem:[%s3 + $0x8] sm:$0xff] %vm764, %v1147
    %1161 = vst.msk [vmem:[%s3 + $0x10] sm:$0xff] %vm764, %v1148
    %1162 = vst.msk [vmem:[%s3 + $0x18] sm:$0xff] %vm764, %v1149
    %1163 = vst.msk [vmem:[%s3 + $0x20] sm:$0xff] %vm764, %v1150
    %1164 = vst.msk [vmem:[%s3 + $0x28] sm:$0xff] %vm764, %v1151
    %1165 = vst.msk [vmem:[%s3 + $0x30] sm:$0xff] %vm764, %v1152
    %1166 = vst.msk [vmem:[%s3 + $0x38] sm:$0xff] %vm764, %v1153
    %1167 = vst.msk [vmem:[%s3 + $0x40] sm:$0xff] %vm764, %v1154
    %1168 = vst.msk [vmem:[%s3 + $0x48] sm:$0xff] %vm764, %v1155
    %1169 = vst.msk [vmem:[%s3 + $0x50] sm:$0xff] %vm764, %v1156
    %1170 = vst.msk [vmem:[%s3 + $0x58] sm:$0xff] %vm764, %v1157
    %1171 = vst.msk [vmem:[%s3 + $0x60] sm:$0xff] %vm764, %v1158
  $region21: #{_lambda_.8} parent=0 // pred_fallthru
    _
  // Predicated region
  $region22: #{_lambda_.8} parent=0 // pred_check
    _
  $region23: #{_lambda_.8} parent=0 // pred_check_branch
    %1173 = sbr.rel (0) target = $region25
  $region24: #{_lambda_.8} parent=0 // pred_region
    _
  $region25: #{_lambda_.8} parent=0 // pred_fallthru
    _
  // Predicated region
  $region26: #{_lambda_.8} parent=0 // pred_check
    _
  $region27: #{_lambda_.8} parent=0 // pred_check_branch
    %1175 = sbr.rel (0) target = $region29
  $region28: #{_lambda_.8} parent=0 // pred_region
    _
  $region29: #{_lambda_.8} parent=0 // pred_fallthru
    _

// kernel: _lambda_.9
$region0: #{_lambda_.9}
  #allocation0 [shape = 'u32[]', space=smem, size = 0x4, offset = 0x4, fixed_abs, tag = 'smem constant byte address 0x4 - core index']
  #allocation1 [shape = 'u32[72,128]{1,0:T(1,128)}', space=vmem, size = 0x9000, scoped, tag = 'internal scratch']
  %s0 = inlined_call_operand.vmem [shape: f32[9,104,32], index: 0, kind: input, shape index: {}]
  %s1 = inlined_call_operand.vmem [shape: f32[104,32], index: 1, kind: output, shape index: {}]
  %s2 = sld [smem:[#allocation0]]
  $region14: #{_lambda_.9} parent=0
    _
  %s4 = ssub.s32 1, %s2
  %s5 = scalar_select 0, %s4, %s2
  // Predicated region
  $region2: #{_lambda_.9} parent=0 // pred_check
    _
  $region3: #{_lambda_.9} parent=0 // pred_check_branch
    %7 = sbr.rel (0) target = $region5
  $region4: #{_lambda_.9} parent=0 // pred_region
    _
  $region5: #{_lambda_.9} parent=0 // pred_fallthru
    _
  %v8 = vld [vmem:[%s0] sm:$0xff]
  %v9 = vld [vmem:[%s0 + $0x8] sm:$0xff]
  %v10 = vld [vmem:[%s0 + $0x10] sm:$0xff]
  %v11 = vld [vmem:[%s0 + $0x18] sm:$0xff]
  %v12 = vld [vmem:[%s0 + $0x20] sm:$0xff]
  %v13 = vld [vmem:[%s0 + $0x28] sm:$0xff]
  %v14 = vld [vmem:[%s0 + $0x30] sm:$0xff]
  %v15 = vld [vmem:[%s0 + $0x38] sm:$0xff]
  %v16 = vld [vmem:[%s0 + $0x40] sm:$0xff]
  %v17 = vld [vmem:[%s0 + $0x48] sm:$0xff]
  %v18 = vld [vmem:[%s0 + $0x50] sm:$0xff]
  %v19 = vld [vmem:[%s0 + $0x58] sm:$0xff]
  %v20 = vld [vmem:[%s0 + $0x60] sm:$0xff]
  %s21 = scalar_lea.vmem %s0, 104
  %v22 = vld [vmem:[%s21] sm:$0xff]
  %v23 = vld [vmem:[%s21 + $0x8] sm:$0xff]
  %v24 = vld [vmem:[%s21 + $0x10] sm:$0xff]
  %v25 = vld [vmem:[%s21 + $0x18] sm:$0xff]
  %v26 = vld [vmem:[%s21 + $0x20] sm:$0xff]
  %v27 = vld [vmem:[%s21 + $0x28] sm:$0xff]
  %v28 = vld [vmem:[%s21 + $0x30] sm:$0xff]
  %v29 = vld [vmem:[%s21 + $0x38] sm:$0xff]
  %v30 = vld [vmem:[%s21 + $0x40] sm:$0xff]
  %v31 = vld [vmem:[%s21 + $0x48] sm:$0xff]
  %v32 = vld [vmem:[%s21 + $0x50] sm:$0xff]
  %v33 = vld [vmem:[%s21 + $0x58] sm:$0xff]
  %v34 = vld [vmem:[%s21 + $0x60] sm:$0xff]
  %v35 = vmax.f32 %v8, %v22
  %v36 = vmax.f32 %v9, %v23
  %v37 = vmax.f32 %v10, %v24
  %v38 = vmax.f32 %v11, %v25
  %v39 = vmax.f32 %v12, %v26
  %v40 = vmax.f32 %v13, %v27
  %v41 = vmax.f32 %v14, %v28
  %v42 = vmax.f32 %v15, %v29
  %v43 = vmax.f32 %v16, %v30
  %v44 = vmax.f32 %v17, %v31
  %v45 = vmax.f32 %v18, %v32
  %v46 = vmax.f32 %v19, %v33
  %v47 = vmax.f32 %v20, %v34
  %s48 = scalar_lea.vmem %s0, 208
  %v49 = vld [vmem:[%s48] sm:$0xff]
  %v50 = vld [vmem:[%s48 + $0x8] sm:$0xff]
  %v51 = vld [vmem:[%s48 + $0x10] sm:$0xff]
  %v52 = vld [vmem:[%s48 + $0x18] sm:$0xff]
  %v53 = vld [vmem:[%s48 + $0x20] sm:$0xff]
  %v54 = vld [vmem:[%s48 + $0x28] sm:$0xff]
  %v55 = vld [vmem:[%s48 + $0x30] sm:$0xff]
  %v56 = vld [vmem:[%s48 + $0x38] sm:$0xff]
  %v57 = vld [vmem:[%s48 + $0x40] sm:$0xff]
  %v58 = vld [vmem:[%s48 + $0x48] sm:$0xff]
  %v59 = vld [vmem:[%s48 + $0x50] sm:$0xff]
  %v60 = vld [vmem:[%s48 + $0x58] sm:$0xff]
  %v61 = vld [vmem:[%s48 + $0x60] sm:$0xff]
  %v62 = vmax.f32 %v35, %v49
  %v63 = vmax.f32 %v36, %v50
  %v64 = vmax.f32 %v37, %v51
  %v65 = vmax.f32 %v38, %v52
  %v66 = vmax.f32 %v39, %v53
  %v67 = vmax.f32 %v40, %v54
  %v68 = vmax.f32 %v41, %v55
  %v69 = vmax.f32 %v42, %v56
  %v70 = vmax.f32 %v43, %v57
  %v71 = vmax.f32 %v44, %v58
  %v72 = vmax.f32 %v45, %v59
  %v73 = vmax.f32 %v46, %v60
  %v74 = vmax.f32 %v47, %v61
  %s75 = scalar_lea.vmem %s0, 312
  %v76 = vld [vmem:[%s75] sm:$0xff]
  %v77 = vld [vmem:[%s75 + $0x8] sm:$0xff]
  %v78 = vld [vmem:[%s75 + $0x10] sm:$0xff]
  %v79 = vld [vmem:[%s75 + $0x18] sm:$0xff]
  %v80 = vld [vmem:[%s75 + $0x20] sm:$0xff]
  %v81 = vld [vmem:[%s75 + $0x28] sm:$0xff]
  %v82 = vld [vmem:[%s75 + $0x30] sm:$0xff]
  %v83 = vld [vmem:[%s75 + $0x38] sm:$0xff]
  %v84 = vld [vmem:[%s75 + $0x40] sm:$0xff]
  %v85 = vld [vmem:[%s75 + $0x48] sm:$0xff]
  %v86 = vld [vmem:[%s75 + $0x50] sm:$0xff]
  %v87 = vld [vmem:[%s75 + $0x58] sm:$0xff]
  %v88 = vld [vmem:[%s75 + $0x60] sm:$0xff]
  %v89 = vmax.f32 %v62, %v76
  %v90 = vmax.f32 %v63, %v77
  %v91 = vmax.f32 %v64, %v78
  %v92 = vmax.f32 %v65, %v79
  %v93 = vmax.f32 %v66, %v80
  %v94 = vmax.f32 %v67, %v81
  %v95 = vmax.f32 %v68, %v82
  %v96 = vmax.f32 %v69, %v83
  %v97 = vmax.f32 %v70, %v84
  %v98 = vmax.f32 %v71, %v85
  %v99 = vmax.f32 %v72, %v86
  %v100 = vmax.f32 %v73, %v87
  %v101 = vmax.f32 %v74, %v88
  %s102 = scalar_lea.vmem %s0, 416
  %v103 = vld [vmem:[%s102] sm:$0xff]
  %v104 = vld [vmem:[%s102 + $0x8] sm:$0xff]
  %v105 = vld [vmem:[%s102 + $0x10] sm:$0xff]
  %v106 = vld [vmem:[%s102 + $0x18] sm:$0xff]
  %v107 = vld [vmem:[%s102 + $0x20] sm:$0xff]
  %v108 = vld [vmem:[%s102 + $0x28] sm:$0xff]
  %v109 = vld [vmem:[%s102 + $0x30] sm:$0xff]
  %v110 = vld [vmem:[%s102 + $0x38] sm:$0xff]
  %v111 = vld [vmem:[%s102 + $0x40] sm:$0xff]
  %v112 = vld [vmem:[%s102 + $0x48] sm:$0xff]
  %v113 = vld [vmem:[%s102 + $0x50] sm:$0xff]
  %v114 = vld [vmem:[%s102 + $0x58] sm:$0xff]
  %v115 = vld [vmem:[%s102 + $0x60] sm:$0xff]
  %v116 = vmax.f32 %v89, %v103
  %v117 = vmax.f32 %v90, %v104
  %v118 = vmax.f32 %v91, %v105
  %v119 = vmax.f32 %v92, %v106
  %v120 = vmax.f32 %v93, %v107
  %v121 = vmax.f32 %v94, %v108
  %v122 = vmax.f32 %v95, %v109
  %v123 = vmax.f32 %v96, %v110
  %v124 = vmax.f32 %v97, %v111
  %v125 = vmax.f32 %v98, %v112
  %v126 = vmax.f32 %v99, %v113
  %v127 = vmax.f32 %v100, %v114
  %v128 = vmax.f32 %v101, %v115
  %s129 = scalar_lea.vmem %s0, 520
  %v130 = vld [vmem:[%s129] sm:$0xff]
  %v131 = vld [vmem:[%s129 + $0x8] sm:$0xff]
  %v132 = vld [vmem:[%s129 + $0x10] sm:$0xff]
  %v133 = vld [vmem:[%s129 + $0x18] sm:$0xff]
  %v134 = vld [vmem:[%s129 + $0x20] sm:$0xff]
  %v135 = vld [vmem:[%s129 + $0x28] sm:$0xff]
  %v136 = vld [vmem:[%s129 + $0x30] sm:$0xff]
  %v137 = vld [vmem:[%s129 + $0x38] sm:$0xff]
  %v138 = vld [vmem:[%s129 + $0x40] sm:$0xff]
  %v139 = vld [vmem:[%s129 + $0x48] sm:$0xff]
  %v140 = vld [vmem:[%s129 + $0x50] sm:$0xff]
  %v141 = vld [vmem:[%s129 + $0x58] sm:$0xff]
  %v142 = vld [vmem:[%s129 + $0x60] sm:$0xff]
  %v143 = vmax.f32 %v116, %v130
  %v144 = vmax.f32 %v117, %v131
  %v145 = vmax.f32 %v118, %v132
  %v146 = vmax.f32 %v119, %v133
  %v147 = vmax.f32 %v120, %v134
  %v148 = vmax.f32 %v121, %v135
  %v149 = vmax.f32 %v122, %v136
  %v150 = vmax.f32 %v123, %v137
  %v151 = vmax.f32 %v124, %v138
  %v152 = vmax.f32 %v125, %v139
  %v153 = vmax.f32 %v126, %v140
  %v154 = vmax.f32 %v127, %v141
  %v155 = vmax.f32 %v128, %v142
  %s156 = scalar_lea.vmem %s0, 624
  %v157 = vld [vmem:[%s156] sm:$0xff]
  %v158 = vld [vmem:[%s156 + $0x8] sm:$0xff]
  %v159 = vld [vmem:[%s156 + $0x10] sm:$0xff]
  %v160 = vld [vmem:[%s156 + $0x18] sm:$0xff]
  %v161 = vld [vmem:[%s156 + $0x20] sm:$0xff]
  %v162 = vld [vmem:[%s156 + $0x28] sm:$0xff]
  %v163 = vld [vmem:[%s156 + $0x30] sm:$0xff]
  %v164 = vld [vmem:[%s156 + $0x38] sm:$0xff]
  %v165 = vld [vmem:[%s156 + $0x40] sm:$0xff]
  %v166 = vld [vmem:[%s156 + $0x48] sm:$0xff]
  %v167 = vld [vmem:[%s156 + $0x50] sm:$0xff]
  %v168 = vld [vmem:[%s156 + $0x58] sm:$0xff]
  %v169 = vld [vmem:[%s156 + $0x60] sm:$0xff]
  %v170 = vmax.f32 %v143, %v157
  %v171 = vmax.f32 %v144, %v158
  %v172 = vmax.f32 %v145, %v159
  %v173 = vmax.f32 %v146, %v160
  %v174 = vmax.f32 %v147, %v161
  %v175 = vmax.f32 %v148, %v162
  %v176 = vmax.f32 %v149, %v163
  %v177 = vmax.f32 %v150, %v164
  %v178 = vmax.f32 %v151, %v165
  %v179 = vmax.f32 %v152, %v166
  %v180 = vmax.f32 %v153, %v167
  %v181 = vmax.f32 %v154, %v168
  %v182 = vmax.f32 %v155, %v169
  %s183 = scalar_lea.vmem %s0, 728
  %v184 = vld [vmem:[%s183] sm:$0xff]
  %v185 = vld [vmem:[%s183 + $0x8] sm:$0xff]
  %v186 = vld [vmem:[%s183 + $0x10] sm:$0xff]
  %v187 = vld [vmem:[%s183 + $0x18] sm:$0xff]
  %v188 = vld [vmem:[%s183 + $0x20] sm:$0xff]
  %v189 = vld [vmem:[%s183 + $0x28] sm:$0xff]
  %v190 = vld [vmem:[%s183 + $0x30] sm:$0xff]
  %v191 = vld [vmem:[%s183 + $0x38] sm:$0xff]
  %v192 = vld [vmem:[%s183 + $0x40] sm:$0xff]
  %v193 = vld [vmem:[%s183 + $0x48] sm:$0xff]
  %v194 = vld [vmem:[%s183 + $0x50] sm:$0xff]
  %v195 = vld [vmem:[%s183 + $0x58] sm:$0xff]
  %v196 = vld [vmem:[%s183 + $0x60] sm:$0xff]
  %v197 = vmax.f32 %v170, %v184
  %v198 = vmax.f32 %v171, %v185
  %v199 = vmax.f32 %v172, %v186
  %v200 = vmax.f32 %v173, %v187
  %v201 = vmax.f32 %v174, %v188
  %v202 = vmax.f32 %v175, %v189
  %v203 = vmax.f32 %v176, %v190
  %v204 = vmax.f32 %v177, %v191
  %v205 = vmax.f32 %v178, %v192
  %v206 = vmax.f32 %v179, %v193
  %v207 = vmax.f32 %v180, %v194
  %v208 = vmax.f32 %v181, %v195
  %v209 = vmax.f32 %v182, %v196
  %s210 = scalar_lea.vmem %s0, 832
  %v211 = vld [vmem:[%s210] sm:$0xff]
  %v212 = vld [vmem:[%s210 + $0x8] sm:$0xff]
  %v213 = vld [vmem:[%s210 + $0x10] sm:$0xff]
  %v214 = vld [vmem:[%s210 + $0x18] sm:$0xff]
  %v215 = vld [vmem:[%s210 + $0x20] sm:$0xff]
  %v216 = vld [vmem:[%s210 + $0x28] sm:$0xff]
  %v217 = vld [vmem:[%s210 + $0x30] sm:$0xff]
  %v218 = vld [vmem:[%s210 + $0x38] sm:$0xff]
  %v219 = vld [vmem:[%s210 + $0x40] sm:$0xff]
  %v220 = vld [vmem:[%s210 + $0x48] sm:$0xff]
  %v221 = vld [vmem:[%s210 + $0x50] sm:$0xff]
  %v222 = vld [vmem:[%s210 + $0x58] sm:$0xff]
  %v223 = vld [vmem:[%s210 + $0x60] sm:$0xff]
  %v224 = vmax.f32 %v197, %v211
  %v225 = vmax.f32 %v198, %v212
  %v226 = vmax.f32 %v199, %v213
  %v227 = vmax.f32 %v200, %v214
  %v228 = vmax.f32 %v201, %v215
  %v229 = vmax.f32 %v202, %v216
  %v230 = vmax.f32 %v203, %v217
  %v231 = vmax.f32 %v204, %v218
  %v232 = vmax.f32 %v205, %v219
  %v233 = vmax.f32 %v206, %v220
  %v234 = vmax.f32 %v207, %v221
  %v235 = vmax.f32 %v208, %v222
  %v236 = vmax.f32 %v209, %v223
  %vm237 = vcmask 261120
  %238 = vst.msk [vmem:[%s1] sm:$0xff] %vm237, %v224
  %239 = vst.msk [vmem:[%s1 + $0x8] sm:$0xff] %vm237, %v225
  %240 = vst.msk [vmem:[%s1 + $0x10] sm:$0xff] %vm237, %v226
  %241 = vst.msk [vmem:[%s1 + $0x18] sm:$0xff] %vm237, %v227
  %242 = vst.msk [vmem:[%s1 + $0x20] sm:$0xff] %vm237, %v228
  %243 = vst.msk [vmem:[%s1 + $0x28] sm:$0xff] %vm237, %v229
  %244 = vst.msk [vmem:[%s1 + $0x30] sm:$0xff] %vm237, %v230
  %245 = vst.msk [vmem:[%s1 + $0x38] sm:$0xff] %vm237, %v231
  %246 = vst.msk [vmem:[%s1 + $0x40] sm:$0xff] %vm237, %v232
  %247 = vst.msk [vmem:[%s1 + $0x48] sm:$0xff] %vm237, %v233
  %248 = vst.msk [vmem:[%s1 + $0x50] sm:$0xff] %vm237, %v234
  %249 = vst.msk [vmem:[%s1 + $0x58] sm:$0xff] %vm237, %v235
  %250 = vst.msk [vmem:[%s1 + $0x60] sm:$0xff] %vm237, %v236
  // Predicated region
  $region6: #{_lambda_.9} parent=0 // pred_check
    _
  $region7: #{_lambda_.9} parent=0 // pred_check_branch
    %252 = sbr.rel (0) target = $region9
  $region8: #{_lambda_.9} parent=0 // pred_region
    _
  $region9: #{_lambda_.9} parent=0 // pred_fallthru
    _
  // Predicated region
  $region10: #{_lambda_.9} parent=0 // pred_check
    _
  $region11: #{_lambda_.9} parent=0 // pred_check_branch
    %254 = sbr.rel (0) target = $region13
  $region12: #{_lambda_.9} parent=0 // pred_region
    _
  $region13: #{_lambda_.9} parent=0 // pred_fallthru
    _

// kernel: _lambda_.5
$region0: #{_lambda_.5}
  #allocation0 [shape = 'u32[]', space=smem, size = 0x4, offset = 0x4, fixed_abs, tag = 'smem constant byte address 0x4 - core index']
  #allocation1 [shape = 'u32[72,128]{1,0:T(1,128)}', space=vmem, size = 0x9000, scoped, tag = 'internal scratch']
  #allocation2 [shape = 'f32[104,384]{1,0:T(8,128)}', space=vmem, size = 0x27000, scoped, tag = 'scratch operand']
  %s0 = inlined_call_operand.vmem [shape: bf16[104,288], index: 0, kind: input, shape index: {}]
  %s1 = inlined_call_operand.vmem [shape: bf16[288,384], index: 1, kind: input, shape index: {}]
  %s2 = inlined_call_operand.vmem [shape: f32[1,384], index: 2, kind: input, shape index: {}]
  %s3 = inlined_call_operand.vmem [shape: f32[104,384], index: 3, kind: output, shape index: {}]
  %s4 = sld [smem:[#allocation0]]
  $region30: #{_lambda_.5} parent=0
    _
  %s6 = ssub.s32 1, %s4
  %s7 = scalar_select 0, %s6, %s4
  // Predicated region
  $region2: #{_lambda_.5} parent=0 // pred_check
    _
  $region3: #{_lambda_.5} parent=0 // pred_check_branch
    %9 = sbr.rel (0) target = $region5
  $region4: #{_lambda_.5} parent=0 // pred_region
    _
  $region5: #{_lambda_.5} parent=0 // pred_fallthru
    _
  // Predicated region
  $region6: #{_lambda_.5} parent=0 // pred_check
    _
  $region7: #{_lambda_.5} parent=0 // pred_check_branch
    %11 = sbr.rel (0) target = $region9
  $region8: #{_lambda_.5} parent=0 // pred_region
    _
  $region9: #{_lambda_.5} parent=0 // pred_fallthru
    _
  // Predicated region
  $region10: #{_lambda_.5} parent=0 // pred_check
    _
  $region11: #{_lambda_.5} parent=0 // pred_check_branch
    %13 = sbr.rel (0) target = $region13
  $region12: #{_lambda_.5} parent=0 // pred_region
    _
  $region13: #{_lambda_.5} parent=0 // pred_fallthru
    _
  %p15 = scmp.eq.s32.totalorder 0, 0
  // Predicated region
  $region14: #{_lambda_.5} parent=0 // pred_check
    %p16 = pneg %p15
  $region15: #{_lambda_.5} parent=0 // pred_check_branch
    %18 = sbr.rel (%p16) target = $region17
  $region16: #{_lambda_.5} parent=0 // pred_region
    %19 = vst [vmem:[#allocation2] sm:$0xff] 0.0
    %20 = vst [vmem:[#allocation2 + $0x8] sm:$0xff] 0.0
    %21 = vst [vmem:[#allocation2 + $0x10] sm:$0xff] 0.0
    %22 = vst [vmem:[#allocation2 + $0x18] sm:$0xff] 0.0
    %23 = vst [vmem:[#allocation2 + $0x20] sm:$0xff] 0.0
    %24 = vst [vmem:[#allocation2 + $0x28] sm:$0xff] 0.0
    %25 = vst [vmem:[#allocation2 + $0x30] sm:$0xff] 0.0
    %26 = vst [vmem:[#allocation2 + $0x38] sm:$0xff] 0.0
    %27 = vst [vmem:[#allocation2 + $0x40] sm:$0xff] 0.0
    %28 = vst [vmem:[#allocation2 + $0x48] sm:$0xff] 0.0
    %29 = vst [vmem:[#allocation2 + $0x50] sm:$0xff] 0.0
    %30 = vst [vmem:[#allocation2 + $0x58] sm:$0xff] 0.0
    %31 = vst [vmem:[#allocation2 + $0x60] sm:$0xff] 0.0
    %32 = vst [vmem:[#allocation2 + $0x68] sm:$0xff] 0.0
    %33 = vst [vmem:[#allocation2 + $0x70] sm:$0xff] 0.0
    %34 = vst [vmem:[#allocation2 + $0x78] sm:$0xff] 0.0
    %35 = vst [vmem:[#allocation2 + $0x80] sm:$0xff] 0.0
    %36 = vst [vmem:[#allocation2 + $0x88] sm:$0xff] 0.0
    %37 = vst [vmem:[#allocation2 + $0x90] sm:$0xff] 0.0
    %38 = vst [vmem:[#allocation2 + $0x98] sm:$0xff] 0.0
    %39 = vst [vmem:[#allocation2 + $0xa0] sm:$0xff] 0.0
    %40 = vst [vmem:[#allocation2 + $0xa8] sm:$0xff] 0.0
    %41 = vst [vmem:[#allocation2 + $0xb0] sm:$0xff] 0.0
    %42 = vst [vmem:[#allocation2 + $0xb8] sm:$0xff] 0.0
    %43 = vst [vmem:[#allocation2 + $0xc0] sm:$0xff] 0.0
    %44 = vst [vmem:[#allocation2 + $0xc8] sm:$0xff] 0.0
    %45 = vst [vmem:[#allocation2 + $0xd0] sm:$0xff] 0.0
    %46 = vst [vmem:[#allocation2 + $0xd8] sm:$0xff] 0.0
    %47 = vst [vmem:[#allocation2 + $0xe0] sm:$0xff] 0.0
    %48 = vst [vmem:[#allocation2 + $0xe8] sm:$0xff] 0.0
    %49 = vst [vmem:[#allocation2 + $0xf0] sm:$0xff] 0.0
    %50 = vst [vmem:[#allocation2 + $0xf8] sm:$0xff] 0.0
    %51 = vst [vmem:[#allocation2 + $0x100] sm:$0xff] 0.0
    %52 = vst [vmem:[#allocation2 + $0x108] sm:$0xff] 0.0
    %53 = vst [vmem:[#allocation2 + $0x110] sm:$0xff] 0.0
    %54 = vst [vmem:[#allocation2 + $0x118] sm:$0xff] 0.0
    %55 = vst [vmem:[#allocation2 + $0x120] sm:$0xff] 0.0
    %56 = vst [vmem:[#allocation2 + $0x128] sm:$0xff] 0.0
    %57 = vst [vmem:[#allocation2 + $0x130] sm:$0xff] 0.0
  $region17: #{_lambda_.5} parent=0 // pred_fallthru
    _
  %v58 = vld [vmem:[#allocation2] sm:$0xff]
  %v59 = vld [vmem:[#allocation2 + $0x8] sm:$0xff]
  %v60 = vld [vmem:[#allocation2 + $0x10] sm:$0xff]
  %v61 = vld [vmem:[#allocation2 + $0x18] sm:$0xff]
  %v62 = vld [vmem:[#allocation2 + $0x20] sm:$0xff]
  %v63 = vld [vmem:[#allocation2 + $0x28] sm:$0xff]
  %v64 = vld [vmem:[#allocation2 + $0x30] sm:$0xff]
  %v65 = vld [vmem:[#allocation2 + $0x38] sm:$0xff]
  %v66 = vld [vmem:[#allocation2 + $0x40] sm:$0xff]
  %v67 = vld [vmem:[#allocation2 + $0x48] sm:$0xff]
  %v68 = vld [vmem:[#allocation2 + $0x50] sm:$0xff]
  %v69 = vld [vmem:[#allocation2 + $0x58] sm:$0xff]
  %v70 = vld [vmem:[#allocation2 + $0x60] sm:$0xff]
  %v71 = vld [vmem:[#allocation2 + $0x68] sm:$0xff]
  %v72 = vld [vmem:[#allocation2 + $0x70] sm:$0xff]
  %v73 = vld [vmem:[#allocation2 + $0x78] sm:$0xff]
  %v74 = vld [vmem:[#allocation2 + $0x80] sm:$0xff]
  %v75 = vld [vmem:[#allocation2 + $0x88] sm:$0xff]
  %v76 = vld [vmem:[#allocation2 + $0x90] sm:$0xff]
  %v77 = vld [vmem:[#allocation2 + $0x98] sm:$0xff]
  %v78 = vld [vmem:[#allocation2 + $0xa0] sm:$0xff]
  %v79 = vld [vmem:[#allocation2 + $0xa8] sm:$0xff]
  %v80 = vld [vmem:[#allocation2 + $0xb0] sm:$0xff]
  %v81 = vld [vmem:[#allocation2 + $0xb8] sm:$0xff]
  %v82 = vld [vmem:[#allocation2 + $0xc0] sm:$0xff]
  %v83 = vld [vmem:[#allocation2 + $0xc8] sm:$0xff]
  %v84 = vld [vmem:[#allocation2 + $0xd0] sm:$0xff]
  %v85 = vld [vmem:[#allocation2 + $0xd8] sm:$0xff]
  %v86 = vld [vmem:[#allocation2 + $0xe0] sm:$0xff]
  %v87 = vld [vmem:[#allocation2 + $0xe8] sm:$0xff]
  %v88 = vld [vmem:[#allocation2 + $0xf0] sm:$0xff]
  %v89 = vld [vmem:[#allocation2 + $0xf8] sm:$0xff]
  %v90 = vld [vmem:[#allocation2 + $0x100] sm:$0xff]
  %v91 = vld [vmem:[#allocation2 + $0x108] sm:$0xff]
  %v92 = vld [vmem:[#allocation2 + $0x110] sm:$0xff]
  %v93 = vld [vmem:[#allocation2 + $0x118] sm:$0xff]
  %v94 = vld [vmem:[#allocation2 + $0x120] sm:$0xff]
  %v95 = vld [vmem:[#allocation2 + $0x128] sm:$0xff]
  %v96 = vld [vmem:[#allocation2 + $0x130] sm:$0xff]
  %v97 = vld [vmem:[%s0] sm:$0xff]
  %v98 = vld [vmem:[%s0 + $0x8] sm:$0xf]
  %v99 = vld [vmem:[%s0 + $0xc] sm:$0xff]
  %v100 = vld [vmem:[%s0 + $0x14] sm:$0xf]
  %v101 = vld [vmem:[%s0 + $0x18] sm:$0xff]
  %v102 = vld [vmem:[%s0 + $0x20] sm:$0xf]
  %v103 = vld [vmem:[%s0 + $0x24] sm:$0xff]
  %v104 = vld [vmem:[%s0 + $0x2c] sm:$0xf]
  %v105 = vld [vmem:[%s0 + $0x30] sm:$0xff]
  %v106 = vld [vmem:[%s0 + $0x38] sm:$0xf]
  %v107 = vld [vmem:[%s0 + $0x3c] sm:$0xff]
  %v108 = vld [vmem:[%s0 + $0x44] sm:$0xf]
  %v109 = vld [vmem:[%s0 + $0x48] sm:$0xff]
  %v110 = vld [vmem:[%s0 + $0x50] sm:$0xf]
  %v111 = vld [vmem:[%s0 + $0x54] sm:$0xff]
  %v112 = vld [vmem:[%s0 + $0x5c] sm:$0xf]
  %v113 = vld [vmem:[%s0 + $0x60] sm:$0xff]
  %v114 = vld [vmem:[%s0 + $0x68] sm:$0xf]
  %v115 = vld [vmem:[%s0 + $0x6c] sm:$0xff]
  %v116 = vld [vmem:[%s0 + $0x74] sm:$0xf]
  %v117 = vld [vmem:[%s0 + $0x78] sm:$0xff]
  %v118 = vld [vmem:[%s0 + $0x80] sm:$0xf]
  %v119 = vld [vmem:[%s0 + $0x84] sm:$0xff]
  %v120 = vld [vmem:[%s0 + $0x8c] sm:$0xf]
  %v121 = vld [vmem:[%s0 + $0x90] sm:$0xff]
  %v122 = vld [vmem:[%s0 + $0x98] sm:$0xf]
  %v123 = vld [vmem:[%s1] sm:$0xff]
  %v124 = vld [vmem:[%s1 + $0x8] sm:$0xf]
  %v125 = vld [vmem:[%s1 + $0xc] sm:$0xff]
  %v126 = vld [vmem:[%s1 + $0x14] sm:$0xf]
  %v127 = vld [vmem:[%s1 + $0x18] sm:$0xff]
  %v128 = vld [vmem:[%s1 + $0x20] sm:$0xf]
  %v129 = vld [vmem:[%s1 + $0x24] sm:$0xff]
  %v130 = vld [vmem:[%s1 + $0x2c] sm:$0xf]
  %v131 = vld [vmem:[%s1 + $0x30] sm:$0xff]
  %v132 = vld [vmem:[%s1 + $0x38] sm:$0xf]
  %v133 = vld [vmem:[%s1 + $0x3c] sm:$0xff]
  %v134 = vld [vmem:[%s1 + $0x44] sm:$0xf]
  %v135 = vld [vmem:[%s1 + $0x48] sm:$0xff]
  %v136 = vld [vmem:[%s1 + $0x50] sm:$0xf]
  %v137 = vld [vmem:[%s1 + $0x54] sm:$0xff]
  %v138 = vld [vmem:[%s1 + $0x5c] sm:$0xf]
  %v139 = vld [vmem:[%s1 + $0x60] sm:$0xff]
  %v140 = vld [vmem:[%s1 + $0x68] sm:$0xf]
  %v141 = vld [vmem:[%s1 + $0x6c] sm:$0xff]
  %v142 = vld [vmem:[%s1 + $0x74] sm:$0xf]
  %v143 = vld [vmem:[%s1 + $0x78] sm:$0xff]
  %v144 = vld [vmem:[%s1 + $0x80] sm:$0xf]
  %v145 = vld [vmem:[%s1 + $0x84] sm:$0xff]
  %v146 = vld [vmem:[%s1 + $0x8c] sm:$0xf]
  %v147 = vld [vmem:[%s1 + $0x90] sm:$0xff]
  %v148 = vld [vmem:[%s1 + $0x98] sm:$0xf]
  %v149 = vld [vmem:[%s1 + $0x9c] sm:$0xff]
  %v150 = vld [vmem:[%s1 + $0xa4] sm:$0xf]
  %v151 = vld [vmem:[%s1 + $0xa8] sm:$0xff]
  %v152 = vld [vmem:[%s1 + $0xb0] sm:$0xf]
  %v153 = vld [vmem:[%s1 + $0xb4] sm:$0xff]
  %v154 = vld [vmem:[%s1 + $0xbc] sm:$0xf]
  %v155 = vld [vmem:[%s1 + $0xc0] sm:$0xff]
  %v156 = vld [vmem:[%s1 + $0xc8] sm:$0xf]
  %v157 = vld [vmem:[%s1 + $0xcc] sm:$0xff]
  %v158 = vld [vmem:[%s1 + $0xd4] sm:$0xf]
  %v159 = vld [vmem:[%s1 + $0xd8] sm:$0xff]
  %v160 = vld [vmem:[%s1 + $0xe0] sm:$0xf]
  %v161 = vld [vmem:[%s1 + $0xe4] sm:$0xff]
  %v162 = vld [vmem:[%s1 + $0xec] sm:$0xf]
  %v163 = vld [vmem:[%s1 + $0xf0] sm:$0xff]
  %v164 = vld [vmem:[%s1 + $0xf8] sm:$0xf]
  %v165 = vld [vmem:[%s1 + $0xfc] sm:$0xff]
  %v166 = vld [vmem:[%s1 + $0x104] sm:$0xf]
  %v167 = vld [vmem:[%s1 + $0x108] sm:$0xff]
  %v168 = vld [vmem:[%s1 + $0x110] sm:$0xf]
  %v169 = vld [vmem:[%s1 + $0x114] sm:$0xff]
  %v170 = vld [vmem:[%s1 + $0x11c] sm:$0xf]
  %v171 = vld [vmem:[%s1 + $0x120] sm:$0xff]
  %v172 = vld [vmem:[%s1 + $0x128] sm:$0xf]
  %v173 = vld [vmem:[%s1 + $0x12c] sm:$0xff]
  %v174 = vld [vmem:[%s1 + $0x134] sm:$0xf]
  %v175 = vld [vmem:[%s1 + $0x138] sm:$0xff]
  %v176 = vld [vmem:[%s1 + $0x140] sm:$0xf]
  %v177 = vld [vmem:[%s1 + $0x144] sm:$0xff]
  %v178 = vld [vmem:[%s1 + $0x14c] sm:$0xf]
  %v179 = vld [vmem:[%s1 + $0x150] sm:$0xff]
  %v180 = vld [vmem:[%s1 + $0x158] sm:$0xf]
  %v181 = vld [vmem:[%s1 + $0x15c] sm:$0xff]
  %v182 = vld [vmem:[%s1 + $0x164] sm:$0xf]
  %v183 = vld [vmem:[%s1 + $0x168] sm:$0xff]
  %v184 = vld [vmem:[%s1 + $0x170] sm:$0xf]
  %v185 = vld [vmem:[%s1 + $0x174] sm:$0xff]
  %v186 = vld [vmem:[%s1 + $0x17c] sm:$0xf]
  %v187 = vld [vmem:[%s1 + $0x180] sm:$0xff]
  %v188 = vld [vmem:[%s1 + $0x188] sm:$0xf]
  %v189 = vld [vmem:[%s1 + $0x18c] sm:$0xff]
  %v190 = vld [vmem:[%s1 + $0x194] sm:$0xf]
  %v191 = vld [vmem:[%s1 + $0x198] sm:$0xff]
  %v192 = vld [vmem:[%s1 + $0x1a0] sm:$0xf]
  %v193 = vld [vmem:[%s1 + $0x1a4] sm:$0xff]
  %v194 = vld [vmem:[%s1 + $0x1ac] sm:$0xf]
  %v221 = vunpack.c.l.b16 %v97
  %v222 = vunpack.c.h.b16 %v97
  %v223 = vunpack.c.l.b16 %v98
  %v224 = vunpack.c.l.b16 %v99
  %v225 = vunpack.c.h.b16 %v99
  %v226 = vunpack.c.l.b16 %v100
  %v227 = vunpack.c.l.b16 %v101
  %v228 = vunpack.c.h.b16 %v101
  %v229 = vunpack.c.l.b16 %v102
  %v230 = vunpack.c.l.b16 %v103
  %v231 = vunpack.c.h.b16 %v103
  %v232 = vunpack.c.l.b16 %v104
  %v233 = vunpack.c.l.b16 %v105
  %v234 = vunpack.c.h.b16 %v105
  %v235 = vunpack.c.l.b16 %v106
  %v236 = vunpack.c.l.b16 %v107
  %v237 = vunpack.c.h.b16 %v107
  %v238 = vunpack.c.l.b16 %v108
  %v239 = vunpack.c.l.b16 %v109
  %v240 = vunpack.c.h.b16 %v109
  %v241 = vunpack.c.l.b16 %v110
  %v242 = vunpack.c.l.b16 %v111
  %v243 = vunpack.c.h.b16 %v111
  %v244 = vunpack.c.l.b16 %v112
  %v245 = vunpack.c.l.b16 %v113
  %v246 = vunpack.c.h.b16 %v113
  %v247 = vunpack.c.l.b16 %v114
  %v248 = vunpack.c.l.b16 %v115
  %v249 = vunpack.c.h.b16 %v115
  %v250 = vunpack.c.l.b16 %v116
  %v251 = vunpack.c.l.b16 %v117
  %v252 = vunpack.c.h.b16 %v117
  %v253 = vunpack.c.l.b16 %v118
  %v254 = vunpack.c.l.b16 %v119
  %v255 = vunpack.c.h.b16 %v119
  %v256 = vunpack.c.l.b16 %v120
  %v257 = vunpack.c.l.b16 %v121
  %v258 = vunpack.c.h.b16 %v121
  %v259 = vunpack.c.l.b16 %v122
  %v260 = vpack.c.b16 %v224, %v221
  %v261 = vpack.c.b16 %v225, %v222
  %v262 = vpack.c.b16 %v226, %v223
  %v263 = vpack.c.b16 %v230, %v227
  %v264 = vpack.c.b16 %v231, %v228
  %v265 = vpack.c.b16 %v232, %v229
  %v266 = vpack.c.b16 %v236, %v233
  %v267 = vpack.c.b16 %v237, %v234
  %v268 = vpack.c.b16 %v238, %v235
  %v269 = vpack.c.b16 %v242, %v239
  %v270 = vpack.c.b16 %v243, %v240
  %v271 = vpack.c.b16 %v244, %v241
  %v272 = vpack.c.b16 %v248, %v245
  %v273 = vpack.c.b16 %v249, %v246
  %v274 = vpack.c.b16 %v250, %v247
  %v275 = vpack.c.b16 %v254, %v251
  %v276 = vpack.c.b16 %v255, %v252
  %v277 = vpack.c.b16 %v256, %v253
  %v278 = vpack.c.b16 %v257, %v257
  %v279 = vpack.c.b16 %v258, %v258
  %v280 = vpack.c.b16 %v259, %v259
  %v367 = vunpack.c.l.b16 %v123
  %v368 = vunpack.c.h.b16 %v123
  %v369 = vunpack.c.l.b16 %v124
  %v370 = vunpack.c.l.b16 %v125
  %v371 = vunpack.c.h.b16 %v125
  %v372 = vunpack.c.l.b16 %v126
  %v373 = vunpack.c.l.b16 %v127
  %v374 = vunpack.c.h.b16 %v127
  %v375 = vunpack.c.l.b16 %v128
  %v376 = vunpack.c.l.b16 %v129
  %v377 = vunpack.c.h.b16 %v129
  %v378 = vunpack.c.l.b16 %v130
  %v379 = vunpack.c.l.b16 %v131
  %v380 = vunpack.c.h.b16 %v131
  %v381 = vunpack.c.l.b16 %v132
  %v382 = vunpack.c.l.b16 %v133
  %v383 = vunpack.c.h.b16 %v133
  %v384 = vunpack.c.l.b16 %v134
  %v385 = vunpack.c.l.b16 %v135
  %v386 = vunpack.c.h.b16 %v135
  %v387 = vunpack.c.l.b16 %v136
  %v388 = vunpack.c.l.b16 %v137
  %v389 = vunpack.c.h.b16 %v137
  %v390 = vunpack.c.l.b16 %v138
  %v391 = vunpack.c.l.b16 %v139
  %v392 = vunpack.c.h.b16 %v139
  %v393 = vunpack.c.l.b16 %v140
  %v394 = vunpack.c.l.b16 %v141
  %v395 = vunpack.c.h.b16 %v141
  %v396 = vunpack.c.l.b16 %v142
  %v397 = vunpack.c.l.b16 %v143
  %v398 = vunpack.c.h.b16 %v143
  %v399 = vunpack.c.l.b16 %v144
  %v400 = vunpack.c.l.b16 %v145
  %v401 = vunpack.c.h.b16 %v145
  %v402 = vunpack.c.l.b16 %v146
  %v403 = vunpack.c.l.b16 %v147
  %v404 = vunpack.c.h.b16 %v147
  %v405 = vunpack.c.l.b16 %v148
  %v406 = vunpack.c.l.b16 %v149
  %v407 = vunpack.c.h.b16 %v149
  %v408 = vunpack.c.l.b16 %v150
  %v409 = vunpack.c.l.b16 %v151
  %v410 = vunpack.c.h.b16 %v151
  %v411 = vunpack.c.l.b16 %v152
  %v412 = vunpack.c.l.b16 %v153
  %v413 = vunpack.c.h.b16 %v153
  %v414 = vunpack.c.l.b16 %v154
  %v415 = vunpack.c.l.b16 %v155
  %v416 = vunpack.c.h.b16 %v155
  %v417 = vunpack.c.l.b16 %v156
  %v418 = vunpack.c.l.b16 %v157
  %v419 = vunpack.c.h.b16 %v157
  %v420 = vunpack.c.l.b16 %v158
  %v421 = vunpack.c.l.b16 %v159
  %v422 = vunpack.c.h.b16 %v159
  %v423 = vunpack.c.l.b16 %v160
  %v424 = vunpack.c.l.b16 %v161
  %v425 = vunpack.c.h.b16 %v161
  %v426 = vunpack.c.l.b16 %v162
  %v427 = vunpack.c.l.b16 %v163
  %v428 = vunpack.c.h.b16 %v163
  %v429 = vunpack.c.l.b16 %v164
  %v430 = vunpack.c.l.b16 %v165
  %v431 = vunpack.c.h.b16 %v165
  %v432 = vunpack.c.l.b16 %v166
  %v433 = vunpack.c.l.b16 %v167
  %v434 = vunpack.c.h.b16 %v167
  %v435 = vunpack.c.l.b16 %v168
  %v436 = vunpack.c.l.b16 %v169
  %v437 = vunpack.c.h.b16 %v169
  %v438 = vunpack.c.l.b16 %v170
  %v439 = vunpack.c.l.b16 %v171
  %v440 = vunpack.c.h.b16 %v171
  %v441 = vunpack.c.l.b16 %v172
  %v442 = vunpack.c.l.b16 %v173
  %v443 = vunpack.c.h.b16 %v173
  %v444 = vunpack.c.l.b16 %v174
  %v445 = vunpack.c.l.b16 %v175
  %v446 = vunpack.c.h.b16 %v175
  %v447 = vunpack.c.l.b16 %v176
  %v448 = vunpack.c.l.b16 %v177
  %v449 = vunpack.c.h.b16 %v177
  %v450 = vunpack.c.l.b16 %v178
  %v451 = vunpack.c.l.b16 %v179
  %v452 = vunpack.c.h.b16 %v179
  %v453 = vunpack.c.l.b16 %v180
  %v454 = vunpack.c.l.b16 %v181
  %v455 = vunpack.c.h.b16 %v181
  %v456 = vunpack.c.l.b16 %v182
  %v457 = vunpack.c.l.b16 %v183
  %v458 = vunpack.c.h.b16 %v183
  %v459 = vunpack.c.l.b16 %v184
  %v460 = vunpack.c.l.b16 %v185
  %v461 = vunpack.c.h.b16 %v185
  %v462 = vunpack.c.l.b16 %v186
  %v463 = vunpack.c.l.b16 %v187
  %v464 = vunpack.c.h.b16 %v187
  %v465 = vunpack.c.l.b16 %v188
  %v466 = vunpack.c.l.b16 %v189
  %v467 = vunpack.c.h.b16 %v189
  %v468 = vunpack.c.l.b16 %v190
  %v469 = vunpack.c.l.b16 %v191
  %v470 = vunpack.c.h.b16 %v191
  %v471 = vunpack.c.l.b16 %v192
  %v472 = vunpack.c.l.b16 %v193
  %v473 = vunpack.c.h.b16 %v193
  %v474 = vunpack.c.l.b16 %v194
  %v475 = vpack.c.b16 %v370, %v367
  %v476 = vpack.c.b16 %v371, %v368
  %v477 = vpack.c.b16 %v372, %v369
  %v478 = vpack.c.b16 %v376, %v373
  %v479 = vpack.c.b16 %v377, %v374
  %v480 = vpack.c.b16 %v378, %v375
  %v481 = vpack.c.b16 %v382, %v379
  %v482 = vpack.c.b16 %v383, %v380
  %v483 = vpack.c.b16 %v384, %v381
  %v484 = vpack.c.b16 %v388, %v385
  %v485 = vpack.c.b16 %v389, %v386
  %v486 = vpack.c.b16 %v390, %v387
  %v487 = vpack.c.b16 %v394, %v391
  %v488 = vpack.c.b16 %v395, %v392
  %v489 = vpack.c.b16 %v396, %v393
  %v490 = vpack.c.b16 %v400, %v397
  %v491 = vpack.c.b16 %v401, %v398
  %v492 = vpack.c.b16 %v402, %v399
  %v493 = vpack.c.b16 %v406, %v403
  %v494 = vpack.c.b16 %v407, %v404
  %v495 = vpack.c.b16 %v408, %v405
  %v496 = vpack.c.b16 %v412, %v409
  %v497 = vpack.c.b16 %v413, %v410
  %v498 = vpack.c.b16 %v414, %v411
  %v499 = vpack.c.b16 %v418, %v415
  %v500 = vpack.c.b16 %v419, %v416
  %v501 = vpack.c.b16 %v420, %v417
  %v502 = vpack.c.b16 %v424, %v421
  %v503 = vpack.c.b16 %v425, %v422
  %v504 = vpack.c.b16 %v426, %v423
  %v505 = vpack.c.b16 %v430, %v427
  %v506 = vpack.c.b16 %v431, %v428
  %v507 = vpack.c.b16 %v432, %v429
  %v508 = vpack.c.b16 %v436, %v433
  %v509 = vpack.c.b16 %v437, %v434
  %v510 = vpack.c.b16 %v438, %v435
  %v511 = vpack.c.b16 %v442, %v439
  %v512 = vpack.c.b16 %v443, %v440
  %v513 = vpack.c.b16 %v444, %v441
  %v514 = vpack.c.b16 %v448, %v445
  %v515 = vpack.c.b16 %v449, %v446
  %v516 = vpack.c.b16 %v450, %v447
  %v517 = vpack.c.b16 %v454, %v451
  %v518 = vpack.c.b16 %v455, %v452
  %v519 = vpack.c.b16 %v456, %v453
  %v520 = vpack.c.b16 %v460, %v457
  %v521 = vpack.c.b16 %v461, %v458
  %v522 = vpack.c.b16 %v462, %v459
  %v523 = vpack.c.b16 %v466, %v463
  %v524 = vpack.c.b16 %v467, %v464
  %v525 = vpack.c.b16 %v468, %v465
  %v526 = vpack.c.b16 %v472, %v469
  %v527 = vpack.c.b16 %v473, %v470
  %v528 = vpack.c.b16 %v474, %v471
  %vm583 = vcmask 261120
  %v585 = vsel %vm583, %v262, 0
  %v588 = vsel %vm583, %v265, 0
  %v591 = vsel %vm583, %v268, 0
  %v594 = vsel %vm583, %v271, 0
  %v597 = vsel %vm583, %v274, 0
  %v600 = vsel %vm583, %v277, 0
  %v603 = vsel %vm583, %v280, 0
  %605 = vmatpush.bf16.msra.mxu0 %v496
  %606 = vmatpush.bf16.msra.mxu0 %v493
  %607 = vmatpush.bf16.msra.mxu0 %v490
  %608 = vmatpush.bf16.msra.mxu0 %v487
  %609 = vmatpush.bf16.msra.mxu0 %v484
  %610 = vmatpush.bf16.msra.mxu0 %v481
  %611 = vmatpush.bf16.msra.mxu0 %v478
  %612 = vmatpush.bf16.msra.mxu0 %v475
  %613 = vmatmul.bf16.gmra.mxu0 %v260
  %v614 = vpop.f32.mrf.mxu0
  %v615 = vadd.f32 0.0, %v614
  %v616 = vpop.f32.mrf.mxu0
  %v617 = vadd.f32 0.0, %v616
  %618 = vmatmul.bf16.gmra.mxu0 %v263
  %v619 = vpop.f32.mrf.mxu0
  %v620 = vadd.f32 0.0, %v619
  %v621 = vpop.f32.mrf.mxu0
  %v622 = vadd.f32 0.0, %v621
  %623 = vmatmul.bf16.gmra.mxu0 %v266
  %v624 = vpop.f32.mrf.mxu0
  %v625 = vadd.f32 0.0, %v624
  %v626 = vpop.f32.mrf.mxu0
  %v627 = vadd.f32 0.0, %v626
  %628 = vmatmul.bf16.gmra.mxu0 %v269
  %v629 = vpop.f32.mrf.mxu0
  %v630 = vadd.f32 0.0, %v629
  %v631 = vpop.f32.mrf.mxu0
  %v632 = vadd.f32 0.0, %v631
  %633 = vmatmul.bf16.gmra.mxu0 %v272
  %v634 = vpop.f32.mrf.mxu0
  %v635 = vadd.f32 0.0, %v634
  %v636 = vpop.f32.mrf.mxu0
  %v637 = vadd.f32 0.0, %v636
  %638 = vmatmul.bf16.gmra.mxu0 %v275
  %v639 = vpop.f32.mrf.mxu0
  %v640 = vadd.f32 0.0, %v639
  %v641 = vpop.f32.mrf.mxu0
  %v642 = vadd.f32 0.0, %v641
  %643 = vmatmul.bf16.gmra.mxu0 %v278
  %v644 = vpop.f32.mrf.mxu0
  %v645 = vadd.f32 0.0, %v644
  %v646 = vpop.f32.mrf.mxu0
  %647 = vdwg.mxu0
  %648 = vmatpush.bf16.msra.mxu0 %v520
  %649 = vmatpush.bf16.msra.mxu0 %v517
  %650 = vmatpush.bf16.msra.mxu0 %v514
  %651 = vmatpush.bf16.msra.mxu0 %v511
  %652 = vmatpush.bf16.msra.mxu0 %v508
  %653 = vmatpush.bf16.msra.mxu0 %v505
  %654 = vmatpush.bf16.msra.mxu0 %v502
  %655 = vmatpush.bf16.msra.mxu0 %v499
  %656 = vmatmul.bf16.gmra.mxu0 %v261
  %v657 = vpop.f32.mrf.mxu0
  %v658 = vadd.f32 %v615, %v657
  %v659 = vpop.f32.mrf.mxu0
  %v660 = vadd.f32 %v617, %v659
  %661 = vmatmul.bf16.gmra.mxu0 %v264
  %v662 = vpop.f32.mrf.mxu0
  %v663 = vadd.f32 %v620, %v662
  %v664 = vpop.f32.mrf.mxu0
  %v665 = vadd.f32 %v622, %v664
  %666 = vmatmul.bf16.gmra.mxu0 %v267
  %v667 = vpop.f32.mrf.mxu0
  %v668 = vadd.f32 %v625, %v667
  %v669 = vpop.f32.mrf.mxu0
  %v670 = vadd.f32 %v627, %v669
  %671 = vmatmul.bf16.gmra.mxu0 %v270
  %v672 = vpop.f32.mrf.mxu0
  %v673 = vadd.f32 %v630, %v672
  %v674 = vpop.f32.mrf.mxu0
  %v675 = vadd.f32 %v632, %v674
  %676 = vmatmul.bf16.gmra.mxu0 %v273
  %v677 = vpop.f32.mrf.mxu0
  %v678 = vadd.f32 %v635, %v677
  %v679 = vpop.f32.mrf.mxu0
  %v680 = vadd.f32 %v637, %v679
  %681 = vmatmul.bf16.gmra.mxu0 %v276
  %v682 = vpop.f32.mrf.mxu0
  %v683 = vadd.f32 %v640, %v682
  %v684 = vpop.f32.mrf.mxu0
  %v685 = vadd.f32 %v642, %v684
  %686 = vmatmul.bf16.gmra.mxu0 %v279
  %v687 = vpop.f32.mrf.mxu0
  %v688 = vadd.f32 %v645, %v687
  %v689 = vpop.f32.mrf.mxu0
  %690 = vdwg.mxu0
  %691 = vmatpush.bf16.msra.mxu0 0
  %692 = vmatpush.bf16.msra.mxu0 0
  %693 = vmatpush.bf16.msra.mxu0 0
  %694 = vmatpush.bf16.msra.mxu0 0
  %695 = vmatpush.bf16.msra.mxu0 0
  %696 = vmatpush.bf16.msra.mxu0 0
  %697 = vmatpush.bf16.msra.mxu0 %v526
  %698 = vmatpush.bf16.msra.mxu0 %v523
  %699 = vmatmul.bf16.gmra.mxu0 %v585
  %v700 = vpop.f32.mrf.mxu0
  %v701 = vadd.f32 %v658, %v700
  %v702 = vpop.f32.mrf.mxu0
  %v703 = vadd.f32 %v660, %v702
  %704 = vmatmul.bf16.gmra.mxu0 %v588
  %v705 = vpop.f32.mrf.mxu0
  %v706 = vadd.f32 %v663, %v705
  %v707 = vpop.f32.mrf.mxu0
  %v708 = vadd.f32 %v665, %v707
  %709 = vmatmul.bf16.gmra.mxu0 %v591
  %v710 = vpop.f32.mrf.mxu0
  %v711 = vadd.f32 %v668, %v710
  %v712 = vpop.f32.mrf.mxu0
  %v713 = vadd.f32 %v670, %v712
  %714 = vmatmul.bf16.gmra.mxu0 %v594
  %v715 = vpop.f32.mrf.mxu0
  %v716 = vadd.f32 %v673, %v715
  %v717 = vpop.f32.mrf.mxu0
  %v718 = vadd.f32 %v675, %v717
  %719 = vmatmul.bf16.gmra.mxu0 %v597
  %v720 = vpop.f32.mrf.mxu0
  %v721 = vadd.f32 %v678, %v720
  %v722 = vpop.f32.mrf.mxu0
  %v723 = vadd.f32 %v680, %v722
  %724 = vmatmul.bf16.gmra.mxu0 %v600
  %v725 = vpop.f32.mrf.mxu0
  %v726 = vadd.f32 %v683, %v725
  %v727 = vpop.f32.mrf.mxu0
  %v728 = vadd.f32 %v685, %v727
  %729 = vmatmul.bf16.gmra.mxu0 %v603
  %v730 = vpop.f32.mrf.mxu0
  %v731 = vadd.f32 %v688, %v730
  %v732 = vpop.f32.mrf.mxu0
  %733 = vdwg.mxu0
  %734 = vmatpush.bf16.msra.mxu0 %v497
  %735 = vmatpush.bf16.msra.mxu0 %v494
  %736 = vmatpush.bf16.msra.mxu0 %v491
  %737 = vmatpush.bf16.msra.mxu0 %v488
  %738 = vmatpush.bf16.msra.mxu0 %v485
  %739 = vmatpush.bf16.msra.mxu0 %v482
  %740 = vmatpush.bf16.msra.mxu0 %v479
  %741 = vmatpush.bf16.msra.mxu0 %v476
  %742 = vmatmul.bf16.gmra.mxu0 %v260
  %v743 = vpop.f32.mrf.mxu0
  %v744 = vadd.f32 0.0, %v743
  %v745 = vpop.f32.mrf.mxu0
  %v746 = vadd.f32 0.0, %v745
  %747 = vmatmul.bf16.gmra.mxu0 %v263
  %v748 = vpop.f32.mrf.mxu0
  %v749 = vadd.f32 0.0, %v748
  %v750 = vpop.f32.mrf.mxu0
  %v751 = vadd.f32 0.0, %v750
  %752 = vmatmul.bf16.gmra.mxu0 %v266
  %v753 = vpop.f32.mrf.mxu0
  %v754 = vadd.f32 0.0, %v753
  %v755 = vpop.f32.mrf.mxu0
  %v756 = vadd.f32 0.0, %v755
  %757 = vmatmul.bf16.gmra.mxu0 %v269
  %v758 = vpop.f32.mrf.mxu0
  %v759 = vadd.f32 0.0, %v758
  %v760 = vpop.f32.mrf.mxu0
  %v761 = vadd.f32 0.0, %v760
  %762 = vmatmul.bf16.gmra.mxu0 %v272
  %v763 = vpop.f32.mrf.mxu0
  %v764 = vadd.f32 0.0, %v763
  %v765 = vpop.f32.mrf.mxu0
  %v766 = vadd.f32 0.0, %v765
  %767 = vmatmul.bf16.gmra.mxu0 %v275
  %v768 = vpop.f32.mrf.mxu0
  %v769 = vadd.f32 0.0, %v768
  %v770 = vpop.f32.mrf.mxu0
  %v771 = vadd.f32 0.0, %v770
  %772 = vmatmul.bf16.gmra.mxu0 %v278
  %v773 = vpop.f32.mrf.mxu0
  %v774 = vadd.f32 0.0, %v773
  %v775 = vpop.f32.mrf.mxu0
  %776 = vdwg.mxu0
  %777 = vmatpush.bf16.msra.mxu0 %v521
  %778 = vmatpush.bf16.msra.mxu0 %v518
  %779 = vmatpush.bf16.msra.mxu0 %v515
  %780 = vmatpush.bf16.msra.mxu0 %v512
  %781 = vmatpush.bf16.msra.mxu0 %v509
  %782 = vmatpush.bf16.msra.mxu0 %v506
  %783 = vmatpush.bf16.msra.mxu0 %v503
  %784 = vmatpush.bf16.msra.mxu0 %v500
  %785 = vmatmul.bf16.gmra.mxu0 %v261
  %v786 = vpop.f32.mrf.mxu0
  %v787 = vadd.f32 %v744, %v786
  %v788 = vpop.f32.mrf.mxu0
  %v789 = vadd.f32 %v746, %v788
  %790 = vmatmul.bf16.gmra.mxu0 %v264
  %v791 = vpop.f32.mrf.mxu0
  %v792 = vadd.f32 %v749, %v791
  %v793 = vpop.f32.mrf.mxu0
  %v794 = vadd.f32 %v751, %v793
  %795 = vmatmul.bf16.gmra.mxu0 %v267
  %v796 = vpop.f32.mrf.mxu0
  %v797 = vadd.f32 %v754, %v796
  %v798 = vpop.f32.mrf.mxu0
  %v799 = vadd.f32 %v756, %v798
  %800 = vmatmul.bf16.gmra.mxu0 %v270
  %v801 = vpop.f32.mrf.mxu0
  %v802 = vadd.f32 %v759, %v801
  %v803 = vpop.f32.mrf.mxu0
  %v804 = vadd.f32 %v761, %v803
  %805 = vmatmul.bf16.gmra.mxu0 %v273
  %v806 = vpop.f32.mrf.mxu0
  %v807 = vadd.f32 %v764, %v806
  %v808 = vpop.f32.mrf.mxu0
  %v809 = vadd.f32 %v766, %v808
  %810 = vmatmul.bf16.gmra.mxu0 %v276
  %v811 = vpop.f32.mrf.mxu0
  %v812 = vadd.f32 %v769, %v811
  %v813 = vpop.f32.mrf.mxu0
  %v814 = vadd.f32 %v771, %v813
  %815 = vmatmul.bf16.gmra.mxu0 %v279
  %v816 = vpop.f32.mrf.mxu0
  %v817 = vadd.f32 %v774, %v816
  %v818 = vpop.f32.mrf.mxu0
  %819 = vdwg.mxu0
  %820 = vmatpush.bf16.msra.mxu0 0
  %821 = vmatpush.bf16.msra.mxu0 0
  %822 = vmatpush.bf16.msra.mxu0 0
  %823 = vmatpush.bf16.msra.mxu0 0
  %824 = vmatpush.bf16.msra.mxu0 0
  %825 = vmatpush.bf16.msra.mxu0 0
  %826 = vmatpush.bf16.msra.mxu0 %v527
  %827 = vmatpush.bf16.msra.mxu0 %v524
  %828 = vmatmul.bf16.gmra.mxu0 %v585
  %v829 = vpop.f32.mrf.mxu0
  %v830 = vadd.f32 %v787, %v829
  %v831 = vpop.f32.mrf.mxu0
  %v832 = vadd.f32 %v789, %v831
  %833 = vmatmul.bf16.gmra.mxu0 %v588
  %v834 = vpop.f32.mrf.mxu0
  %v835 = vadd.f32 %v792, %v834
  %v836 = vpop.f32.mrf.mxu0
  %v837 = vadd.f32 %v794, %v836
  %838 = vmatmul.bf16.gmra.mxu0 %v591
  %v839 = vpop.f32.mrf.mxu0
  %v840 = vadd.f32 %v797, %v839
  %v841 = vpop.f32.mrf.mxu0
  %v842 = vadd.f32 %v799, %v841
  %843 = vmatmul.bf16.gmra.mxu0 %v594
  %v844 = vpop.f32.mrf.mxu0
  %v845 = vadd.f32 %v802, %v844
  %v846 = vpop.f32.mrf.mxu0
  %v847 = vadd.f32 %v804, %v846
  %848 = vmatmul.bf16.gmra.mxu0 %v597
  %v849 = vpop.f32.mrf.mxu0
  %v850 = vadd.f32 %v807, %v849
  %v851 = vpop.f32.mrf.mxu0
  %v852 = vadd.f32 %v809, %v851
  %853 = vmatmul.bf16.gmra.mxu0 %v600
  %v854 = vpop.f32.mrf.mxu0
  %v855 = vadd.f32 %v812, %v854
  %v856 = vpop.f32.mrf.mxu0
  %v857 = vadd.f32 %v814, %v856
  %858 = vmatmul.bf16.gmra.mxu0 %v603
  %v859 = vpop.f32.mrf.mxu0
  %v860 = vadd.f32 %v817, %v859
  %v861 = vpop.f32.mrf.mxu0
  %862 = vdwg.mxu0
  %863 = vmatpush.bf16.msra.mxu0 %v498
  %864 = vmatpush.bf16.msra.mxu0 %v495
  %865 = vmatpush.bf16.msra.mxu0 %v492
  %866 = vmatpush.bf16.msra.mxu0 %v489
  %867 = vmatpush.bf16.msra.mxu0 %v486
  %868 = vmatpush.bf16.msra.mxu0 %v483
  %869 = vmatpush.bf16.msra.mxu0 %v480
  %870 = vmatpush.bf16.msra.mxu0 %v477
  %871 = vmatmul.bf16.gmra.mxu0 %v260
  %v872 = vpop.f32.mrf.mxu0
  %v873 = vadd.f32 0.0, %v872
  %v874 = vpop.f32.mrf.mxu0
  %v875 = vadd.f32 0.0, %v874
  %876 = vmatmul.bf16.gmra.mxu0 %v263
  %v877 = vpop.f32.mrf.mxu0
  %v878 = vadd.f32 0.0, %v877
  %v879 = vpop.f32.mrf.mxu0
  %v880 = vadd.f32 0.0, %v879
  %881 = vmatmul.bf16.gmra.mxu0 %v266
  %v882 = vpop.f32.mrf.mxu0
  %v883 = vadd.f32 0.0, %v882
  %v884 = vpop.f32.mrf.mxu0
  %v885 = vadd.f32 0.0, %v884
  %886 = vmatmul.bf16.gmra.mxu0 %v269
  %v887 = vpop.f32.mrf.mxu0
  %v888 = vadd.f32 0.0, %v887
  %v889 = vpop.f32.mrf.mxu0
  %v890 = vadd.f32 0.0, %v889
  %891 = vmatmul.bf16.gmra.mxu0 %v272
  %v892 = vpop.f32.mrf.mxu0
  %v893 = vadd.f32 0.0, %v892
  %v894 = vpop.f32.mrf.mxu0
  %v895 = vadd.f32 0.0, %v894
  %896 = vmatmul.bf16.gmra.mxu0 %v275
  %v897 = vpop.f32.mrf.mxu0
  %v898 = vadd.f32 0.0, %v897
  %v899 = vpop.f32.mrf.mxu0
  %v900 = vadd.f32 0.0, %v899
  %901 = vmatmul.bf16.gmra.mxu0 %v278
  %v902 = vpop.f32.mrf.mxu0
  %v903 = vadd.f32 0.0, %v902
  %v904 = vpop.f32.mrf.mxu0
  %905 = vdwg.mxu0
  %906 = vmatpush.bf16.msra.mxu0 %v522
  %907 = vmatpush.bf16.msra.mxu0 %v519
  %908 = vmatpush.bf16.msra.mxu0 %v516
  %909 = vmatpush.bf16.msra.mxu0 %v513
  %910 = vmatpush.bf16.msra.mxu0 %v510
  %911 = vmatpush.bf16.msra.mxu0 %v507
  %912 = vmatpush.bf16.msra.mxu0 %v504
  %913 = vmatpush.bf16.msra.mxu0 %v501
  %914 = vmatmul.bf16.gmra.mxu0 %v261
  %v915 = vpop.f32.mrf.mxu0
  %v916 = vadd.f32 %v873, %v915
  %v917 = vpop.f32.mrf.mxu0
  %v918 = vadd.f32 %v875, %v917
  %919 = vmatmul.bf16.gmra.mxu0 %v264
  %v920 = vpop.f32.mrf.mxu0
  %v921 = vadd.f32 %v878, %v920
  %v922 = vpop.f32.mrf.mxu0
  %v923 = vadd.f32 %v880, %v922
  %924 = vmatmul.bf16.gmra.mxu0 %v267
  %v925 = vpop.f32.mrf.mxu0
  %v926 = vadd.f32 %v883, %v925
  %v927 = vpop.f32.mrf.mxu0
  %v928 = vadd.f32 %v885, %v927
  %929 = vmatmul.bf16.gmra.mxu0 %v270
  %v930 = vpop.f32.mrf.mxu0
  %v931 = vadd.f32 %v888, %v930
  %v932 = vpop.f32.mrf.mxu0
  %v933 = vadd.f32 %v890, %v932
  %934 = vmatmul.bf16.gmra.mxu0 %v273
  %v935 = vpop.f32.mrf.mxu0
  %v936 = vadd.f32 %v893, %v935
  %v937 = vpop.f32.mrf.mxu0
  %v938 = vadd.f32 %v895, %v937
  %939 = vmatmul.bf16.gmra.mxu0 %v276
  %v940 = vpop.f32.mrf.mxu0
  %v941 = vadd.f32 %v898, %v940
  %v942 = vpop.f32.mrf.mxu0
  %v943 = vadd.f32 %v900, %v942
  %944 = vmatmul.bf16.gmra.mxu0 %v279
  %v945 = vpop.f32.mrf.mxu0
  %v946 = vadd.f32 %v903, %v945
  %v947 = vpop.f32.mrf.mxu0
  %948 = vdwg.mxu0
  %949 = vmatpush.bf16.msra.mxu0 0
  %950 = vmatpush.bf16.msra.mxu0 0
  %951 = vmatpush.bf16.msra.mxu0 0
  %952 = vmatpush.bf16.msra.mxu0 0
  %953 = vmatpush.bf16.msra.mxu0 0
  %954 = vmatpush.bf16.msra.mxu0 0
  %955 = vmatpush.bf16.msra.mxu0 %v528
  %956 = vmatpush.bf16.msra.mxu0 %v525
  %957 = vmatmul.bf16.gmra.mxu0 %v585
  %v958 = vpop.f32.mrf.mxu0
  %v959 = vadd.f32 %v916, %v958
  %v960 = vpop.f32.mrf.mxu0
  %v961 = vadd.f32 %v918, %v960
  %962 = vmatmul.bf16.gmra.mxu0 %v588
  %v963 = vpop.f32.mrf.mxu0
  %v964 = vadd.f32 %v921, %v963
  %v965 = vpop.f32.mrf.mxu0
  %v966 = vadd.f32 %v923, %v965
  %967 = vmatmul.bf16.gmra.mxu0 %v591
  %v968 = vpop.f32.mrf.mxu0
  %v969 = vadd.f32 %v926, %v968
  %v970 = vpop.f32.mrf.mxu0
  %v971 = vadd.f32 %v928, %v970
  %972 = vmatmul.bf16.gmra.mxu0 %v594
  %v973 = vpop.f32.mrf.mxu0
  %v974 = vadd.f32 %v931, %v973
  %v975 = vpop.f32.mrf.mxu0
  %v976 = vadd.f32 %v933, %v975
  %977 = vmatmul.bf16.gmra.mxu0 %v597
  %v978 = vpop.f32.mrf.mxu0
  %v979 = vadd.f32 %v936, %v978
  %v980 = vpop.f32.mrf.mxu0
  %v981 = vadd.f32 %v938, %v980
  %982 = vmatmul.bf16.gmra.mxu0 %v600
  %v983 = vpop.f32.mrf.mxu0
  %v984 = vadd.f32 %v941, %v983
  %v985 = vpop.f32.mrf.mxu0
  %v986 = vadd.f32 %v943, %v985
  %987 = vmatmul.bf16.gmra.mxu0 %v603
  %v988 = vpop.f32.mrf.mxu0
  %v989 = vadd.f32 %v946, %v988
  %v990 = vpop.f32.mrf.mxu0
  %991 = vdwg.mxu0
  %v992 = vadd.f32 %v58, %v701
  %v993 = vadd.f32 %v59, %v830
  %v994 = vadd.f32 %v60, %v959
  %v995 = vadd.f32 %v61, %v703
  %v996 = vadd.f32 %v62, %v832
  %v997 = vadd.f32 %v63, %v961
  %v998 = vadd.f32 %v64, %v706
  %v999 = vadd.f32 %v65, %v835
  %v1000 = vadd.f32 %v66, %v964
  %v1001 = vadd.f32 %v67, %v708
  %v1002 = vadd.f32 %v68, %v837
  %v1003 = vadd.f32 %v69, %v966
  %v1004 = vadd.f32 %v70, %v711
  %v1005 = vadd.f32 %v71, %v840
  %v1006 = vadd.f32 %v72, %v969
  %v1007 = vadd.f32 %v73, %v713
  %v1008 = vadd.f32 %v74, %v842
  %v1009 = vadd.f32 %v75, %v971
  %v1010 = vadd.f32 %v76, %v716
  %v1011 = vadd.f32 %v77, %v845
  %v1012 = vadd.f32 %v78, %v974
  %v1013 = vadd.f32 %v79, %v718
  %v1014 = vadd.f32 %v80, %v847
  %v1015 = vadd.f32 %v81, %v976
  %v1016 = vadd.f32 %v82, %v721
  %v1017 = vadd.f32 %v83, %v850
  %v1018 = vadd.f32 %v84, %v979
  %v1019 = vadd.f32 %v85, %v723
  %v1020 = vadd.f32 %v86, %v852
  %v1021 = vadd.f32 %v87, %v981
  %v1022 = vadd.f32 %v88, %v726
  %v1023 = vadd.f32 %v89, %v855
  %v1024 = vadd.f32 %v90, %v984
  %v1025 = vadd.f32 %v91, %v728
  %v1026 = vadd.f32 %v92, %v857
  %v1027 = vadd.f32 %v93, %v986
  %v1028 = vadd.f32 %v94, %v731
  %v1029 = vadd.f32 %v95, %v860
  %v1030 = vadd.f32 %v96, %v989
  %1031 = vst [vmem:[#allocation2] sm:$0xff] %v992
  %1032 = vst [vmem:[#allocation2 + $0x8] sm:$0xff] %v993
  %1033 = vst [vmem:[#allocation2 + $0x10] sm:$0xff] %v994
  %1034 = vst [vmem:[#allocation2 + $0x18] sm:$0xff] %v995
  %1035 = vst [vmem:[#allocation2 + $0x20] sm:$0xff] %v996
  %1036 = vst [vmem:[#allocation2 + $0x28] sm:$0xff] %v997
  %1037 = vst [vmem:[#allocation2 + $0x30] sm:$0xff] %v998
  %1038 = vst [vmem:[#allocation2 + $0x38] sm:$0xff] %v999
  %1039 = vst [vmem:[#allocation2 + $0x40] sm:$0xff] %v1000
  %1040 = vst [vmem:[#allocation2 + $0x48] sm:$0xff] %v1001
  %1041 = vst [vmem:[#allocation2 + $0x50] sm:$0xff] %v1002
  %1042 = vst [vmem:[#allocation2 + $0x58] sm:$0xff] %v1003
  %1043 = vst [vmem:[#allocation2 + $0x60] sm:$0xff] %v1004
  %1044 = vst [vmem:[#allocation2 + $0x68] sm:$0xff] %v1005
  %1045 = vst [vmem:[#allocation2 + $0x70] sm:$0xff] %v1006
  %1046 = vst [vmem:[#allocation2 + $0x78] sm:$0xff] %v1007
  %1047 = vst [vmem:[#allocation2 + $0x80] sm:$0xff] %v1008
  %1048 = vst [vmem:[#allocation2 + $0x88] sm:$0xff] %v1009
  %1049 = vst [vmem:[#allocation2 + $0x90] sm:$0xff] %v1010
  %1050 = vst [vmem:[#allocation2 + $0x98] sm:$0xff] %v1011
  %1051 = vst [vmem:[#allocation2 + $0xa0] sm:$0xff] %v1012
  %1052 = vst [vmem:[#allocation2 + $0xa8] sm:$0xff] %v1013
  %1053 = vst [vmem:[#allocation2 + $0xb0] sm:$0xff] %v1014
  %1054 = vst [vmem:[#allocation2 + $0xb8] sm:$0xff] %v1015
  %1055 = vst [vmem:[#allocation2 + $0xc0] sm:$0xff] %v1016
  %1056 = vst [vmem:[#allocation2 + $0xc8] sm:$0xff] %v1017
  %1057 = vst [vmem:[#allocation2 + $0xd0] sm:$0xff] %v1018
  %1058 = vst [vmem:[#allocation2 + $0xd8] sm:$0xff] %v1019
  %1059 = vst [vmem:[#allocation2 + $0xe0] sm:$0xff] %v1020
  %1060 = vst [vmem:[#allocation2 + $0xe8] sm:$0xff] %v1021
  %1061 = vst [vmem:[#allocation2 + $0xf0] sm:$0xff] %v1022
  %1062 = vst [vmem:[#allocation2 + $0xf8] sm:$0xff] %v1023
  %1063 = vst [vmem:[#allocation2 + $0x100] sm:$0xff] %v1024
  %1064 = vst [vmem:[#allocation2 + $0x108] sm:$0xff] %v1025
  %1065 = vst [vmem:[#allocation2 + $0x110] sm:$0xff] %v1026
  %1066 = vst [vmem:[#allocation2 + $0x118] sm:$0xff] %v1027
  %1067 = vst [vmem:[#allocation2 + $0x120] sm:$0xff] %v1028
  %1068 = vst [vmem:[#allocation2 + $0x128] sm:$0xff] %v1029
  %1069 = vst [vmem:[#allocation2 + $0x130] sm:$0xff] %v1030
  // Predicated region
  $region18: #{_lambda_.5} parent=0 // pred_check
    %p1070 = pneg %p15
  $region19: #{_lambda_.5} parent=0 // pred_check_branch
    %1072 = sbr.rel (%p1070) target = $region21
  $region20: #{_lambda_.5} parent=0 // pred_region
    %v1073 = vld [vmem:[#allocation2] sm:$0xff]
    %v1074 = vld [vmem:[#allocation2 + $0x8] sm:$0xff]
    %v1075 = vld [vmem:[#allocation2 + $0x10] sm:$0xff]
    %v1076 = vld [vmem:[#allocation2 + $0x18] sm:$0xff]
    %v1077 = vld [vmem:[#allocation2 + $0x20] sm:$0xff]
    %v1078 = vld [vmem:[#allocation2 + $0x28] sm:$0xff]
    %v1079 = vld [vmem:[#allocation2 + $0x30] sm:$0xff]
    %v1080 = vld [vmem:[#allocation2 + $0x38] sm:$0xff]
    %v1081 = vld [vmem:[#allocation2 + $0x40] sm:$0xff]
    %v1082 = vld [vmem:[#allocation2 + $0x48] sm:$0xff]
    %v1083 = vld [vmem:[#allocation2 + $0x50] sm:$0xff]
    %v1084 = vld [vmem:[#allocation2 + $0x58] sm:$0xff]
    %v1085 = vld [vmem:[#allocation2 + $0x60] sm:$0xff]
    %v1086 = vld [vmem:[#allocation2 + $0x68] sm:$0xff]
    %v1087 = vld [vmem:[#allocation2 + $0x70] sm:$0xff]
    %v1088 = vld [vmem:[#allocation2 + $0x78] sm:$0xff]
    %v1089 = vld [vmem:[#allocation2 + $0x80] sm:$0xff]
    %v1090 = vld [vmem:[#allocation2 + $0x88] sm:$0xff]
    %v1091 = vld [vmem:[#allocation2 + $0x90] sm:$0xff]
    %v1092 = vld [vmem:[#allocation2 + $0x98] sm:$0xff]
    %v1093 = vld [vmem:[#allocation2 + $0xa0] sm:$0xff]
    %v1094 = vld [vmem:[#allocation2 + $0xa8] sm:$0xff]
    %v1095 = vld [vmem:[#allocation2 + $0xb0] sm:$0xff]
    %v1096 = vld [vmem:[#allocation2 + $0xb8] sm:$0xff]
    %v1097 = vld [vmem:[#allocation2 + $0xc0] sm:$0xff]
    %v1098 = vld [vmem:[#allocation2 + $0xc8] sm:$0xff]
    %v1099 = vld [vmem:[#allocation2 + $0xd0] sm:$0xff]
    %v1100 = vld [vmem:[#allocation2 + $0xd8] sm:$0xff]
    %v1101 = vld [vmem:[#allocation2 + $0xe0] sm:$0xff]
    %v1102 = vld [vmem:[#allocation2 + $0xe8] sm:$0xff]
    %v1103 = vld [vmem:[#allocation2 + $0xf0] sm:$0xff]
    %v1104 = vld [vmem:[#allocation2 + $0xf8] sm:$0xff]
    %v1105 = vld [vmem:[#allocation2 + $0x100] sm:$0xff]
    %v1106 = vld [vmem:[#allocation2 + $0x108] sm:$0xff]
    %v1107 = vld [vmem:[#allocation2 + $0x110] sm:$0xff]
    %v1108 = vld [vmem:[#allocation2 + $0x118] sm:$0xff]
    %v1109 = vld [vmem:[#allocation2 + $0x120] sm:$0xff]
    %v1110 = vld [vmem:[#allocation2 + $0x128] sm:$0xff]
    %v1111 = vld [vmem:[#allocation2 + $0x130] sm:$0xff]
    %v1112 = vld [vmem:[%s2] sm:$0x7]
    %v1114 = vperm.slane %v1112, 0
    %v1115 = vperm.slane %v1112, 1
    %v1116 = vperm.slane %v1112, 2
    %v1120 = vadd.f32 %v1073, %v1114
    %v1121 = vadd.f32 %v1074, %v1115
    %v1122 = vadd.f32 %v1075, %v1116
    %v1123 = vadd.f32 %v1076, %v1114
    %v1124 = vadd.f32 %v1077, %v1115
    %v1125 = vadd.f32 %v1078, %v1116
    %v1126 = vadd.f32 %v1079, %v1114
    %v1127 = vadd.f32 %v1080, %v1115
    %v1128 = vadd.f32 %v1081, %v1116
    %v1129 = vadd.f32 %v1082, %v1114
    %v1130 = vadd.f32 %v1083, %v1115
    %v1131 = vadd.f32 %v1084, %v1116
    %v1132 = vadd.f32 %v1085, %v1114
    %v1133 = vadd.f32 %v1086, %v1115
    %v1134 = vadd.f32 %v1087, %v1116
    %v1135 = vadd.f32 %v1088, %v1114
    %v1136 = vadd.f32 %v1089, %v1115
    %v1137 = vadd.f32 %v1090, %v1116
    %v1138 = vadd.f32 %v1091, %v1114
    %v1139 = vadd.f32 %v1092, %v1115
    %v1140 = vadd.f32 %v1093, %v1116
    %v1141 = vadd.f32 %v1094, %v1114
    %v1142 = vadd.f32 %v1095, %v1115
    %v1143 = vadd.f32 %v1096, %v1116
    %v1144 = vadd.f32 %v1097, %v1114
    %v1145 = vadd.f32 %v1098, %v1115
    %v1146 = vadd.f32 %v1099, %v1116
    %v1147 = vadd.f32 %v1100, %v1114
    %v1148 = vadd.f32 %v1101, %v1115
    %v1149 = vadd.f32 %v1102, %v1116
    %v1150 = vadd.f32 %v1103, %v1114
    %v1151 = vadd.f32 %v1104, %v1115
    %v1152 = vadd.f32 %v1105, %v1116
    %v1153 = vadd.f32 %v1106, %v1114
    %v1154 = vadd.f32 %v1107, %v1115
    %v1155 = vadd.f32 %v1108, %v1116
    %v1156 = vadd.f32 %v1109, %v1114
    %v1157 = vadd.f32 %v1110, %v1115
    %v1158 = vadd.f32 %v1111, %v1116
    %v1159 = vmax.f32 %v1120, 0.0
    %v1160 = vmax.f32 %v1121, 0.0
    %v1161 = vmax.f32 %v1122, 0.0
    %v1162 = vmax.f32 %v1123, 0.0
    %v1163 = vmax.f32 %v1124, 0.0
    %v1164 = vmax.f32 %v1125, 0.0
    %v1165 = vmax.f32 %v1126, 0.0
    %v1166 = vmax.f32 %v1127, 0.0
    %v1167 = vmax.f32 %v1128, 0.0
    %v1168 = vmax.f32 %v1129, 0.0
    %v1169 = vmax.f32 %v1130, 0.0
    %v1170 = vmax.f32 %v1131, 0.0
    %v1171 = vmax.f32 %v1132, 0.0
    %v1172 = vmax.f32 %v1133, 0.0
    %v1173 = vmax.f32 %v1134, 0.0
    %v1174 = vmax.f32 %v1135, 0.0
    %v1175 = vmax.f32 %v1136, 0.0
    %v1176 = vmax.f32 %v1137, 0.0
    %v1177 = vmax.f32 %v1138, 0.0
    %v1178 = vmax.f32 %v1139, 0.0
    %v1179 = vmax.f32 %v1140, 0.0
    %v1180 = vmax.f32 %v1141, 0.0
    %v1181 = vmax.f32 %v1142, 0.0
    %v1182 = vmax.f32 %v1143, 0.0
    %v1183 = vmax.f32 %v1144, 0.0
    %v1184 = vmax.f32 %v1145, 0.0
    %v1185 = vmax.f32 %v1146, 0.0
    %v1186 = vmax.f32 %v1147, 0.0
    %v1187 = vmax.f32 %v1148, 0.0
    %v1188 = vmax.f32 %v1149, 0.0
    %v1189 = vmax.f32 %v1150, 0.0
    %v1190 = vmax.f32 %v1151, 0.0
    %v1191 = vmax.f32 %v1152, 0.0
    %v1192 = vmax.f32 %v1153, 0.0
    %v1193 = vmax.f32 %v1154, 0.0
    %v1194 = vmax.f32 %v1155, 0.0
    %v1195 = vmax.f32 %v1156, 0.0
    %v1196 = vmax.f32 %v1157, 0.0
    %v1197 = vmax.f32 %v1158, 0.0
    %1198 = vst [vmem:[%s3] sm:$0xff] %v1159
    %1199 = vst [vmem:[%s3 + $0x8] sm:$0xff] %v1160
    %1200 = vst [vmem:[%s3 + $0x10] sm:$0xff] %v1161
    %1201 = vst [vmem:[%s3 + $0x18] sm:$0xff] %v1162
    %1202 = vst [vmem:[%s3 + $0x20] sm:$0xff] %v1163
    %1203 = vst [vmem:[%s3 + $0x28] sm:$0xff] %v1164
    %1204 = vst [vmem:[%s3 + $0x30] sm:$0xff] %v1165
    %1205 = vst [vmem:[%s3 + $0x38] sm:$0xff] %v1166
    %1206 = vst [vmem:[%s3 + $0x40] sm:$0xff] %v1167
    %1207 = vst [vmem:[%s3 + $0x48] sm:$0xff] %v1168
    %1208 = vst [vmem:[%s3 + $0x50] sm:$0xff] %v1169
    %1209 = vst [vmem:[%s3 + $0x58] sm:$0xff] %v1170
    %1210 = vst [vmem:[%s3 + $0x60] sm:$0xff] %v1171
    %1211 = vst [vmem:[%s3 + $0x68] sm:$0xff] %v1172
    %1212 = vst [vmem:[%s3 + $0x70] sm:$0xff] %v1173
    %1213 = vst [vmem:[%s3 + $0x78] sm:$0xff] %v1174
    %1214 = vst [vmem:[%s3 + $0x80] sm:$0xff] %v1175
    %1215 = vst [vmem:[%s3 + $0x88] sm:$0xff] %v1176
    %1216 = vst [vmem:[%s3 + $0x90] sm:$0xff] %v1177
    %1217 = vst [vmem:[%s3 + $0x98] sm:$0xff] %v1178
    %1218 = vst [vmem:[%s3 + $0xa0] sm:$0xff] %v1179
    %1219 = vst [vmem:[%s3 + $0xa8] sm:$0xff] %v1180
    %1220 = vst [vmem:[%s3 + $0xb0] sm:$0xff] %v1181
    %1221 = vst [vmem:[%s3 + $0xb8] sm:$0xff] %v1182
    %1222 = vst [vmem:[%s3 + $0xc0] sm:$0xff] %v1183
    %1223 = vst [vmem:[%s3 + $0xc8] sm:$0xff] %v1184
    %1224 = vst [vmem:[%s3 + $0xd0] sm:$0xff] %v1185
    %1225 = vst [vmem:[%s3 + $0xd8] sm:$0xff] %v1186
    %1226 = vst [vmem:[%s3 + $0xe0] sm:$0xff] %v1187
    %1227 = vst [vmem:[%s3 + $0xe8] sm:$0xff] %v1188
    %1228 = vst [vmem:[%s3 + $0xf0] sm:$0xff] %v1189
    %1229 = vst [vmem:[%s3 + $0xf8] sm:$0xff] %v1190
    %1230 = vst [vmem:[%s3 + $0x100] sm:$0xff] %v1191
    %1231 = vst [vmem:[%s3 + $0x108] sm:$0xff] %v1192
    %1232 = vst [vmem:[%s3 + $0x110] sm:$0xff] %v1193
    %1233 = vst [vmem:[%s3 + $0x118] sm:$0xff] %v1194
    %1234 = vst [vmem:[%s3 + $0x120] sm:$0xff] %v1195
    %1235 = vst [vmem:[%s3 + $0x128] sm:$0xff] %v1196
    %1236 = vst [vmem:[%s3 + $0x130] sm:$0xff] %v1197
  $region21: #{_lambda_.5} parent=0 // pred_fallthru
    _
  // Predicated region
  $region22: #{_lambda_.5} parent=0 // pred_check
    _
  $region23: #{_lambda_.5} parent=0 // pred_check_branch
    %1238 = sbr.rel (0) target = $region25
  $region24: #{_lambda_.5} parent=0 // pred_region
    _
  $region25: #{_lambda_.5} parent=0 // pred_fallthru
    _
  // Predicated region
  $region26: #{_lambda_.5} parent=0 // pred_check
    _
  $region27: #{_lambda_.5} parent=0 // pred_check_branch
    %1240 = sbr.rel (0) target = $region29
  $region28: #{_lambda_.5} parent=0 // pred_region
    _
  $region29: #{_lambda_.5} parent=0 // pred_fallthru
    _

</llo_original>
